<compile_context>
chip_gen: v7x
topology: tpu7x:2x2x1
jax: 0.10.0
libtpu: 0.0.40
codegen_flags: <defaults>
</compile_context>

<pallas_src>
import functools
import math

import jax
import jax.numpy as jnp
import numpy as np
from jax.experimental import pallas as pl
from jax.experimental.pallas import tpu as pltpu


# Architecture constants fixed by the PyTorch module (input must be 3x32x32).
C_IN, C1_OUT, C2_OUT, KSIZE, NUM_CLASSES = 3, 6, 16, 5, 10
BN_EPS = 1e-5

# Fused-layout constants.
PATCH = 13                       # 13x13 input patch feeds all 25 conv2 taps of a row
K1 = PATCH * PATCH * C_IN        # 507 real features per stage-1 row
K1P = 512                        # padded (lane multiple)
L1 = 256                         # stage-1 lanes: 25 taps * 6 ch = 150 real, padded
L2 = 128                         # stage-2 lanes: 16 channels real, padded
WIN = 32                         # 5x5 = 25 fc windows, padded to a sublane multiple
ROWS = 4 * 4 * WIN               # 512 rows/image: (pool1 pos) x (pool2 pos) x window
CLS_P = 16                       # classes padded


# ----------------------------------------------------------------------------
# The single fused Pallas kernel (whole network per batch tile)
# ----------------------------------------------------------------------------
def _mynet3_kernel(x_ref, w1_ref, b1_ref, w2_ref, b2_ref, wfc_ref, bfc_ref,
                   o_ref, *, bt):
    # Stage 1: expanded conv1 (all conv2 taps per row) + bias + ReLU.  bf16 MXU,
    # f32 accumulation, single K block -> no accumulator scratch needed.
    y1 = jnp.dot(x_ref[...], w1_ref[...], preferred_element_type=jnp.float32)
    y1 = jnp.maximum(y1 + b1_ref[...], 0.0)                 # (bt*512, 256)

    # pool1(2,2): max over the 4 pool-window positions (leading 128-row groups).
    y1 = y1.reshape(bt, 4, 4 * WIN, L1)
    p1 = jnp.maximum(jnp.maximum(y1[:, 0], y1[:, 1]),
                     jnp.maximum(y1[:, 2], y1[:, 3]))
    p1 = p1.reshape(bt * 4 * WIN, L1).astype(jnp.bfloat16)  # conv2 im2col, for free

    # Stage 2: conv2 (bn1 folded into w2/b2) + bias + ReLU.
    y2 = jnp.dot(p1, w2_ref[...], preferred_element_type=jnp.float32)
    y2 = jnp.maximum(y2 + b2_ref[...], 0.0)                 # (bt*128, 128)

    # pool2(2,2): max over the 4 pool-window positions.
    y2 = y2.reshape(bt, 4, WIN, L2)
    p2 = jnp.maximum(jnp.maximum(y2[:, 0], y2[:, 1]),
                     jnp.maximum(y2[:, 2], y2[:, 3]))        # (bt, 32, 128)

    # Dropout(p=0) == identity.  fc (bn2 folded in): contract over
    # (window, channel) with a VPU multiply + XLU reduces (tiny).
    prod = p2[:, None, :, :] * wfc_ref[...][None, :, :, :]   # (bt, 16, 32, 128)
    out = jnp.sum(jnp.sum(prod, axis=3), axis=2) + bfc_ref[...]
    o_ref[...] = out[None]                                   # block (1, bt, 16)


# ----------------------------------------------------------------------------
# Plain-JAX glue: expanded im2col on the raw input (sub-MB per image)
# ----------------------------------------------------------------------------
def _build_x1(x, n_pad):
    """(N, 3, 32, 32) NCHW -> (n_pad*ROWS, K1P) bf16 expanded im2col.

    Row (image, p_idx, q_idx, win) holds the 13x13x3 input patch whose base is
    (4*oh + 2*q_i + p_i, 4*ow + 2*q_j + p_j); feature order is (ii, jj, ci).
    """
    n = x.shape[0]
    xh = jnp.transpose(x, (0, 2, 3, 1))                      # NHWC once (tiny)
    pat = jnp.concatenate(
        [xh[:, i:i + 20, j:j + 20, :]
         for i in range(PATCH) for j in range(PATCH)], axis=-1)   # (N,20,20,507)
    # Base position (bi, bj) decomposes as bi = 4*oh + 2*q_i + p_i (mixed radix).
    pat = pat.reshape(n, 5, 2, 2, 5, 2, 2, K1)               # (oh,q_i,p_i, ow,q_j,p_j, f)
    pat = pat.transpose(0, 3, 6, 2, 5, 1, 4, 7)              # (n, p_i,p_j, q_i,q_j, oh,ow, f)
    pat = pat.reshape(n, 4, 4, 25, K1)
    pat = jnp.pad(pat, ((0, n_pad - n), (0, 0), (0, 0),
                        (0, WIN - 25), (0, K1P - K1)))
    return pat.reshape(n_pad * ROWS, K1P).astype(jnp.bfloat16)


# ----------------------------------------------------------------------------
# Forward pass (mirrors MyNet3.forward)
# ----------------------------------------------------------------------------
def mynet3_forward(params, x):
    """x: (N, 3, 32, 32) NCHW float32 -> (N, NUM_CLASSES) float32."""
    n = x.shape[0]
    bt = max(1, min(8, (n + 1) // 2))        # >=2 parallel grid steps when n >= 2
    n_pad = ((n + bt - 1) // bt) * bt
    grid = n_pad // bt

    x1 = _build_x1(x, n_pad)

    flops = 2 * n_pad * (ROWS * K1P * L1 + 4 * WIN * L1 * L2 + CLS_P * WIN * L2)
    bytes_accessed = (x1.size * 2 + params["w1"].size * 2 + params["w2"].size * 2
                      + params["wfc"].size * 4 + n_pad * CLS_P * 4)

    out = pl.pallas_call(
        functools.partial(_mynet3_kernel, bt=bt),
        out_shape=jax.ShapeDtypeStruct((grid, bt, CLS_P), jnp.float32),
        grid_spec=pltpu.PrefetchScalarGridSpec(
            num_scalar_prefetch=0,
            grid=(grid,),
            in_specs=[
                pl.BlockSpec((bt * ROWS, K1P), lambda i: (i, 0)),
                pl.BlockSpec((K1P, L1), lambda i: (0, 0)),
                pl.BlockSpec((1, L1), lambda i: (0, 0)),
                pl.BlockSpec((L1, L2), lambda i: (0, 0)),
                pl.BlockSpec((1, L2), lambda i: (0, 0)),
                pl.BlockSpec((CLS_P, WIN, L2), lambda i: (0, 0, 0)),
                pl.BlockSpec((1, CLS_P), lambda i: (0, 0)),
            ],
            out_specs=pl.BlockSpec((1, bt, CLS_P), lambda i: (i, 0, 0)),
        ),
        compiler_params=pltpu.CompilerParams(
            dimension_semantics=("parallel",)),
        cost_estimate=pl.CostEstimate(
            flops=flops, transcendentals=0, bytes_accessed=bytes_accessed),
    )(x1, params["w1"], params["b1"], params["w2"], params["b2"],
      params["wfc"], params["bfc"])

    return out.reshape(n_pad, CLS_P)[:n, :NUM_CLASSES]


# ----------------------------------------------------------------------------
# Parameters: PyTorch-default-style init, pre-laid-out for the fused kernel
# ----------------------------------------------------------------------------
def _pack_params(w1, b1, g1, be1, w2, b2, g2, be2, wfc, bfc):
    """Lay weights out for the fused kernel; fold BN affines exactly."""
    s1 = g1 / np.sqrt(1.0 + BN_EPS)          # running stats: mean 0, var 1
    t1 = be1
    s2 = g2 / np.sqrt(1.0 + BN_EPS)
    t2 = be2

    # Stage-1 expanded conv1 weight: rows = 13x13x3 patch (ii, jj, ci),
    # cols = (di, dj, c) = conv2 tap x conv1 channel.
    w1e = np.zeros((K1P, L1), np.float32)
    b1e = np.zeros((1, L1), np.float32)
    for di in range(KSIZE):
        for dj in range(KSIZE):
            for c in range(C1_OUT):
                lane = (di * KSIZE + dj) * C1_OUT + c
                b1e[0, lane] = b1[c]
                for ki in range(KSIZE):
                    for kj in range(KSIZE):
                        for ci in range(C_IN):
                            f = ((2 * di + ki) * PATCH + (2 * dj + kj)) * C_IN + ci
                            w1e[f, lane] = w1[c, ci, ki, kj]

    # Stage-2 conv2 weight with bn1 folded in (exact: bn1 affine, conv2 linear).
    w2e = np.zeros((L1, L2), np.float32)
    b2e = np.zeros((1, L2), np.float32)
    for co in range(C2_OUT):
        acc = float(b2[co])
        for di in range(KSIZE):
            for dj in range(KSIZE):
                for c in range(C1_OUT):
                    lane = (di * KSIZE + dj) * C1_OUT + c
                    w2e[lane, co] = s1[c] * w2[co, c, di, dj]
                    acc += t1[c] * w2[co, c, di, dj]
        b2e[0, co] = acc

    # fc weight with bn2 folded in; laid out (class, 5x5 window, channel lane).
    # PyTorch flattens NCHW as (c, h, w): wfc column index = c*25 + oh*5 + ow.
    wfc3 = wfc.reshape(NUM_CLASSES, C2_OUT, 5, 5)
    wfce = np.zeros((CLS_P, WIN, L2), np.float32)
    bfce = np.zeros((1, CLS_P), np.float32)
    for k in range(NUM_CLASSES):
        acc = float(bfc[k])
        for co in range(C2_OUT):
            for oh in range(5):
                for ow in range(5):
                    wfce[k, oh * 5 + ow, co] = s2[co] * wfc3[k, co, oh, ow]
                    acc += t2[co] * wfc3[k, co, oh, ow]
        bfce[0, k] = acc

    return {
        "w1": jnp.asarray(w1e, jnp.bfloat16),
        "b1": jnp.asarray(b1e, jnp.float32),
        "w2": jnp.asarray(w2e, jnp.bfloat16),
        "b2": jnp.asarray(b2e, jnp.float32),
        "wfc": jnp.asarray(wfce, jnp.float32),
        "bfc": jnp.asarray(bfce, jnp.float32),
    }


def init_params(key):
    ks = jax.random.split(key, 10)
    bw1 = 1.0 / math.sqrt(C_IN * KSIZE * KSIZE)
    w1 = jax.random.uniform(ks[0], (C1_OUT, C_IN, KSIZE, KSIZE), jnp.float32, -bw1, bw1)
    b1 = jax.random.uniform(ks[1], (C1_OUT,), jnp.float32, -bw1, bw1)
    g1 = jax.random.uniform(ks[2], (C1_OUT,), jnp.float32, 0.5, 1.5)
    be1 = jax.random.uniform(ks[3], (C1_OUT,), jnp.float32, -0.1, 0.1)
    bw2 = 1.0 / math.sqrt(C1_OUT * KSIZE * KSIZE)
    w2 = jax.random.uniform(ks[4], (C2_OUT, C1_OUT, KSIZE, KSIZE), jnp.float32, -bw2, bw2)
    b2 = jax.random.uniform(ks[5], (C2_OUT,), jnp.float32, -bw2, bw2)
    g2 = jax.random.uniform(ks[6], (C2_OUT,), jnp.float32, 0.5, 1.5)
    be2 = jax.random.uniform(ks[7], (C2_OUT,), jnp.float32, -0.1, 0.1)
    bwf = 1.0 / math.sqrt(C2_OUT * 5 * 5)
    wfc = jax.random.uniform(ks[8], (NUM_CLASSES, C2_OUT * 25), jnp.float32, -bwf, bwf)
    bfc = jax.random.uniform(ks[9], (NUM_CLASSES,), jnp.float32, -bwf, bwf)

    raw = {"w1": w1, "b1": b1, "g1": g1, "be1": be1,
           "w2": w2, "b2": b2, "g2": g2, "be2": be2,
           "wfc": wfc, "bfc": bfc}
    packed = _pack_params(*[np.asarray(raw[k]) for k in
                            ("w1", "b1", "g1", "be1", "w2", "b2",
                             "g2", "be2", "wfc", "bfc")])
    return packed, raw


# ----------------------------------------------------------------------------
# Plain-JAX f32 reference (same inference-BN semantics), for a sanity check
# ----------------------------------------------------------------------------
def reference_forward(raw, x):
    dn = ("NCHW", "OIHW", "NCHW")
    hi = jax.lax.Precision.HIGHEST
    s1 = raw["g1"] / jnp.sqrt(1.0 + BN_EPS)
    s2 = raw["g2"] / jnp.sqrt(1.0 + BN_EPS)
    y = jax.lax.conv_general_dilated(x, raw["w1"], (1, 1), "VALID",
                                     dimension_numbers=dn, precision=hi)
    y = jnp.maximum(y + raw["b1"].reshape(1, -1, 1, 1), 0.0)
    y = jax.lax.reduce_window(y, -jnp.inf, jax.lax.max,
                              (1, 1, 2, 2), (1, 1, 2, 2), "VALID")
    y = y * s1.reshape(1, -1, 1, 1) + raw["be1"].reshape(1, -1, 1, 1)
    y = jax.lax.conv_general_dilated(y, raw["w2"], (1, 1), "VALID",
                                     dimension_numbers=dn, precision=hi)
    y = jnp.maximum(y + raw["b2"].reshape(1, -1, 1, 1), 0.0)
    y = jax.lax.reduce_window(y, -jnp.inf, jax.lax.max,
                              (1, 1, 2, 2), (1, 1, 2, 2), "VALID")
    y = y * s2.reshape(1, -1, 1, 1) + raw["be2"].reshape(1, -1, 1, 1)
    y = y.reshape(x.shape[0], -1)
    return jnp.dot(y, raw["wfc"].T, precision=hi) + raw["bfc"]


if __name__ == "__main__":
    key = jax.random.PRNGKey(0)
    pkey, xkey = jax.random.split(key)
    params, raw = init_params(pkey)
    # Input size implied by fc1 = Linear(16*5*5, num_classes): 3x32x32.
    x = jax.random.normal(xkey, (2, C_IN, 32, 32), jnp.float32)

    fwd = jax.jit(mynet3_forward)
    out = fwd(params, x)
    jax.block_until_ready(out)
    assert out.shape == (2, NUM_CLASSES) and out.dtype == jnp.float32

    ref = reference_forward(raw, x)
    np.testing.assert_allclose(np.asarray(out), np.asarray(ref),
                               rtol=5e-2, atol=5e-2)
    print("KERNEL_OK")
</pallas_src>

<mosaic_0001>
module attributes {stable_mosaic.version = 11 : i64} {
  func.func @_mynet3_kernel(%arg0: i32, %arg1: memref<512x512xbf16, #tpu.memory_space<vmem>>, %arg2: memref<512x256xbf16, #tpu.memory_space<vmem>>, %arg3: memref<1x256xf32, #tpu.memory_space<vmem>>, %arg4: memref<256x128xbf16, #tpu.memory_space<vmem>>, %arg5: memref<1x128xf32, #tpu.memory_space<vmem>>, %arg6: memref<16x32x128xf32, #tpu.memory_space<vmem>>, %arg7: memref<1x16xf32, #tpu.memory_space<vmem>>, %arg8: memref<1x1x16xf32, #tpu.memory_space<vmem>>) attributes {dimension_semantics = [#tpu.dimension_semantics<parallel>], iteration_bounds = array<i64: 2>, scalar_prefetch = 0 : i64, scratch_operands = 0 : i64, tpu.core_type = #tpu.core_type<tc>, window_params = [{transform_indices = @transform_0, window_bounds = array<i64: 512, 512>}, {pipeline_mode = #tpu.pipeline_mode<synchronous>, transform_indices = @transform_1, window_bounds = array<i64: 512, 256>}, {pipeline_mode = #tpu.pipeline_mode<synchronous>, transform_indices = @transform_2, window_bounds = array<i64: 1, 256>}, {pipeline_mode = #tpu.pipeline_mode<synchronous>, transform_indices = @transform_3, window_bounds = array<i64: 256, 128>}, {pipeline_mode = #tpu.pipeline_mode<synchronous>, transform_indices = @transform_4, window_bounds = array<i64: 1, 128>}, {pipeline_mode = #tpu.pipeline_mode<synchronous>, transform_indices = @transform_5, window_bounds = array<i64: 16, 32, 128>}, {pipeline_mode = #tpu.pipeline_mode<synchronous>, transform_indices = @transform_6, window_bounds = array<i64: 1, 16>}, {transform_indices = @transform_7, window_bounds = array<i64: 1, 1, 16>}]} {
    %c0 = arith.constant 0 : index
    %c0_0 = arith.constant 0 : index
    %0 = vector.load %arg1[%c0, %c0_0] : memref<512x512xbf16, #tpu.memory_space<vmem>>, vector<512x512xbf16>
    %c0_1 = arith.constant 0 : index
    %c0_2 = arith.constant 0 : index
    %1 = vector.load %arg2[%c0_1, %c0_2] : memref<512x256xbf16, #tpu.memory_space<vmem>>, vector<512x256xbf16>
    %cst = arith.constant dense<0.000000e+00> : vector<512x256xf32>
    %2 = tpu.matmul %0, %1, %cst {dimension_numbers = #tpu.dot_dimension_numbers<[1], [0], [0], [1], [0, 0, 1, 1], [], []>} : vector<512x512xbf16>, vector<512x256xbf16>, vector<512x256xf32> -> vector<512x256xf32>
    %c0_3 = arith.constant 0 : index
    %c0_4 = arith.constant 0 : index
    %3 = vector.load %arg3[%c0_3, %c0_4] : memref<1x256xf32, #tpu.memory_space<vmem>>, vector<1x256xf32>
    %4 = vector.broadcast %3 : vector<1x256xf32> to vector<512x256xf32>
    %5 = arith.addf %2, %4 : vector<512x256xf32>
    %cst_5 = arith.constant 0.000000e+00 : f32
    %6 = vector.broadcast %cst_5 : f32 to vector<512x256xf32>
    %7 = arith.maximumf %5, %6 : vector<512x256xf32>
    %8 = vector.shape_cast %7 : vector<512x256xf32> to vector<1x4x128x256xf32>
    %9 = vector.extract_strided_slice %8 {offsets = [0, 0, 0, 0], sizes = [1, 1, 128, 256], strides = [1, 1, 1, 1]} : vector<1x4x128x256xf32> to vector<1x1x128x256xf32>
    %10 = vector.shape_cast %9 : vector<1x1x128x256xf32> to vector<1x128x256xf32>
    %11 = vector.extract_strided_slice %8 {offsets = [0, 1, 0, 0], sizes = [1, 1, 128, 256], strides = [1, 1, 1, 1]} : vector<1x4x128x256xf32> to vector<1x1x128x256xf32>
    %12 = vector.shape_cast %11 : vector<1x1x128x256xf32> to vector<1x128x256xf32>
    %13 = arith.maximumf %10, %12 : vector<1x128x256xf32>
    %14 = vector.extract_strided_slice %8 {offsets = [0, 2, 0, 0], sizes = [1, 1, 128, 256], strides = [1, 1, 1, 1]} : vector<1x4x128x256xf32> to vector<1x1x128x256xf32>
    %15 = vector.shape_cast %14 : vector<1x1x128x256xf32> to vector<1x128x256xf32>
    %16 = vector.extract_strided_slice %8 {offsets = [0, 3, 0, 0], sizes = [1, 1, 128, 256], strides = [1, 1, 1, 1]} : vector<1x4x128x256xf32> to vector<1x1x128x256xf32>
    %17 = vector.shape_cast %16 : vector<1x1x128x256xf32> to vector<1x128x256xf32>
    %18 = arith.maximumf %15, %17 : vector<1x128x256xf32>
    %19 = arith.maximumf %13, %18 : vector<1x128x256xf32>
    %20 = vector.shape_cast %19 : vector<1x128x256xf32> to vector<128x256xf32>
    %21 = arith.truncf %20 : vector<128x256xf32> to vector<128x256xbf16>
    %c0_6 = arith.constant 0 : index
    %c0_7 = arith.constant 0 : index
    %22 = vector.load %arg4[%c0_6, %c0_7] : memref<256x128xbf16, #tpu.memory_space<vmem>>, vector<256x128xbf16>
    %cst_8 = arith.constant dense<0.000000e+00> : vector<128x128xf32>
    %23 = tpu.matmul %21, %22, %cst_8 {dimension_numbers = #tpu.dot_dimension_numbers<[1], [0], [0], [1], [0, 0, 1, 1], [], []>} : vector<128x256xbf16>, vector<256x128xbf16>, vector<128x128xf32> -> vector<128x128xf32>
    %c0_9 = arith.constant 0 : index
    %c0_10 = arith.constant 0 : index
    %24 = vector.load %arg5[%c0_9, %c0_10] : memref<1x128xf32, #tpu.memory_space<vmem>>, vector<1x128xf32>
    %25 = vector.broadcast %24 : vector<1x128xf32> to vector<128x128xf32>
    %26 = arith.addf %23, %25 : vector<128x128xf32>
    %cst_11 = arith.constant 0.000000e+00 : f32
    %27 = vector.broadcast %cst_11 : f32 to vector<128x128xf32>
    %28 = arith.maximumf %26, %27 : vector<128x128xf32>
    %29 = vector.shape_cast %28 : vector<128x128xf32> to vector<1x4x32x128xf32>
    %30 = vector.extract_strided_slice %29 {offsets = [0, 0, 0, 0], sizes = [1, 1, 32, 128], strides = [1, 1, 1, 1]} : vector<1x4x32x128xf32> to vector<1x1x32x128xf32>
    %31 = vector.shape_cast %30 : vector<1x1x32x128xf32> to vector<1x32x128xf32>
    %32 = vector.extract_strided_slice %29 {offsets = [0, 1, 0, 0], sizes = [1, 1, 32, 128], strides = [1, 1, 1, 1]} : vector<1x4x32x128xf32> to vector<1x1x32x128xf32>
    %33 = vector.shape_cast %32 : vector<1x1x32x128xf32> to vector<1x32x128xf32>
    %34 = arith.maximumf %31, %33 : vector<1x32x128xf32>
    %35 = vector.extract_strided_slice %29 {offsets = [0, 2, 0, 0], sizes = [1, 1, 32, 128], strides = [1, 1, 1, 1]} : vector<1x4x32x128xf32> to vector<1x1x32x128xf32>
    %36 = vector.shape_cast %35 : vector<1x1x32x128xf32> to vector<1x32x128xf32>
    %37 = vector.extract_strided_slice %29 {offsets = [0, 3, 0, 0], sizes = [1, 1, 32, 128], strides = [1, 1, 1, 1]} : vector<1x4x32x128xf32> to vector<1x1x32x128xf32>
    %38 = vector.shape_cast %37 : vector<1x1x32x128xf32> to vector<1x32x128xf32>
    %39 = arith.maximumf %36, %38 : vector<1x32x128xf32>
    %40 = arith.maximumf %34, %39 : vector<1x32x128xf32>
    %41 = vector.shape_cast %40 : vector<1x32x128xf32> to vector<1x1x32x128xf32>
    %c0_12 = arith.constant 0 : index
    %c0_13 = arith.constant 0 : index
    %c0_14 = arith.constant 0 : index
    %42 = vector.load %arg6[%c0_12, %c0_13, %c0_14] : memref<16x32x128xf32, #tpu.memory_space<vmem>>, vector<16x32x128xf32>
    %43 = vector.shape_cast %42 : vector<16x32x128xf32> to vector<1x16x32x128xf32>
    %44 = vector.broadcast %41 : vector<1x1x32x128xf32> to vector<1x16x32x128xf32>
    %45 = arith.mulf %44, %43 : vector<1x16x32x128xf32>
    %cst_15 = arith.constant dense<0.000000e+00> : vector<1x16x32xf32>
    %46 = vector.multi_reduction <add>, %45, %cst_15 [3] : vector<1x16x32x128xf32> to vector<1x16x32xf32>
    %cst_16 = arith.constant dense<0.000000e+00> : vector<1x16xf32>
    %47 = vector.multi_reduction <add>, %46, %cst_16 [2] : vector<1x16x32xf32> to vector<1x16xf32>
    %c0_17 = arith.constant 0 : index
    %c0_18 = arith.constant 0 : index
    %48 = vector.load %arg7[%c0_17, %c0_18] : memref<1x16xf32, #tpu.memory_space<vmem>>, vector<1x16xf32>
    %49 = arith.addf %47, %48 : vector<1x16xf32>
    %50 = vector.shape_cast %49 : vector<1x16xf32> to vector<1x1x16xf32>
    %c0_19 = arith.constant 0 : index
    %c0_20 = arith.constant 0 : index
    %c0_21 = arith.constant 0 : index
    %51 = vector.load %arg8[%c0_19, %c0_20, %c0_21] : memref<1x1x16xf32, #tpu.memory_space<vmem>>, vector<1x1x16xf32>
    tpu.vector_store %arg8[%c0_19, %c0_20, %c0_21], %50 {strides = array<i32>} : memref<1x1x16xf32, #tpu.memory_space<vmem>>, vector<1x1x16xf32>,
    return
  }
  func.func @transform_0(%arg0: i32) -> (i32, i32) {
    %c0_i32 = arith.constant 0 : i32
    %c0_i32_0 = arith.constant 0 : i32
    return %arg0, %c0_i32 : i32, i32
  }
  func.func @transform_1(%arg0: i32) -> (i32, i32) {
    %c0_i32 = arith.constant 0 : i32
    %c0_i32_0 = arith.constant 0 : i32
    %c0_i32_1 = arith.constant 0 : i32
    return %c0_i32, %c0_i32_0 : i32, i32
  }
  func.func @transform_2(%arg0: i32) -> (i32, i32) {
    %c0_i32 = arith.constant 0 : i32
    %c0_i32_0 = arith.constant 0 : i32
    %c0_i32_1 = arith.constant 0 : i32
    return %c0_i32, %c0_i32_0 : i32, i32
  }
  func.func @transform_3(%arg0: i32) -> (i32, i32) {
    %c0_i32 = arith.constant 0 : i32
    %c0_i32_0 = arith.constant 0 : i32
    %c0_i32_1 = arith.constant 0 : i32
    return %c0_i32, %c0_i32_0 : i32, i32
  }
  func.func @transform_4(%arg0: i32) -> (i32, i32) {
    %c0_i32 = arith.constant 0 : i32
    %c0_i32_0 = arith.constant 0 : i32
    %c0_i32_1 = arith.constant 0 : i32
    return %c0_i32, %c0_i32_0 : i32, i32
  }
  func.func @transform_5(%arg0: i32) -> (i32, i32, i32) {
    %c0_i32 = arith.constant 0 : i32
    %c0_i32_0 = arith.constant 0 : i32
    %c0_i32_1 = arith.constant 0 : i32
    %c0_i32_2 = arith.constant 0 : i32
    return %c0_i32, %c0_i32_0, %c0_i32_1 : i32, i32, i32
  }
  func.func @transform_6(%arg0: i32) -> (i32, i32) {
    %c0_i32 = arith.constant 0 : i32
    %c0_i32_0 = arith.constant 0 : i32
    %c0_i32_1 = arith.constant 0 : i32
    return %c0_i32, %c0_i32_0 : i32, i32
  }
  func.func @transform_7(%arg0: i32) -> (i32, i32, i32) {
    %c0_i32 = arith.constant 0 : i32
    %c0_i32_0 = arith.constant 0 : i32
    %c0_i32_1 = arith.constant 0 : i32
    return %arg0, %c0_i32, %c0_i32_0 : i32, i32, i32
  }
}

</mosaic_0001>

<llo_original>
// kernel: mynet3_forward.1
$region0: #{mynet3_forward.1}
  #allocation0 [shape = 'u32[]', space=smem, size = 0x4, offset = 0x4, fixed_abs, tag = 'smem constant byte address 0x4 - core index']
  #allocation1 [shape = 'u32[144,128]{1,0:T(1,128)}', space=vmem, size = 0x12000, scoped, tag = 'internal scratch']
  %s0 = inlined_call_operand.vmem [shape: bf16[1024,512], index: 0, kind: input, shape index: {}]
  %s1 = inlined_call_operand.vmem [shape: bf16[512,256], index: 1, kind: input, shape index: {}]
  %s2 = inlined_call_operand.vmem [shape: f32[1,256], index: 2, kind: input, shape index: {}]
  %s3 = inlined_call_operand.vmem [shape: bf16[256,128], index: 3, kind: input, shape index: {}]
  %s4 = inlined_call_operand.vmem [shape: f32[1,128], index: 4, kind: input, shape index: {}]
  %s5 = inlined_call_operand.vmem [shape: f32[16,32,128], index: 5, kind: input, shape index: {}]
  %s6 = inlined_call_operand.vmem [shape: f32[1,16], index: 6, kind: input, shape index: {}]
  %s7 = inlined_call_operand.hbm [shape: f32[2,1,16], index: 7, kind: output, shape index: {}]
  %s8 = sld [smem:[#allocation0]]
  $region61: #{mynet3_forward.1} parent=0
    _
  %s10 = ssub.s32 1, %s8
  %s11 = scalar_select 0, %s10, %s8
  $region1: #{mynet3_forward.1} parent=0
    #allocation2 [shape = 'u8[1024]{0}', space=vmem, size = 0x400, scoped, tag = 'output window, operand 0']
    #allocation3 [shape = 's32[2]{0}', space=sflag, size = 0x8, scoped, tag = 'scoped memory for mynet3_forward.1']
    %12 = vsyncpa [#allocation3], 0
    %s13 = scalar_lea.sflag [#allocation3], 1
    %14 = vsyncpa %s13, 0
    loop: start=0, step=1, limit=4
    $region2: #{mynet3_forward.1} parent=1 // loop_pre_header
      _
    $region3: #{mynet3_forward.1} parent=1 // loop_header
      %s16 = sphi 0, %s20
      %p17 = scmp.ge.s32.totalorder %s16, 4
      %s26 = sphi 0, %s28
      %s29 = sphi 0, %s26
      %s30 = sphi 0, %s29
      %s46 = sphi 0, %s30
      %s50 = sphi 0, %s50
      %s52 = sphi 0, %s50
      %s53 = sphi 0, %s52
      %s67 = sphi 0, %s53
      %s71 = sphi 0, %s71
      %s73 = sphi 0, %s71
      %s74 = sphi 0, %s73
      %s88 = sphi 0, %s74
      %s92 = sphi 0, %s92
      %s94 = sphi 0, %s92
      %s95 = sphi 0, %s94
      %s109 = sphi 0, %s95
      %s113 = sphi 0, %s113
      %s115 = sphi 0, %s113
      %s116 = sphi 0, %s115
      %s130 = sphi 0, %s116
      %s134 = sphi 0, %s134
      %s136 = sphi 0, %s134
      %s137 = sphi 0, %s136
      %s151 = sphi 0, %s137
      %s155 = sphi 0, %s155
      %s157 = sphi 0, %s155
      %s158 = sphi 0, %s157
      %s172 = sphi 0, %s158
      %s178 = sphi 0, %s180
      %s181 = sphi 0, %s178
      %s182 = sphi 0, %s181
      %s198 = sphi 0, %s182
    $region4: #{mynet3_forward.1} parent=1 // loop_header_branch
      %19 = sbr.rel (%p17) target = $region8
    $region5: #{mynet3_forward.1} parent=1 // loop_body
      %s21 = ssub.s32 %s16, 1
      %s22 = ssub.s32 %s16, 2
      %s23 = sadd.s32 %s16, 1
      %s24 = ssub.s32 %s16, %s23
      %p25 = scmp.eq.s32.totalorder %s24, 0
      %s27 = sadd.s32 %s26, 1
      %s28 = scalar_select %p25, %s26, %s27
      %p31 = pneg %p25
      %p32 = scmp.eq.s32.totalorder %s16, 1
      %p33 = por %p31, %p32
      %p34 = scmp.ne.s32.totalorder %s26, %s29
      %p35 = scmp.eq.s32.totalorder %s16, 0
      %p36 = por %p34, %p35
      %p37 = scmp.ne.s32.totalorder %s26, %s29
      %p38 = scmp.eq.s32.totalorder %s21, 1
      %p39 = por %p37, %p38
      %p40 = scmp.ne.s32.totalorder %s29, %s30
      %p41 = scmp.eq.s32.totalorder %s21, 0
      %p42 = por %p40, %p41
      %p43 = scmp.ne.s32.totalorder %s29, %s30
      %p44 = scmp.eq.s32.totalorder %s22, 1
      %p45 = por %p43, %p44
      %p47 = scmp.ne.s32.totalorder %s30, %s46
      %p48 = scmp.eq.s32.totalorder %s22, 0
      %p49 = por %p47, %p48
      %s51 = sadd.s32 %s50, 1
      %p54 = scmp.eq.s32.totalorder %s16, 1
      %p55 = scmp.ne.s32.totalorder %s50, %s52
      %p56 = scmp.eq.s32.totalorder %s16, 0
      %p57 = por %p55, %p56
      %p58 = scmp.ne.s32.totalorder %s50, %s52
      %p59 = scmp.eq.s32.totalorder %s21, 1
      %p60 = por %p58, %p59
      %p61 = scmp.ne.s32.totalorder %s52, %s53
      %p62 = scmp.eq.s32.totalorder %s21, 0
      %p63 = por %p61, %p62
      %p64 = scmp.ne.s32.totalorder %s52, %s53
      %p65 = scmp.eq.s32.totalorder %s22, 1
      %p66 = por %p64, %p65
      %p68 = scmp.ne.s32.totalorder %s53, %s67
      %p69 = scmp.eq.s32.totalorder %s22, 0
      %p70 = por %p68, %p69
      %s72 = sadd.s32 %s71, 1
      %p75 = scmp.eq.s32.totalorder %s16, 1
      %p76 = scmp.ne.s32.totalorder %s71, %s73
      %p77 = scmp.eq.s32.totalorder %s16, 0
      %p78 = por %p76, %p77
      %p79 = scmp.ne.s32.totalorder %s71, %s73
      %p80 = scmp.eq.s32.totalorder %s21, 1
      %p81 = por %p79, %p80
      %p82 = scmp.ne.s32.totalorder %s73, %s74
      %p83 = scmp.eq.s32.totalorder %s21, 0
      %p84 = por %p82, %p83
      %p85 = scmp.ne.s32.totalorder %s73, %s74
      %p86 = scmp.eq.s32.totalorder %s22, 1
      %p87 = por %p85, %p86
      %p89 = scmp.ne.s32.totalorder %s74, %s88
      %p90 = scmp.eq.s32.totalorder %s22, 0
      %p91 = por %p89, %p90
      %s93 = sadd.s32 %s92, 1
      %p96 = scmp.eq.s32.totalorder %s16, 1
      %p97 = scmp.ne.s32.totalorder %s92, %s94
      %p98 = scmp.eq.s32.totalorder %s16, 0
      %p99 = por %p97, %p98
      %p100 = scmp.ne.s32.totalorder %s92, %s94
      %p101 = scmp.eq.s32.totalorder %s21, 1
      %p102 = por %p100, %p101
      %p103 = scmp.ne.s32.totalorder %s94, %s95
      %p104 = scmp.eq.s32.totalorder %s21, 0
      %p105 = por %p103, %p104
      %p106 = scmp.ne.s32.totalorder %s94, %s95
      %p107 = scmp.eq.s32.totalorder %s22, 1
      %p108 = por %p106, %p107
      %p110 = scmp.ne.s32.totalorder %s95, %s109
      %p111 = scmp.eq.s32.totalorder %s22, 0
      %p112 = por %p110, %p111
      %s114 = sadd.s32 %s113, 1
      %p117 = scmp.eq.s32.totalorder %s16, 1
      %p118 = scmp.ne.s32.totalorder %s113, %s115
      %p119 = scmp.eq.s32.totalorder %s16, 0
      %p120 = por %p118, %p119
      %p121 = scmp.ne.s32.totalorder %s113, %s115
      %p122 = scmp.eq.s32.totalorder %s21, 1
      %p123 = por %p121, %p122
      %p124 = scmp.ne.s32.totalorder %s115, %s116
      %p125 = scmp.eq.s32.totalorder %s21, 0
      %p126 = por %p124, %p125
      %p127 = scmp.ne.s32.totalorder %s115, %s116
      %p128 = scmp.eq.s32.totalorder %s22, 1
      %p129 = por %p127, %p128
      %p131 = scmp.ne.s32.totalorder %s116, %s130
      %p132 = scmp.eq.s32.totalorder %s22, 0
      %p133 = por %p131, %p132
      %s135 = sadd.s32 %s134, 1
      %p138 = scmp.eq.s32.totalorder %s16, 1
      %p139 = scmp.ne.s32.totalorder %s134, %s136
      %p140 = scmp.eq.s32.totalorder %s16, 0
      %p141 = por %p139, %p140
      %p142 = scmp.ne.s32.totalorder %s134, %s136
      %p143 = scmp.eq.s32.totalorder %s21, 1
      %p144 = por %p142, %p143
      %p145 = scmp.ne.s32.totalorder %s136, %s137
      %p146 = scmp.eq.s32.totalorder %s21, 0
      %p147 = por %p145, %p146
      %p148 = scmp.ne.s32.totalorder %s136, %s137
      %p149 = scmp.eq.s32.totalorder %s22, 1
      %p150 = por %p148, %p149
      %p152 = scmp.ne.s32.totalorder %s137, %s151
      %p153 = scmp.eq.s32.totalorder %s22, 0
      %p154 = por %p152, %p153
      %s156 = sadd.s32 %s155, 1
      %p159 = scmp.eq.s32.totalorder %s16, 1
      %p160 = scmp.ne.s32.totalorder %s155, %s157
      %p161 = scmp.eq.s32.totalorder %s16, 0
      %p162 = por %p160, %p161
      %p163 = scmp.ne.s32.totalorder %s155, %s157
      %p164 = scmp.eq.s32.totalorder %s21, 1
      %p165 = por %p163, %p164
      %p166 = scmp.ne.s32.totalorder %s157, %s158
      %p167 = scmp.eq.s32.totalorder %s21, 0
      %p168 = por %p166, %p167
      %p169 = scmp.ne.s32.totalorder %s157, %s158
      %p170 = scmp.eq.s32.totalorder %s22, 1
      %p171 = por %p169, %p170
      %p173 = scmp.ne.s32.totalorder %s158, %s172
      %p174 = scmp.eq.s32.totalorder %s22, 0
      %p175 = por %p173, %p174
      %s176 = ssub.s32 %s16, %s23
      %p177 = scmp.eq.s32.totalorder %s176, 0
      %s179 = sadd.s32 %s178, 1
      %s180 = scalar_select %p177, %s178, %s179
      %p183 = pneg %p177
      %p184 = scmp.eq.s32.totalorder %s16, 1
      %p185 = por %p183, %p184
      %p186 = scmp.ne.s32.totalorder %s178, %s181
      %p187 = scmp.eq.s32.totalorder %s16, 0
      %p188 = por %p186, %p187
      %p189 = scmp.ne.s32.totalorder %s178, %s181
      %p190 = scmp.eq.s32.totalorder %s21, 1
      %p191 = por %p189, %p190
      %p192 = scmp.ne.s32.totalorder %s181, %s182
      %p193 = scmp.eq.s32.totalorder %s21, 0
      %p194 = por %p192, %p193
      %p195 = scmp.ne.s32.totalorder %s181, %s182
      %p196 = scmp.eq.s32.totalorder %s22, 1
      %p197 = por %p195, %p196
      %p199 = scmp.ne.s32.totalorder %s182, %s198
      %p200 = scmp.eq.s32.totalorder %s22, 0
      %p201 = por %p199, %p200
      %p202 = scmp.le.s32.totalorder 1, %s16
      %p203 = scmp.lt.s32.totalorder %s16, 3
      %p204 = pnand %p202, %p203
      %p205 = pneg %p204
      // Predicated region
      $region9: #{mynet3_forward.1} parent=5 // pred_check
        _
      $region10: #{mynet3_forward.1} parent=5 // pred_check_branch
        %207 = sbr.rel (%p204) target = $region12
      $region11: #{mynet3_forward.1} parent=5 // pred_region
        %s208 = ssub.s32 %s16, 1
        // Predicated region
        $region13: #{mynet3_forward.1} parent=11 // pred_check
          %p209 = pneg %p63
        $region14: #{mynet3_forward.1} parent=11 // pred_check_branch
          %211 = sbr.rel (%p209) target = $region16
        $region15: #{mynet3_forward.1} parent=11 // pred_region
          _
        $region16: #{mynet3_forward.1} parent=11 // pred_fallthru
          _
        // Predicated region
        $region17: #{mynet3_forward.1} parent=11 // pred_check
          %p212 = pneg %p84
        $region18: #{mynet3_forward.1} parent=11 // pred_check_branch
          %214 = sbr.rel (%p212) target = $region20
        $region19: #{mynet3_forward.1} parent=11 // pred_region
          _
        $region20: #{mynet3_forward.1} parent=11 // pred_fallthru
          _
        // Predicated region
        $region21: #{mynet3_forward.1} parent=11 // pred_check
          %p215 = pneg %p105
        $region22: #{mynet3_forward.1} parent=11 // pred_check_branch
          %217 = sbr.rel (%p215) target = $region24
        $region23: #{mynet3_forward.1} parent=11 // pred_region
          _
        $region24: #{mynet3_forward.1} parent=11 // pred_fallthru
          _
        // Predicated region
        $region25: #{mynet3_forward.1} parent=11 // pred_check
          %p218 = pneg %p126
        $region26: #{mynet3_forward.1} parent=11 // pred_check_branch
          %220 = sbr.rel (%p218) target = $region28
        $region27: #{mynet3_forward.1} parent=11 // pred_region
          _
        $region28: #{mynet3_forward.1} parent=11 // pred_fallthru
          _
        // Predicated region
        $region29: #{mynet3_forward.1} parent=11 // pred_check
          %p221 = pneg %p147
        $region30: #{mynet3_forward.1} parent=11 // pred_check_branch
          %223 = sbr.rel (%p221) target = $region32
        $region31: #{mynet3_forward.1} parent=11 // pred_region
          _
        $region32: #{mynet3_forward.1} parent=11 // pred_fallthru
          _
        // Predicated region
        $region33: #{mynet3_forward.1} parent=11 // pred_check
          %p224 = pneg %p168
        $region34: #{mynet3_forward.1} parent=11 // pred_check_branch
          %226 = sbr.rel (%p224) target = $region36
        $region35: #{mynet3_forward.1} parent=11 // pred_region
          _
        $region36: #{mynet3_forward.1} parent=11 // pred_fallthru
          _
      $region12: #{mynet3_forward.1} parent=5 // pred_fallthru
        _
      %p227 = scmp.lt.s32.totalorder %s16, 2
      // Predicated region
      $region37: #{mynet3_forward.1} parent=5 // pred_check
        %p228 = pneg %p227
      $region38: #{mynet3_forward.1} parent=5 // pred_check_branch
        %230 = sbr.rel (%p228) target = $region40
      $region39: #{mynet3_forward.1} parent=5 // pred_region
        // Predicated region
        $region41: #{mynet3_forward.1} parent=39 // pred_check
          %p231 = pneg %p36
        $region42: #{mynet3_forward.1} parent=39 // pred_check_branch
          %233 = sbr.rel (%p231) target = $region44
        $region43: #{mynet3_forward.1} parent=39 // pred_region
          %s234 = smul.u32 64, %s16
          %p235 = scmp.lt.s32.totalorder %s234, 127
          %s236 = scalar_select %p235, %s234, 127
          %s237 = smul.addr %s236, 4
          %s238 = smul.addr %s237, 4
          %s239 = scalar_lea.vmem %s0, %s238
          %s240 = smul.u32 64, %s16
        $region44: #{mynet3_forward.1} parent=39 // pred_fallthru
          _
      $region40: #{mynet3_forward.1} parent=5 // pred_fallthru
        _
      %p241 = scmp.le.s32.totalorder 1, %s16
      %p242 = scmp.lt.s32.totalorder %s16, 3
      %p243 = pnand %p241, %p242
      %p244 = pneg %p243
      // Predicated region
      $region45: #{mynet3_forward.1} parent=5 // pred_check
        _
      $region46: #{mynet3_forward.1} parent=5 // pred_check_branch
        %246 = sbr.rel (%p243) target = $region48
      $region47: #{mynet3_forward.1} parent=5 // pred_region
        %s247 = ssub.s32 %s16, 1
        %s248 = smul.u32 64, %s21
        %p249 = scmp.lt.s32.totalorder %s248, 127
        %s250 = scalar_select %p249, %s248, 127
        %s251 = smul.addr %s250, 4
        %s252 = smul.addr %s251, 4
        %s253 = scalar_lea.vmem %s0, %s252
        %p254 = pneg %p42
        %p255 = pneg %p39
        %p256 = pneg %p63
        %p257 = pneg %p60
        %p258 = pneg %p84
        %p259 = pneg %p81
        %p260 = pneg %p105
        %p261 = pneg %p102
        %p262 = pneg %p126
        %p263 = pneg %p123
        %p264 = pneg %p147
        %p265 = pneg %p144
        %p266 = pneg %p168
        %p267 = pneg %p165
        %p268 = pneg %p194
        %p269 = pneg %p191
        %s270 = sand.u32 %s181, 1
        %s271 = scalar_lea.sflag [#allocation3], %s270
        %s272 = sand.u32 %s181, 1
        %s273 = scalar_lea.vmem [#allocation2], %s272
        %s274 = smul.u32 64, %s21
        %p275 = scmp.lt.s32.totalorder %s274, 127
        %s276 = scalar_select %p275, %s274, 127
        %s277 = smul.addr %s276, 4
        %s278 = smul.addr %s277, 4
        %s279 = scalar_lea.vmem %s0, %s278
        %s280 = smul.u32 64, %s21
        %v282 = vld [vmem:[%s279] sm:$0xff]
        %v283 = vld [vmem:[%s279 + $0x8] sm:$0xff]
        %v284 = vld [vmem:[%s279 + $0x10] sm:$0xff]
        %v285 = vld [vmem:[%s279 + $0x18] sm:$0xff]
        %v286 = vld [vmem:[%s279 + $0x20] sm:$0xff]
        %v287 = vld [vmem:[%s279 + $0x28] sm:$0xff]
        %v288 = vld [vmem:[%s279 + $0x30] sm:$0xff]
        %v289 = vld [vmem:[%s279 + $0x38] sm:$0xff]
        %v290 = vld [vmem:[%s279 + $0x40] sm:$0xff]
        %v291 = vld [vmem:[%s279 + $0x48] sm:$0xff]
        %v292 = vld [vmem:[%s279 + $0x50] sm:$0xff]
        %v293 = vld [vmem:[%s279 + $0x58] sm:$0xff]
        %v294 = vld [vmem:[%s279 + $0x60] sm:$0xff]
        %v295 = vld [vmem:[%s279 + $0x68] sm:$0xff]
        %v296 = vld [vmem:[%s279 + $0x70] sm:$0xff]
        %v297 = vld [vmem:[%s279 + $0x78] sm:$0xff]
        %v298 = vld [vmem:[%s279 + $0x80] sm:$0xff]
        %v299 = vld [vmem:[%s279 + $0x88] sm:$0xff]
        %v300 = vld [vmem:[%s279 + $0x90] sm:$0xff]
        %v301 = vld [vmem:[%s279 + $0x98] sm:$0xff]
        %v302 = vld [vmem:[%s279 + $0xa0] sm:$0xff]
        %v303 = vld [vmem:[%s279 + $0xa8] sm:$0xff]
        %v304 = vld [vmem:[%s279 + $0xb0] sm:$0xff]
        %v305 = vld [vmem:[%s279 + $0xb8] sm:$0xff]
        %v306 = vld [vmem:[%s279 + $0xc0] sm:$0xff]
        %v307 = vld [vmem:[%s279 + $0xc8] sm:$0xff]
        %v308 = vld [vmem:[%s279 + $0xd0] sm:$0xff]
        %v309 = vld [vmem:[%s279 + $0xd8] sm:$0xff]
        %v310 = vld [vmem:[%s279 + $0xe0] sm:$0xff]
        %v311 = vld [vmem:[%s279 + $0xe8] sm:$0xff]
        %v312 = vld [vmem:[%s279 + $0xf0] sm:$0xff]
        %v313 = vld [vmem:[%s279 + $0xf8] sm:$0xff]
        %v314 = vld [vmem:[%s279 + $0x100] sm:$0xff]
        %v315 = vld [vmem:[%s279 + $0x108] sm:$0xff]
        %v316 = vld [vmem:[%s279 + $0x110] sm:$0xff]
        %v317 = vld [vmem:[%s279 + $0x118] sm:$0xff]
        %v318 = vld [vmem:[%s279 + $0x120] sm:$0xff]
        %v319 = vld [vmem:[%s279 + $0x128] sm:$0xff]
        %v320 = vld [vmem:[%s279 + $0x130] sm:$0xff]
        %v321 = vld [vmem:[%s279 + $0x138] sm:$0xff]
        %v322 = vld [vmem:[%s279 + $0x140] sm:$0xff]
        %v323 = vld [vmem:[%s279 + $0x148] sm:$0xff]
        %v324 = vld [vmem:[%s279 + $0x150] sm:$0xff]
        %v325 = vld [vmem:[%s279 + $0x158] sm:$0xff]
        %v326 = vld [vmem:[%s279 + $0x160] sm:$0xff]
        %v327 = vld [vmem:[%s279 + $0x168] sm:$0xff]
        %v328 = vld [vmem:[%s279 + $0x170] sm:$0xff]
        %v329 = vld [vmem:[%s279 + $0x178] sm:$0xff]
        %v330 = vld [vmem:[%s279 + $0x180] sm:$0xff]
        %v331 = vld [vmem:[%s279 + $0x188] sm:$0xff]
        %v332 = vld [vmem:[%s279 + $0x190] sm:$0xff]
        %v333 = vld [vmem:[%s279 + $0x198] sm:$0xff]
        %v334 = vld [vmem:[%s279 + $0x1a0] sm:$0xff]
        %v335 = vld [vmem:[%s279 + $0x1a8] sm:$0xff]
        %v336 = vld [vmem:[%s279 + $0x1b0] sm:$0xff]
        %v337 = vld [vmem:[%s279 + $0x1b8] sm:$0xff]
        %v338 = vld [vmem:[%s279 + $0x1c0] sm:$0xff]
        %v339 = vld [vmem:[%s279 + $0x1c8] sm:$0xff]
        %v340 = vld [vmem:[%s279 + $0x1d0] sm:$0xff]
        %v341 = vld [vmem:[%s279 + $0x1d8] sm:$0xff]
        %v342 = vld [vmem:[%s279 + $0x1e0] sm:$0xff]
        %v343 = vld [vmem:[%s279 + $0x1e8] sm:$0xff]
        %v344 = vld [vmem:[%s279 + $0x1f0] sm:$0xff]
        %v345 = vld [vmem:[%s279 + $0x1f8] sm:$0xff]
        %v346 = vld [vmem:[%s279 + $0x200] sm:$0xff]
        %v347 = vld [vmem:[%s279 + $0x208] sm:$0xff]
        %v348 = vld [vmem:[%s279 + $0x210] sm:$0xff]
        %v349 = vld [vmem:[%s279 + $0x218] sm:$0xff]
        %v350 = vld [vmem:[%s279 + $0x220] sm:$0xff]
        %v351 = vld [vmem:[%s279 + $0x228] sm:$0xff]
        %v352 = vld [vmem:[%s279 + $0x230] sm:$0xff]
        %v353 = vld [vmem:[%s279 + $0x238] sm:$0xff]
        %v354 = vld [vmem:[%s279 + $0x240] sm:$0xff]
        %v355 = vld [vmem:[%s279 + $0x248] sm:$0xff]
        %v356 = vld [vmem:[%s279 + $0x250] sm:$0xff]
        %v357 = vld [vmem:[%s279 + $0x258] sm:$0xff]
        %v358 = vld [vmem:[%s279 + $0x260] sm:$0xff]
        %v359 = vld [vmem:[%s279 + $0x268] sm:$0xff]
        %v360 = vld [vmem:[%s279 + $0x270] sm:$0xff]
        %v361 = vld [vmem:[%s279 + $0x278] sm:$0xff]
        %v362 = vld [vmem:[%s279 + $0x280] sm:$0xff]
        %v363 = vld [vmem:[%s279 + $0x288] sm:$0xff]
        %v364 = vld [vmem:[%s279 + $0x290] sm:$0xff]
        %v365 = vld [vmem:[%s279 + $0x298] sm:$0xff]
        %v366 = vld [vmem:[%s279 + $0x2a0] sm:$0xff]
        %v367 = vld [vmem:[%s279 + $0x2a8] sm:$0xff]
        %v368 = vld [vmem:[%s279 + $0x2b0] sm:$0xff]
        %v369 = vld [vmem:[%s279 + $0x2b8] sm:$0xff]
        %v370 = vld [vmem:[%s279 + $0x2c0] sm:$0xff]
        %v371 = vld [vmem:[%s279 + $0x2c8] sm:$0xff]
        %v372 = vld [vmem:[%s279 + $0x2d0] sm:$0xff]
        %v373 = vld [vmem:[%s279 + $0x2d8] sm:$0xff]
        %v374 = vld [vmem:[%s279 + $0x2e0] sm:$0xff]
        %v375 = vld [vmem:[%s279 + $0x2e8] sm:$0xff]
        %v376 = vld [vmem:[%s279 + $0x2f0] sm:$0xff]
        %v377 = vld [vmem:[%s279 + $0x2f8] sm:$0xff]
        %v378 = vld [vmem:[%s279 + $0x300] sm:$0xff]
        %v379 = vld [vmem:[%s279 + $0x308] sm:$0xff]
        %v380 = vld [vmem:[%s279 + $0x310] sm:$0xff]
        %v381 = vld [vmem:[%s279 + $0x318] sm:$0xff]
        %v382 = vld [vmem:[%s279 + $0x320] sm:$0xff]
        %v383 = vld [vmem:[%s279 + $0x328] sm:$0xff]
        %v384 = vld [vmem:[%s279 + $0x330] sm:$0xff]
        %v385 = vld [vmem:[%s279 + $0x338] sm:$0xff]
        %v386 = vld [vmem:[%s279 + $0x340] sm:$0xff]
        %v387 = vld [vmem:[%s279 + $0x348] sm:$0xff]
        %v388 = vld [vmem:[%s279 + $0x350] sm:$0xff]
        %v389 = vld [vmem:[%s279 + $0x358] sm:$0xff]
        %v390 = vld [vmem:[%s279 + $0x360] sm:$0xff]
        %v391 = vld [vmem:[%s279 + $0x368] sm:$0xff]
        %v392 = vld [vmem:[%s279 + $0x370] sm:$0xff]
        %v393 = vld [vmem:[%s279 + $0x378] sm:$0xff]
        %v394 = vld [vmem:[%s279 + $0x380] sm:$0xff]
        %v395 = vld [vmem:[%s279 + $0x388] sm:$0xff]
        %v396 = vld [vmem:[%s279 + $0x390] sm:$0xff]
        %v397 = vld [vmem:[%s279 + $0x398] sm:$0xff]
        %v398 = vld [vmem:[%s279 + $0x3a0] sm:$0xff]
        %v399 = vld [vmem:[%s279 + $0x3a8] sm:$0xff]
        %v400 = vld [vmem:[%s279 + $0x3b0] sm:$0xff]
        %v401 = vld [vmem:[%s279 + $0x3b8] sm:$0xff]
        %v402 = vld [vmem:[%s279 + $0x3c0] sm:$0xff]
        %v403 = vld [vmem:[%s279 + $0x3c8] sm:$0xff]
        %v404 = vld [vmem:[%s279 + $0x3d0] sm:$0xff]
        %v405 = vld [vmem:[%s279 + $0x3d8] sm:$0xff]
        %v406 = vld [vmem:[%s279 + $0x3e0] sm:$0xff]
        %v407 = vld [vmem:[%s279 + $0x3e8] sm:$0xff]
        %v408 = vld [vmem:[%s279 + $0x3f0] sm:$0xff]
        %v409 = vld [vmem:[%s279 + $0x3f8] sm:$0xff]
        %v410 = vld [vmem:[%s1] sm:$0xff]
        %v411 = vld [vmem:[%s1 + $0x8] sm:$0xff]
        %v412 = vld [vmem:[%s1 + $0x10] sm:$0xff]
        %v413 = vld [vmem:[%s1 + $0x18] sm:$0xff]
        %v414 = vld [vmem:[%s1 + $0x20] sm:$0xff]
        %v415 = vld [vmem:[%s1 + $0x28] sm:$0xff]
        %v416 = vld [vmem:[%s1 + $0x30] sm:$0xff]
        %v417 = vld [vmem:[%s1 + $0x38] sm:$0xff]
        %v418 = vld [vmem:[%s1 + $0x40] sm:$0xff]
        %v419 = vld [vmem:[%s1 + $0x48] sm:$0xff]
        %v420 = vld [vmem:[%s1 + $0x50] sm:$0xff]
        %v421 = vld [vmem:[%s1 + $0x58] sm:$0xff]
        %v422 = vld [vmem:[%s1 + $0x60] sm:$0xff]
        %v423 = vld [vmem:[%s1 + $0x68] sm:$0xff]
        %v424 = vld [vmem:[%s1 + $0x70] sm:$0xff]
        %v425 = vld [vmem:[%s1 + $0x78] sm:$0xff]
        %v426 = vld [vmem:[%s1 + $0x80] sm:$0xff]
        %v427 = vld [vmem:[%s1 + $0x88] sm:$0xff]
        %v428 = vld [vmem:[%s1 + $0x90] sm:$0xff]
        %v429 = vld [vmem:[%s1 + $0x98] sm:$0xff]
        %v430 = vld [vmem:[%s1 + $0xa0] sm:$0xff]
        %v431 = vld [vmem:[%s1 + $0xa8] sm:$0xff]
        %v432 = vld [vmem:[%s1 + $0xb0] sm:$0xff]
        %v433 = vld [vmem:[%s1 + $0xb8] sm:$0xff]
        %v434 = vld [vmem:[%s1 + $0xc0] sm:$0xff]
        %v435 = vld [vmem:[%s1 + $0xc8] sm:$0xff]
        %v436 = vld [vmem:[%s1 + $0xd0] sm:$0xff]
        %v437 = vld [vmem:[%s1 + $0xd8] sm:$0xff]
        %v438 = vld [vmem:[%s1 + $0xe0] sm:$0xff]
        %v439 = vld [vmem:[%s1 + $0xe8] sm:$0xff]
        %v440 = vld [vmem:[%s1 + $0xf0] sm:$0xff]
        %v441 = vld [vmem:[%s1 + $0xf8] sm:$0xff]
        %v442 = vld [vmem:[%s1 + $0x100] sm:$0xff]
        %v443 = vld [vmem:[%s1 + $0x108] sm:$0xff]
        %v444 = vld [vmem:[%s1 + $0x110] sm:$0xff]
        %v445 = vld [vmem:[%s1 + $0x118] sm:$0xff]
        %v446 = vld [vmem:[%s1 + $0x120] sm:$0xff]
        %v447 = vld [vmem:[%s1 + $0x128] sm:$0xff]
        %v448 = vld [vmem:[%s1 + $0x130] sm:$0xff]
        %v449 = vld [vmem:[%s1 + $0x138] sm:$0xff]
        %v450 = vld [vmem:[%s1 + $0x140] sm:$0xff]
        %v451 = vld [vmem:[%s1 + $0x148] sm:$0xff]
        %v452 = vld [vmem:[%s1 + $0x150] sm:$0xff]
        %v453 = vld [vmem:[%s1 + $0x158] sm:$0xff]
        %v454 = vld [vmem:[%s1 + $0x160] sm:$0xff]
        %v455 = vld [vmem:[%s1 + $0x168] sm:$0xff]
        %v456 = vld [vmem:[%s1 + $0x170] sm:$0xff]
        %v457 = vld [vmem:[%s1 + $0x178] sm:$0xff]
        %v458 = vld [vmem:[%s1 + $0x180] sm:$0xff]
        %v459 = vld [vmem:[%s1 + $0x188] sm:$0xff]
        %v460 = vld [vmem:[%s1 + $0x190] sm:$0xff]
        %v461 = vld [vmem:[%s1 + $0x198] sm:$0xff]
        %v462 = vld [vmem:[%s1 + $0x1a0] sm:$0xff]
        %v463 = vld [vmem:[%s1 + $0x1a8] sm:$0xff]
        %v464 = vld [vmem:[%s1 + $0x1b0] sm:$0xff]
        %v465 = vld [vmem:[%s1 + $0x1b8] sm:$0xff]
        %v466 = vld [vmem:[%s1 + $0x1c0] sm:$0xff]
        %v467 = vld [vmem:[%s1 + $0x1c8] sm:$0xff]
        %v468 = vld [vmem:[%s1 + $0x1d0] sm:$0xff]
        %v469 = vld [vmem:[%s1 + $0x1d8] sm:$0xff]
        %v470 = vld [vmem:[%s1 + $0x1e0] sm:$0xff]
        %v471 = vld [vmem:[%s1 + $0x1e8] sm:$0xff]
        %v472 = vld [vmem:[%s1 + $0x1f0] sm:$0xff]
        %v473 = vld [vmem:[%s1 + $0x1f8] sm:$0xff]
        %v474 = vld [vmem:[%s2] sm:$0x3]
        %v476 = vlaneseq
        %v477 = vshrl.u32 %v476, 7
        %v478 = vsub.s32 0, %v477
        %v479 = vrot.slane %v474, %v478
        %v480 = vlaneseq
        %v481 = vshrl.u32 %v480, 7
        %v482 = vsub.s32 1, %v481
        %v483 = vrot.slane %v474, %v482
        %v614 = vunpack.c.l.b16 %v282
        %v615 = vunpack.c.h.b16 %v282
        %v616 = vunpack.c.l.b16 %v283
        %v617 = vunpack.c.h.b16 %v283
        %v618 = vunpack.c.l.b16 %v284
        %v619 = vunpack.c.h.b16 %v284
        %v620 = vunpack.c.l.b16 %v285
        %v621 = vunpack.c.h.b16 %v285
        %v622 = vunpack.c.l.b16 %v286
        %v623 = vunpack.c.h.b16 %v286
        %v624 = vunpack.c.l.b16 %v287
        %v625 = vunpack.c.h.b16 %v287
        %v626 = vunpack.c.l.b16 %v288
        %v627 = vunpack.c.h.b16 %v288
        %v628 = vunpack.c.l.b16 %v289
        %v629 = vunpack.c.h.b16 %v289
        %v630 = vunpack.c.l.b16 %v290
        %v631 = vunpack.c.h.b16 %v290
        %v632 = vunpack.c.l.b16 %v291
        %v633 = vunpack.c.h.b16 %v291
        %v634 = vunpack.c.l.b16 %v292
        %v635 = vunpack.c.h.b16 %v292
        %v636 = vunpack.c.l.b16 %v293
        %v637 = vunpack.c.h.b16 %v293
        %v638 = vunpack.c.l.b16 %v294
        %v639 = vunpack.c.h.b16 %v294
        %v640 = vunpack.c.l.b16 %v295
        %v641 = vunpack.c.h.b16 %v295
        %v642 = vunpack.c.l.b16 %v296
        %v643 = vunpack.c.h.b16 %v296
        %v644 = vunpack.c.l.b16 %v297
        %v645 = vunpack.c.h.b16 %v297
        %v646 = vunpack.c.l.b16 %v298
        %v647 = vunpack.c.h.b16 %v298
        %v648 = vunpack.c.l.b16 %v299
        %v649 = vunpack.c.h.b16 %v299
        %v650 = vunpack.c.l.b16 %v300
        %v651 = vunpack.c.h.b16 %v300
        %v652 = vunpack.c.l.b16 %v301
        %v653 = vunpack.c.h.b16 %v301
        %v654 = vunpack.c.l.b16 %v302
        %v655 = vunpack.c.h.b16 %v302
        %v656 = vunpack.c.l.b16 %v303
        %v657 = vunpack.c.h.b16 %v303
        %v658 = vunpack.c.l.b16 %v304
        %v659 = vunpack.c.h.b16 %v304
        %v660 = vunpack.c.l.b16 %v305
        %v661 = vunpack.c.h.b16 %v305
        %v662 = vunpack.c.l.b16 %v306
        %v663 = vunpack.c.h.b16 %v306
        %v664 = vunpack.c.l.b16 %v307
        %v665 = vunpack.c.h.b16 %v307
        %v666 = vunpack.c.l.b16 %v308
        %v667 = vunpack.c.h.b16 %v308
        %v668 = vunpack.c.l.b16 %v309
        %v669 = vunpack.c.h.b16 %v309
        %v670 = vunpack.c.l.b16 %v310
        %v671 = vunpack.c.h.b16 %v310
        %v672 = vunpack.c.l.b16 %v311
        %v673 = vunpack.c.h.b16 %v311
        %v674 = vunpack.c.l.b16 %v312
        %v675 = vunpack.c.h.b16 %v312
        %v676 = vunpack.c.l.b16 %v313
        %v677 = vunpack.c.h.b16 %v313
        %v678 = vunpack.c.l.b16 %v314
        %v679 = vunpack.c.h.b16 %v314
        %v680 = vunpack.c.l.b16 %v315
        %v681 = vunpack.c.h.b16 %v315
        %v682 = vunpack.c.l.b16 %v316
        %v683 = vunpack.c.h.b16 %v316
        %v684 = vunpack.c.l.b16 %v317
        %v685 = vunpack.c.h.b16 %v317
        %v686 = vunpack.c.l.b16 %v318
        %v687 = vunpack.c.h.b16 %v318
        %v688 = vunpack.c.l.b16 %v319
        %v689 = vunpack.c.h.b16 %v319
        %v690 = vunpack.c.l.b16 %v320
        %v691 = vunpack.c.h.b16 %v320
        %v692 = vunpack.c.l.b16 %v321
        %v693 = vunpack.c.h.b16 %v321
        %v694 = vunpack.c.l.b16 %v322
        %v695 = vunpack.c.h.b16 %v322
        %v696 = vunpack.c.l.b16 %v323
        %v697 = vunpack.c.h.b16 %v323
        %v698 = vunpack.c.l.b16 %v324
        %v699 = vunpack.c.h.b16 %v324
        %v700 = vunpack.c.l.b16 %v325
        %v701 = vunpack.c.h.b16 %v325
        %v702 = vunpack.c.l.b16 %v326
        %v703 = vunpack.c.h.b16 %v326
        %v704 = vunpack.c.l.b16 %v327
        %v705 = vunpack.c.h.b16 %v327
        %v706 = vunpack.c.l.b16 %v328
        %v707 = vunpack.c.h.b16 %v328
        %v708 = vunpack.c.l.b16 %v329
        %v709 = vunpack.c.h.b16 %v329
        %v710 = vunpack.c.l.b16 %v330
        %v711 = vunpack.c.h.b16 %v330
        %v712 = vunpack.c.l.b16 %v331
        %v713 = vunpack.c.h.b16 %v331
        %v714 = vunpack.c.l.b16 %v332
        %v715 = vunpack.c.h.b16 %v332
        %v716 = vunpack.c.l.b16 %v333
        %v717 = vunpack.c.h.b16 %v333
        %v718 = vunpack.c.l.b16 %v334
        %v719 = vunpack.c.h.b16 %v334
        %v720 = vunpack.c.l.b16 %v335
        %v721 = vunpack.c.h.b16 %v335
        %v722 = vunpack.c.l.b16 %v336
        %v723 = vunpack.c.h.b16 %v336
        %v724 = vunpack.c.l.b16 %v337
        %v725 = vunpack.c.h.b16 %v337
        %v726 = vunpack.c.l.b16 %v338
        %v727 = vunpack.c.h.b16 %v338
        %v728 = vunpack.c.l.b16 %v339
        %v729 = vunpack.c.h.b16 %v339
        %v730 = vunpack.c.l.b16 %v340
        %v731 = vunpack.c.h.b16 %v340
        %v732 = vunpack.c.l.b16 %v341
        %v733 = vunpack.c.h.b16 %v341
        %v734 = vunpack.c.l.b16 %v342
        %v735 = vunpack.c.h.b16 %v342
        %v736 = vunpack.c.l.b16 %v343
        %v737 = vunpack.c.h.b16 %v343
        %v738 = vunpack.c.l.b16 %v344
        %v739 = vunpack.c.h.b16 %v344
        %v740 = vunpack.c.l.b16 %v345
        %v741 = vunpack.c.h.b16 %v345
        %v742 = vunpack.c.l.b16 %v346
        %v743 = vunpack.c.h.b16 %v346
        %v744 = vunpack.c.l.b16 %v347
        %v745 = vunpack.c.h.b16 %v347
        %v746 = vunpack.c.l.b16 %v348
        %v747 = vunpack.c.h.b16 %v348
        %v748 = vunpack.c.l.b16 %v349
        %v749 = vunpack.c.h.b16 %v349
        %v750 = vunpack.c.l.b16 %v350
        %v751 = vunpack.c.h.b16 %v350
        %v752 = vunpack.c.l.b16 %v351
        %v753 = vunpack.c.h.b16 %v351
        %v754 = vunpack.c.l.b16 %v352
        %v755 = vunpack.c.h.b16 %v352
        %v756 = vunpack.c.l.b16 %v353
        %v757 = vunpack.c.h.b16 %v353
        %v758 = vunpack.c.l.b16 %v354
        %v759 = vunpack.c.h.b16 %v354
        %v760 = vunpack.c.l.b16 %v355
        %v761 = vunpack.c.h.b16 %v355
        %v762 = vunpack.c.l.b16 %v356
        %v763 = vunpack.c.h.b16 %v356
        %v764 = vunpack.c.l.b16 %v357
        %v765 = vunpack.c.h.b16 %v357
        %v766 = vunpack.c.l.b16 %v358
        %v767 = vunpack.c.h.b16 %v358
        %v768 = vunpack.c.l.b16 %v359
        %v769 = vunpack.c.h.b16 %v359
        %v770 = vunpack.c.l.b16 %v360
        %v771 = vunpack.c.h.b16 %v360
        %v772 = vunpack.c.l.b16 %v361
        %v773 = vunpack.c.h.b16 %v361
        %v774 = vunpack.c.l.b16 %v362
        %v775 = vunpack.c.h.b16 %v362
        %v776 = vunpack.c.l.b16 %v363
        %v777 = vunpack.c.h.b16 %v363
        %v778 = vunpack.c.l.b16 %v364
        %v779 = vunpack.c.h.b16 %v364
        %v780 = vunpack.c.l.b16 %v365
        %v781 = vunpack.c.h.b16 %v365
        %v782 = vunpack.c.l.b16 %v366
        %v783 = vunpack.c.h.b16 %v366
        %v784 = vunpack.c.l.b16 %v367
        %v785 = vunpack.c.h.b16 %v367
        %v786 = vunpack.c.l.b16 %v368
        %v787 = vunpack.c.h.b16 %v368
        %v788 = vunpack.c.l.b16 %v369
        %v789 = vunpack.c.h.b16 %v369
        %v790 = vunpack.c.l.b16 %v370
        %v791 = vunpack.c.h.b16 %v370
        %v792 = vunpack.c.l.b16 %v371
        %v793 = vunpack.c.h.b16 %v371
        %v794 = vunpack.c.l.b16 %v372
        %v795 = vunpack.c.h.b16 %v372
        %v796 = vunpack.c.l.b16 %v373
        %v797 = vunpack.c.h.b16 %v373
        %v798 = vunpack.c.l.b16 %v374
        %v799 = vunpack.c.h.b16 %v374
        %v800 = vunpack.c.l.b16 %v375
        %v801 = vunpack.c.h.b16 %v375
        %v802 = vunpack.c.l.b16 %v376
        %v803 = vunpack.c.h.b16 %v376
        %v804 = vunpack.c.l.b16 %v377
        %v805 = vunpack.c.h.b16 %v377
        %v806 = vunpack.c.l.b16 %v378
        %v807 = vunpack.c.h.b16 %v378
        %v808 = vunpack.c.l.b16 %v379
        %v809 = vunpack.c.h.b16 %v379
        %v810 = vunpack.c.l.b16 %v380
        %v811 = vunpack.c.h.b16 %v380
        %v812 = vunpack.c.l.b16 %v381
        %v813 = vunpack.c.h.b16 %v381
        %v814 = vunpack.c.l.b16 %v382
        %v815 = vunpack.c.h.b16 %v382
        %v816 = vunpack.c.l.b16 %v383
        %v817 = vunpack.c.h.b16 %v383
        %v818 = vunpack.c.l.b16 %v384
        %v819 = vunpack.c.h.b16 %v384
        %v820 = vunpack.c.l.b16 %v385
        %v821 = vunpack.c.h.b16 %v385
        %v822 = vunpack.c.l.b16 %v386
        %v823 = vunpack.c.h.b16 %v386
        %v824 = vunpack.c.l.b16 %v387
        %v825 = vunpack.c.h.b16 %v387
        %v826 = vunpack.c.l.b16 %v388
        %v827 = vunpack.c.h.b16 %v388
        %v828 = vunpack.c.l.b16 %v389
        %v829 = vunpack.c.h.b16 %v389
        %v830 = vunpack.c.l.b16 %v390
        %v831 = vunpack.c.h.b16 %v390
        %v832 = vunpack.c.l.b16 %v391
        %v833 = vunpack.c.h.b16 %v391
        %v834 = vunpack.c.l.b16 %v392
        %v835 = vunpack.c.h.b16 %v392
        %v836 = vunpack.c.l.b16 %v393
        %v837 = vunpack.c.h.b16 %v393
        %v838 = vunpack.c.l.b16 %v394
        %v839 = vunpack.c.h.b16 %v394
        %v840 = vunpack.c.l.b16 %v395
        %v841 = vunpack.c.h.b16 %v395
        %v842 = vunpack.c.l.b16 %v396
        %v843 = vunpack.c.h.b16 %v396
        %v844 = vunpack.c.l.b16 %v397
        %v845 = vunpack.c.h.b16 %v397
        %v846 = vunpack.c.l.b16 %v398
        %v847 = vunpack.c.h.b16 %v398
        %v848 = vunpack.c.l.b16 %v399
        %v849 = vunpack.c.h.b16 %v399
        %v850 = vunpack.c.l.b16 %v400
        %v851 = vunpack.c.h.b16 %v400
        %v852 = vunpack.c.l.b16 %v401
        %v853 = vunpack.c.h.b16 %v401
        %v854 = vunpack.c.l.b16 %v402
        %v855 = vunpack.c.h.b16 %v402
        %v856 = vunpack.c.l.b16 %v403
        %v857 = vunpack.c.h.b16 %v403
        %v858 = vunpack.c.l.b16 %v404
        %v859 = vunpack.c.h.b16 %v404
        %v860 = vunpack.c.l.b16 %v405
        %v861 = vunpack.c.h.b16 %v405
        %v862 = vunpack.c.l.b16 %v406
        %v863 = vunpack.c.h.b16 %v406
        %v864 = vunpack.c.l.b16 %v407
        %v865 = vunpack.c.h.b16 %v407
        %v866 = vunpack.c.l.b16 %v408
        %v867 = vunpack.c.h.b16 %v408
        %v868 = vunpack.c.l.b16 %v409
        %v869 = vunpack.c.h.b16 %v409
        %v870 = vpack.c.b16 %v618, %v614
        %v871 = vpack.c.b16 %v619, %v615
        %v872 = vpack.c.b16 %v620, %v616
        %v873 = vpack.c.b16 %v621, %v617
        %v874 = vpack.c.b16 %v626, %v622
        %v875 = vpack.c.b16 %v627, %v623
        %v876 = vpack.c.b16 %v628, %v624
        %v877 = vpack.c.b16 %v629, %v625
        %v878 = vpack.c.b16 %v634, %v630
        %v879 = vpack.c.b16 %v635, %v631
        %v880 = vpack.c.b16 %v636, %v632
        %v881 = vpack.c.b16 %v637, %v633
        %v882 = vpack.c.b16 %v642, %v638
        %v883 = vpack.c.b16 %v643, %v639
        %v884 = vpack.c.b16 %v644, %v640
        %v885 = vpack.c.b16 %v645, %v641
        %v886 = vpack.c.b16 %v650, %v646
        %v887 = vpack.c.b16 %v651, %v647
        %v888 = vpack.c.b16 %v652, %v648
        %v889 = vpack.c.b16 %v653, %v649
        %v890 = vpack.c.b16 %v658, %v654
        %v891 = vpack.c.b16 %v659, %v655
        %v892 = vpack.c.b16 %v660, %v656
        %v893 = vpack.c.b16 %v661, %v657
        %v894 = vpack.c.b16 %v666, %v662
        %v895 = vpack.c.b16 %v667, %v663
        %v896 = vpack.c.b16 %v668, %v664
        %v897 = vpack.c.b16 %v669, %v665
        %v898 = vpack.c.b16 %v674, %v670
        %v899 = vpack.c.b16 %v675, %v671
        %v900 = vpack.c.b16 %v676, %v672
        %v901 = vpack.c.b16 %v677, %v673
        %v902 = vpack.c.b16 %v682, %v678
        %v903 = vpack.c.b16 %v683, %v679
        %v904 = vpack.c.b16 %v684, %v680
        %v905 = vpack.c.b16 %v685, %v681
        %v906 = vpack.c.b16 %v690, %v686
        %v907 = vpack.c.b16 %v691, %v687
        %v908 = vpack.c.b16 %v692, %v688
        %v909 = vpack.c.b16 %v693, %v689
        %v910 = vpack.c.b16 %v698, %v694
        %v911 = vpack.c.b16 %v699, %v695
        %v912 = vpack.c.b16 %v700, %v696
        %v913 = vpack.c.b16 %v701, %v697
        %v914 = vpack.c.b16 %v706, %v702
        %v915 = vpack.c.b16 %v707, %v703
        %v916 = vpack.c.b16 %v708, %v704
        %v917 = vpack.c.b16 %v709, %v705
        %v918 = vpack.c.b16 %v714, %v710
        %v919 = vpack.c.b16 %v715, %v711
        %v920 = vpack.c.b16 %v716, %v712
        %v921 = vpack.c.b16 %v717, %v713
        %v922 = vpack.c.b16 %v722, %v718
        %v923 = vpack.c.b16 %v723, %v719
        %v924 = vpack.c.b16 %v724, %v720
        %v925 = vpack.c.b16 %v725, %v721
        %v926 = vpack.c.b16 %v730, %v726
        %v927 = vpack.c.b16 %v731, %v727
        %v928 = vpack.c.b16 %v732, %v728
        %v929 = vpack.c.b16 %v733, %v729
        %v930 = vpack.c.b16 %v738, %v734
        %v931 = vpack.c.b16 %v739, %v735
        %v932 = vpack.c.b16 %v740, %v736
        %v933 = vpack.c.b16 %v741, %v737
        %v934 = vpack.c.b16 %v746, %v742
        %v935 = vpack.c.b16 %v747, %v743
        %v936 = vpack.c.b16 %v748, %v744
        %v937 = vpack.c.b16 %v749, %v745
        %v938 = vpack.c.b16 %v754, %v750
        %v939 = vpack.c.b16 %v755, %v751
        %v940 = vpack.c.b16 %v756, %v752
        %v941 = vpack.c.b16 %v757, %v753
        %v942 = vpack.c.b16 %v762, %v758
        %v943 = vpack.c.b16 %v763, %v759
        %v944 = vpack.c.b16 %v764, %v760
        %v945 = vpack.c.b16 %v765, %v761
        %v946 = vpack.c.b16 %v770, %v766
        %v947 = vpack.c.b16 %v771, %v767
        %v948 = vpack.c.b16 %v772, %v768
        %v949 = vpack.c.b16 %v773, %v769
        %v950 = vpack.c.b16 %v778, %v774
        %v951 = vpack.c.b16 %v779, %v775
        %v952 = vpack.c.b16 %v780, %v776
        %v953 = vpack.c.b16 %v781, %v777
        %v954 = vpack.c.b16 %v786, %v782
        %v955 = vpack.c.b16 %v787, %v783
        %v956 = vpack.c.b16 %v788, %v784
        %v957 = vpack.c.b16 %v789, %v785
        %v958 = vpack.c.b16 %v794, %v790
        %v959 = vpack.c.b16 %v795, %v791
        %v960 = vpack.c.b16 %v796, %v792
        %v961 = vpack.c.b16 %v797, %v793
        %v962 = vpack.c.b16 %v802, %v798
        %v963 = vpack.c.b16 %v803, %v799
        %v964 = vpack.c.b16 %v804, %v800
        %v965 = vpack.c.b16 %v805, %v801
        %v966 = vpack.c.b16 %v810, %v806
        %v967 = vpack.c.b16 %v811, %v807
        %v968 = vpack.c.b16 %v812, %v808
        %v969 = vpack.c.b16 %v813, %v809
        %v970 = vpack.c.b16 %v818, %v814
        %v971 = vpack.c.b16 %v819, %v815
        %v972 = vpack.c.b16 %v820, %v816
        %v973 = vpack.c.b16 %v821, %v817
        %v974 = vpack.c.b16 %v826, %v822
        %v975 = vpack.c.b16 %v827, %v823
        %v976 = vpack.c.b16 %v828, %v824
        %v977 = vpack.c.b16 %v829, %v825
        %v978 = vpack.c.b16 %v834, %v830
        %v979 = vpack.c.b16 %v835, %v831
        %v980 = vpack.c.b16 %v836, %v832
        %v981 = vpack.c.b16 %v837, %v833
        %v982 = vpack.c.b16 %v842, %v838
        %v983 = vpack.c.b16 %v843, %v839
        %v984 = vpack.c.b16 %v844, %v840
        %v985 = vpack.c.b16 %v845, %v841
        %v986 = vpack.c.b16 %v850, %v846
        %v987 = vpack.c.b16 %v851, %v847
        %v988 = vpack.c.b16 %v852, %v848
        %v989 = vpack.c.b16 %v853, %v849
        %v990 = vpack.c.b16 %v858, %v854
        %v991 = vpack.c.b16 %v859, %v855
        %v992 = vpack.c.b16 %v860, %v856
        %v993 = vpack.c.b16 %v861, %v857
        %v994 = vpack.c.b16 %v866, %v862
        %v995 = vpack.c.b16 %v867, %v863
        %v996 = vpack.c.b16 %v868, %v864
        %v997 = vpack.c.b16 %v869, %v865
        %v1190 = vunpack.c.l.b16 %v410
        %v1191 = vunpack.c.h.b16 %v410
        %v1192 = vunpack.c.l.b16 %v411
        %v1193 = vunpack.c.h.b16 %v411
        %v1194 = vunpack.c.l.b16 %v412
        %v1195 = vunpack.c.h.b16 %v412
        %v1196 = vunpack.c.l.b16 %v413
        %v1197 = vunpack.c.h.b16 %v413
        %v1198 = vunpack.c.l.b16 %v414
        %v1199 = vunpack.c.h.b16 %v414
        %v1200 = vunpack.c.l.b16 %v415
        %v1201 = vunpack.c.h.b16 %v415
        %v1202 = vunpack.c.l.b16 %v416
        %v1203 = vunpack.c.h.b16 %v416
        %v1204 = vunpack.c.l.b16 %v417
        %v1205 = vunpack.c.h.b16 %v417
        %v1206 = vunpack.c.l.b16 %v418
        %v1207 = vunpack.c.h.b16 %v418
        %v1208 = vunpack.c.l.b16 %v419
        %v1209 = vunpack.c.h.b16 %v419
        %v1210 = vunpack.c.l.b16 %v420
        %v1211 = vunpack.c.h.b16 %v420
        %v1212 = vunpack.c.l.b16 %v421
        %v1213 = vunpack.c.h.b16 %v421
        %v1214 = vunpack.c.l.b16 %v422
        %v1215 = vunpack.c.h.b16 %v422
        %v1216 = vunpack.c.l.b16 %v423
        %v1217 = vunpack.c.h.b16 %v423
        %v1218 = vunpack.c.l.b16 %v424
        %v1219 = vunpack.c.h.b16 %v424
        %v1220 = vunpack.c.l.b16 %v425
        %v1221 = vunpack.c.h.b16 %v425
        %v1222 = vunpack.c.l.b16 %v426
        %v1223 = vunpack.c.h.b16 %v426
        %v1224 = vunpack.c.l.b16 %v427
        %v1225 = vunpack.c.h.b16 %v427
        %v1226 = vunpack.c.l.b16 %v428
        %v1227 = vunpack.c.h.b16 %v428
        %v1228 = vunpack.c.l.b16 %v429
        %v1229 = vunpack.c.h.b16 %v429
        %v1230 = vunpack.c.l.b16 %v430
        %v1231 = vunpack.c.h.b16 %v430
        %v1232 = vunpack.c.l.b16 %v431
        %v1233 = vunpack.c.h.b16 %v431
        %v1234 = vunpack.c.l.b16 %v432
        %v1235 = vunpack.c.h.b16 %v432
        %v1236 = vunpack.c.l.b16 %v433
        %v1237 = vunpack.c.h.b16 %v433
        %v1238 = vunpack.c.l.b16 %v434
        %v1239 = vunpack.c.h.b16 %v434
        %v1240 = vunpack.c.l.b16 %v435
        %v1241 = vunpack.c.h.b16 %v435
        %v1242 = vunpack.c.l.b16 %v436
        %v1243 = vunpack.c.h.b16 %v436
        %v1244 = vunpack.c.l.b16 %v437
        %v1245 = vunpack.c.h.b16 %v437
        %v1246 = vunpack.c.l.b16 %v438
        %v1247 = vunpack.c.h.b16 %v438
        %v1248 = vunpack.c.l.b16 %v439
        %v1249 = vunpack.c.h.b16 %v439
        %v1250 = vunpack.c.l.b16 %v440
        %v1251 = vunpack.c.h.b16 %v440
        %v1252 = vunpack.c.l.b16 %v441
        %v1253 = vunpack.c.h.b16 %v441
        %v1254 = vunpack.c.l.b16 %v442
        %v1255 = vunpack.c.h.b16 %v442
        %v1256 = vunpack.c.l.b16 %v443
        %v1257 = vunpack.c.h.b16 %v443
        %v1258 = vunpack.c.l.b16 %v444
        %v1259 = vunpack.c.h.b16 %v444
        %v1260 = vunpack.c.l.b16 %v445
        %v1261 = vunpack.c.h.b16 %v445
        %v1262 = vunpack.c.l.b16 %v446
        %v1263 = vunpack.c.h.b16 %v446
        %v1264 = vunpack.c.l.b16 %v447
        %v1265 = vunpack.c.h.b16 %v447
        %v1266 = vunpack.c.l.b16 %v448
        %v1267 = vunpack.c.h.b16 %v448
        %v1268 = vunpack.c.l.b16 %v449
        %v1269 = vunpack.c.h.b16 %v449
        %v1270 = vunpack.c.l.b16 %v450
        %v1271 = vunpack.c.h.b16 %v450
        %v1272 = vunpack.c.l.b16 %v451
        %v1273 = vunpack.c.h.b16 %v451
        %v1274 = vunpack.c.l.b16 %v452
        %v1275 = vunpack.c.h.b16 %v452
        %v1276 = vunpack.c.l.b16 %v453
        %v1277 = vunpack.c.h.b16 %v453
        %v1278 = vunpack.c.l.b16 %v454
        %v1279 = vunpack.c.h.b16 %v454
        %v1280 = vunpack.c.l.b16 %v455
        %v1281 = vunpack.c.h.b16 %v455
        %v1282 = vunpack.c.l.b16 %v456
        %v1283 = vunpack.c.h.b16 %v456
        %v1284 = vunpack.c.l.b16 %v457
        %v1285 = vunpack.c.h.b16 %v457
        %v1286 = vunpack.c.l.b16 %v458
        %v1287 = vunpack.c.h.b16 %v458
        %v1288 = vunpack.c.l.b16 %v459
        %v1289 = vunpack.c.h.b16 %v459
        %v1290 = vunpack.c.l.b16 %v460
        %v1291 = vunpack.c.h.b16 %v460
        %v1292 = vunpack.c.l.b16 %v461
        %v1293 = vunpack.c.h.b16 %v461
        %v1294 = vunpack.c.l.b16 %v462
        %v1295 = vunpack.c.h.b16 %v462
        %v1296 = vunpack.c.l.b16 %v463
        %v1297 = vunpack.c.h.b16 %v463
        %v1298 = vunpack.c.l.b16 %v464
        %v1299 = vunpack.c.h.b16 %v464
        %v1300 = vunpack.c.l.b16 %v465
        %v1301 = vunpack.c.h.b16 %v465
        %v1302 = vunpack.c.l.b16 %v466
        %v1303 = vunpack.c.h.b16 %v466
        %v1304 = vunpack.c.l.b16 %v467
        %v1305 = vunpack.c.h.b16 %v467
        %v1306 = vunpack.c.l.b16 %v468
        %v1307 = vunpack.c.h.b16 %v468
        %v1308 = vunpack.c.l.b16 %v469
        %v1309 = vunpack.c.h.b16 %v469
        %v1310 = vunpack.c.l.b16 %v470
        %v1311 = vunpack.c.h.b16 %v470
        %v1312 = vunpack.c.l.b16 %v471
        %v1313 = vunpack.c.h.b16 %v471
        %v1314 = vunpack.c.l.b16 %v472
        %v1315 = vunpack.c.h.b16 %v472
        %v1316 = vunpack.c.l.b16 %v473
        %v1317 = vunpack.c.h.b16 %v473
        %v1318 = vpack.c.b16 %v1192, %v1190
        %v1319 = vpack.c.b16 %v1193, %v1191
        %v1320 = vpack.c.b16 %v1196, %v1194
        %v1321 = vpack.c.b16 %v1197, %v1195
        %v1322 = vpack.c.b16 %v1200, %v1198
        %v1323 = vpack.c.b16 %v1201, %v1199
        %v1324 = vpack.c.b16 %v1204, %v1202
        %v1325 = vpack.c.b16 %v1205, %v1203
        %v1326 = vpack.c.b16 %v1208, %v1206
        %v1327 = vpack.c.b16 %v1209, %v1207
        %v1328 = vpack.c.b16 %v1212, %v1210
        %v1329 = vpack.c.b16 %v1213, %v1211
        %v1330 = vpack.c.b16 %v1216, %v1214
        %v1331 = vpack.c.b16 %v1217, %v1215
        %v1332 = vpack.c.b16 %v1220, %v1218
        %v1333 = vpack.c.b16 %v1221, %v1219
        %v1334 = vpack.c.b16 %v1224, %v1222
        %v1335 = vpack.c.b16 %v1225, %v1223
        %v1336 = vpack.c.b16 %v1228, %v1226
        %v1337 = vpack.c.b16 %v1229, %v1227
        %v1338 = vpack.c.b16 %v1232, %v1230
        %v1339 = vpack.c.b16 %v1233, %v1231
        %v1340 = vpack.c.b16 %v1236, %v1234
        %v1341 = vpack.c.b16 %v1237, %v1235
        %v1342 = vpack.c.b16 %v1240, %v1238
        %v1343 = vpack.c.b16 %v1241, %v1239
        %v1344 = vpack.c.b16 %v1244, %v1242
        %v1345 = vpack.c.b16 %v1245, %v1243
        %v1346 = vpack.c.b16 %v1248, %v1246
        %v1347 = vpack.c.b16 %v1249, %v1247
        %v1348 = vpack.c.b16 %v1252, %v1250
        %v1349 = vpack.c.b16 %v1253, %v1251
        %v1350 = vpack.c.b16 %v1256, %v1254
        %v1351 = vpack.c.b16 %v1257, %v1255
        %v1352 = vpack.c.b16 %v1260, %v1258
        %v1353 = vpack.c.b16 %v1261, %v1259
        %v1354 = vpack.c.b16 %v1264, %v1262
        %v1355 = vpack.c.b16 %v1265, %v1263
        %v1356 = vpack.c.b16 %v1268, %v1266
        %v1357 = vpack.c.b16 %v1269, %v1267
        %v1358 = vpack.c.b16 %v1272, %v1270
        %v1359 = vpack.c.b16 %v1273, %v1271
        %v1360 = vpack.c.b16 %v1276, %v1274
        %v1361 = vpack.c.b16 %v1277, %v1275
        %v1362 = vpack.c.b16 %v1280, %v1278
        %v1363 = vpack.c.b16 %v1281, %v1279
        %v1364 = vpack.c.b16 %v1284, %v1282
        %v1365 = vpack.c.b16 %v1285, %v1283
        %v1366 = vpack.c.b16 %v1288, %v1286
        %v1367 = vpack.c.b16 %v1289, %v1287
        %v1368 = vpack.c.b16 %v1292, %v1290
        %v1369 = vpack.c.b16 %v1293, %v1291
        %v1370 = vpack.c.b16 %v1296, %v1294
        %v1371 = vpack.c.b16 %v1297, %v1295
        %v1372 = vpack.c.b16 %v1300, %v1298
        %v1373 = vpack.c.b16 %v1301, %v1299
        %v1374 = vpack.c.b16 %v1304, %v1302
        %v1375 = vpack.c.b16 %v1305, %v1303
        %v1376 = vpack.c.b16 %v1308, %v1306
        %v1377 = vpack.c.b16 %v1309, %v1307
        %v1378 = vpack.c.b16 %v1312, %v1310
        %v1379 = vpack.c.b16 %v1313, %v1311
        %v1380 = vpack.c.b16 %v1316, %v1314
        %v1381 = vpack.c.b16 %v1317, %v1315
        %1446 = vmatprep.subr.bf16.mxu0 %v1319
        %1447 = vmatpush1.bf16.msra.mxu0 %v1318
        %1448 = vmatprep.subr.bf16.mxu0 %v1321
        %1449 = vmatpush1.bf16.msra.mxu0 %v1320
        %1450 = vmatprep.subr.bf16.mxu0 %v1323
        %1451 = vmatpush1.bf16.msra.mxu0 %v1322
        %1452 = vmatprep.subr.bf16.mxu0 %v1325
        %1453 = vmatpush1.bf16.msra.mxu0 %v1324
        %1454 = vmatprep.subr.bf16.mxu0 %v1327
        %1455 = vmatpush1.bf16.msra.mxu0 %v1326
        %1456 = vmatprep.subr.bf16.mxu0 %v1329
        %1457 = vmatpush1.bf16.msra.mxu0 %v1328
        %1458 = vmatprep.subr.bf16.mxu0 %v1331
        %1459 = vmatpush1.bf16.msra.mxu0 %v1330
        %1460 = vmatprep.subr.bf16.mxu0 %v1333
        %1461 = vmatpush1.bf16.msra.mxu0 %v1332
        %1462 = vmatprep.subr.bf16.mxu0 %v1335
        %1463 = vmatpush1.bf16.msra.mxu0 %v1334
        %1464 = vmatprep.subr.bf16.mxu0 %v1337
        %1465 = vmatpush1.bf16.msra.mxu0 %v1336
        %1466 = vmatprep.subr.bf16.mxu0 %v1339
        %1467 = vmatpush1.bf16.msra.mxu0 %v1338
        %1468 = vmatprep.subr.bf16.mxu0 %v1341
        %1469 = vmatpush1.bf16.msra.mxu0 %v1340
        %1470 = vmatprep.subr.bf16.mxu0 %v1343
        %1471 = vmatpush1.bf16.msra.mxu0 %v1342
        %1472 = vmatprep.subr.bf16.mxu0 %v1345
        %1473 = vmatpush1.bf16.msra.mxu0 %v1344
        %1474 = vmatprep.subr.bf16.mxu0 %v1347
        %1475 = vmatpush1.bf16.msra.mxu0 %v1346
        %1476 = vmatprep.subr.bf16.mxu0 %v1349
        %1477 = vmatpush1.bf16.msra.mxu0 %v1348
        %1478 = vmatprep.mubr.bf16.mxu0 %v871
        %1479 = vmatmul.mubr.bf16.gmra.mrb[0].mxu0 %v870
        %v1480 = vpop.f32.mrb[0].mxu0
        %v1481 = vadd.f32 %v479, %v1480
        %v1482 = vpop.f32.mrb[0].mxu0
        %v1483 = vadd.f32 %v483, %v1482
        %v1484 = vpop.f32.mrb[0].mxu0
        %v1485 = vadd.f32 %v479, %v1484
        %v1486 = vpop.f32.mrb[0].mxu0
        %v1487 = vadd.f32 %v483, %v1486
        %1488 = vmatprep.mubr.bf16.mxu0 %v875
        %1489 = vmatmul.mubr.bf16.gmra.mrb[0].mxu0 %v874
        %v1490 = vpop.f32.mrb[0].mxu0
        %v1491 = vadd.f32 %v479, %v1490
        %v1492 = vpop.f32.mrb[0].mxu0
        %v1493 = vadd.f32 %v483, %v1492
        %v1494 = vpop.f32.mrb[0].mxu0
        %v1495 = vadd.f32 %v479, %v1494
        %v1496 = vpop.f32.mrb[0].mxu0
        %v1497 = vadd.f32 %v483, %v1496
        %1498 = vmatprep.mubr.bf16.mxu0 %v879
        %1499 = vmatmul.mubr.bf16.gmra.mrb[0].mxu0 %v878
        %v1500 = vpop.f32.mrb[0].mxu0
        %v1501 = vadd.f32 %v479, %v1500
        %v1502 = vpop.f32.mrb[0].mxu0
        %v1503 = vadd.f32 %v483, %v1502
        %v1504 = vpop.f32.mrb[0].mxu0
        %v1505 = vadd.f32 %v479, %v1504
        %v1506 = vpop.f32.mrb[0].mxu0
        %v1507 = vadd.f32 %v483, %v1506
        %1508 = vmatprep.mubr.bf16.mxu0 %v883
        %1509 = vmatmul.mubr.bf16.gmra.mrb[0].mxu0 %v882
        %v1510 = vpop.f32.mrb[0].mxu0
        %v1511 = vadd.f32 %v479, %v1510
        %v1512 = vpop.f32.mrb[0].mxu0
        %v1513 = vadd.f32 %v483, %v1512
        %v1514 = vpop.f32.mrb[0].mxu0
        %v1515 = vadd.f32 %v479, %v1514
        %v1516 = vpop.f32.mrb[0].mxu0
        %v1517 = vadd.f32 %v483, %v1516
        %1518 = vmatprep.mubr.bf16.mxu0 %v887
        %1519 = vmatmul.mubr.bf16.gmra.mrb[0].mxu0 %v886
        %v1520 = vpop.f32.mrb[0].mxu0
        %v1521 = vadd.f32 %v479, %v1520
        %v1522 = vpop.f32.mrb[0].mxu0
        %v1523 = vadd.f32 %v483, %v1522
        %v1524 = vpop.f32.mrb[0].mxu0
        %v1525 = vadd.f32 %v479, %v1524
        %v1526 = vpop.f32.mrb[0].mxu0
        %v1527 = vadd.f32 %v483, %v1526
        %1528 = vmatprep.mubr.bf16.mxu0 %v891
        %1529 = vmatmul.mubr.bf16.gmra.mrb[0].mxu0 %v890
        %v1530 = vpop.f32.mrb[0].mxu0
        %v1531 = vadd.f32 %v479, %v1530
        %v1532 = vpop.f32.mrb[0].mxu0
        %v1533 = vadd.f32 %v483, %v1532
        %v1534 = vpop.f32.mrb[0].mxu0
        %v1535 = vadd.f32 %v479, %v1534
        %v1536 = vpop.f32.mrb[0].mxu0
        %v1537 = vadd.f32 %v483, %v1536
        %1538 = vmatprep.mubr.bf16.mxu0 %v895
        %1539 = vmatmul.mubr.bf16.gmra.mrb[0].mxu0 %v894
        %v1540 = vpop.f32.mrb[0].mxu0
        %v1541 = vadd.f32 %v479, %v1540
        %v1542 = vpop.f32.mrb[0].mxu0
        %v1543 = vadd.f32 %v483, %v1542
        %v1544 = vpop.f32.mrb[0].mxu0
        %v1545 = vadd.f32 %v479, %v1544
        %v1546 = vpop.f32.mrb[0].mxu0
        %v1547 = vadd.f32 %v483, %v1546
        %1548 = vmatprep.mubr.bf16.mxu0 %v899
        %1549 = vmatmul.mubr.bf16.gmra.mrb[0].mxu0 %v898
        %v1550 = vpop.f32.mrb[0].mxu0
        %v1551 = vadd.f32 %v479, %v1550
        %v1552 = vpop.f32.mrb[0].mxu0
        %v1553 = vadd.f32 %v483, %v1552
        %v1554 = vpop.f32.mrb[0].mxu0
        %v1555 = vadd.f32 %v479, %v1554
        %v1556 = vpop.f32.mrb[0].mxu0
        %v1557 = vadd.f32 %v483, %v1556
        %1558 = vmatprep.mubr.bf16.mxu0 %v903
        %1559 = vmatmul.mubr.bf16.gmra.mrb[0].mxu0 %v902
        %v1560 = vpop.f32.mrb[0].mxu0
        %v1561 = vadd.f32 %v479, %v1560
        %v1562 = vpop.f32.mrb[0].mxu0
        %v1563 = vadd.f32 %v483, %v1562
        %v1564 = vpop.f32.mrb[0].mxu0
        %v1565 = vadd.f32 %v479, %v1564
        %v1566 = vpop.f32.mrb[0].mxu0
        %v1567 = vadd.f32 %v483, %v1566
        %1568 = vmatprep.mubr.bf16.mxu0 %v907
        %1569 = vmatmul.mubr.bf16.gmra.mrb[0].mxu0 %v906
        %v1570 = vpop.f32.mrb[0].mxu0
        %v1571 = vadd.f32 %v479, %v1570
        %v1572 = vpop.f32.mrb[0].mxu0
        %v1573 = vadd.f32 %v483, %v1572
        %v1574 = vpop.f32.mrb[0].mxu0
        %v1575 = vadd.f32 %v479, %v1574
        %v1576 = vpop.f32.mrb[0].mxu0
        %v1577 = vadd.f32 %v483, %v1576
        %1578 = vmatprep.mubr.bf16.mxu0 %v911
        %1579 = vmatmul.mubr.bf16.gmra.mrb[0].mxu0 %v910
        %v1580 = vpop.f32.mrb[0].mxu0
        %v1581 = vadd.f32 %v479, %v1580
        %v1582 = vpop.f32.mrb[0].mxu0
        %v1583 = vadd.f32 %v483, %v1582
        %v1584 = vpop.f32.mrb[0].mxu0
        %v1585 = vadd.f32 %v479, %v1584
        %v1586 = vpop.f32.mrb[0].mxu0
        %v1587 = vadd.f32 %v483, %v1586
        %1588 = vmatprep.mubr.bf16.mxu0 %v915
        %1589 = vmatmul.mubr.bf16.gmra.mrb[0].mxu0 %v914
        %v1590 = vpop.f32.mrb[0].mxu0
        %v1591 = vadd.f32 %v479, %v1590
        %v1592 = vpop.f32.mrb[0].mxu0
        %v1593 = vadd.f32 %v483, %v1592
        %v1594 = vpop.f32.mrb[0].mxu0
        %v1595 = vadd.f32 %v479, %v1594
        %v1596 = vpop.f32.mrb[0].mxu0
        %v1597 = vadd.f32 %v483, %v1596
        %1598 = vmatprep.mubr.bf16.mxu0 %v919
        %1599 = vmatmul.mubr.bf16.gmra.mrb[0].mxu0 %v918
        %v1600 = vpop.f32.mrb[0].mxu0
        %v1601 = vadd.f32 %v479, %v1600
        %v1602 = vpop.f32.mrb[0].mxu0
        %v1603 = vadd.f32 %v483, %v1602
        %v1604 = vpop.f32.mrb[0].mxu0
        %v1605 = vadd.f32 %v479, %v1604
        %v1606 = vpop.f32.mrb[0].mxu0
        %v1607 = vadd.f32 %v483, %v1606
        %1608 = vmatprep.mubr.bf16.mxu0 %v923
        %1609 = vmatmul.mubr.bf16.gmra.mrb[0].mxu0 %v922
        %v1610 = vpop.f32.mrb[0].mxu0
        %v1611 = vadd.f32 %v479, %v1610
        %v1612 = vpop.f32.mrb[0].mxu0
        %v1613 = vadd.f32 %v483, %v1612
        %v1614 = vpop.f32.mrb[0].mxu0
        %v1615 = vadd.f32 %v479, %v1614
        %v1616 = vpop.f32.mrb[0].mxu0
        %v1617 = vadd.f32 %v483, %v1616
        %1618 = vmatprep.mubr.bf16.mxu0 %v927
        %1619 = vmatmul.mubr.bf16.gmra.mrb[0].mxu0 %v926
        %v1620 = vpop.f32.mrb[0].mxu0
        %v1621 = vadd.f32 %v479, %v1620
        %v1622 = vpop.f32.mrb[0].mxu0
        %v1623 = vadd.f32 %v483, %v1622
        %v1624 = vpop.f32.mrb[0].mxu0
        %v1625 = vadd.f32 %v479, %v1624
        %v1626 = vpop.f32.mrb[0].mxu0
        %v1627 = vadd.f32 %v483, %v1626
        %1628 = vmatprep.mubr.bf16.mxu0 %v931
        %1629 = vmatmul.mubr.bf16.gmra.mrb[0].mxu0 %v930
        %v1630 = vpop.f32.mrb[0].mxu0
        %v1631 = vadd.f32 %v479, %v1630
        %v1632 = vpop.f32.mrb[0].mxu0
        %v1633 = vadd.f32 %v483, %v1632
        %v1634 = vpop.f32.mrb[0].mxu0
        %v1635 = vadd.f32 %v479, %v1634
        %v1636 = vpop.f32.mrb[0].mxu0
        %v1637 = vadd.f32 %v483, %v1636
        %1638 = vmatprep.mubr.bf16.mxu0 %v935
        %1639 = vmatmul.mubr.bf16.gmra.mrb[0].mxu0 %v934
        %v1640 = vpop.f32.mrb[0].mxu0
        %v1641 = vadd.f32 %v479, %v1640
        %v1642 = vpop.f32.mrb[0].mxu0
        %v1643 = vadd.f32 %v483, %v1642
        %v1644 = vpop.f32.mrb[0].mxu0
        %v1645 = vadd.f32 %v479, %v1644
        %v1646 = vpop.f32.mrb[0].mxu0
        %v1647 = vadd.f32 %v483, %v1646
        %1648 = vmatprep.mubr.bf16.mxu0 %v939
        %1649 = vmatmul.mubr.bf16.gmra.mrb[0].mxu0 %v938
        %v1650 = vpop.f32.mrb[0].mxu0
        %v1651 = vadd.f32 %v479, %v1650
        %v1652 = vpop.f32.mrb[0].mxu0
        %v1653 = vadd.f32 %v483, %v1652
        %v1654 = vpop.f32.mrb[0].mxu0
        %v1655 = vadd.f32 %v479, %v1654
        %v1656 = vpop.f32.mrb[0].mxu0
        %v1657 = vadd.f32 %v483, %v1656
        %1658 = vmatprep.mubr.bf16.mxu0 %v943
        %1659 = vmatmul.mubr.bf16.gmra.mrb[0].mxu0 %v942
        %v1660 = vpop.f32.mrb[0].mxu0
        %v1661 = vadd.f32 %v479, %v1660
        %v1662 = vpop.f32.mrb[0].mxu0
        %v1663 = vadd.f32 %v483, %v1662
        %v1664 = vpop.f32.mrb[0].mxu0
        %v1665 = vadd.f32 %v479, %v1664
        %v1666 = vpop.f32.mrb[0].mxu0
        %v1667 = vadd.f32 %v483, %v1666
        %1668 = vmatprep.mubr.bf16.mxu0 %v947
        %1669 = vmatmul.mubr.bf16.gmra.mrb[0].mxu0 %v946
        %v1670 = vpop.f32.mrb[0].mxu0
        %v1671 = vadd.f32 %v479, %v1670
        %v1672 = vpop.f32.mrb[0].mxu0
        %v1673 = vadd.f32 %v483, %v1672
        %v1674 = vpop.f32.mrb[0].mxu0
        %v1675 = vadd.f32 %v479, %v1674
        %v1676 = vpop.f32.mrb[0].mxu0
        %v1677 = vadd.f32 %v483, %v1676
        %1678 = vmatprep.mubr.bf16.mxu0 %v951
        %1679 = vmatmul.mubr.bf16.gmra.mrb[0].mxu0 %v950
        %v1680 = vpop.f32.mrb[0].mxu0
        %v1681 = vadd.f32 %v479, %v1680
        %v1682 = vpop.f32.mrb[0].mxu0
        %v1683 = vadd.f32 %v483, %v1682
        %v1684 = vpop.f32.mrb[0].mxu0
        %v1685 = vadd.f32 %v479, %v1684
        %v1686 = vpop.f32.mrb[0].mxu0
        %v1687 = vadd.f32 %v483, %v1686
        %1688 = vmatprep.mubr.bf16.mxu0 %v955
        %1689 = vmatmul.mubr.bf16.gmra.mrb[0].mxu0 %v954
        %v1690 = vpop.f32.mrb[0].mxu0
        %v1691 = vadd.f32 %v479, %v1690
        %v1692 = vpop.f32.mrb[0].mxu0
        %v1693 = vadd.f32 %v483, %v1692
        %v1694 = vpop.f32.mrb[0].mxu0
        %v1695 = vadd.f32 %v479, %v1694
        %v1696 = vpop.f32.mrb[0].mxu0
        %v1697 = vadd.f32 %v483, %v1696
        %1698 = vmatprep.mubr.bf16.mxu0 %v959
        %1699 = vmatmul.mubr.bf16.gmra.mrb[0].mxu0 %v958
        %v1700 = vpop.f32.mrb[0].mxu0
        %v1701 = vadd.f32 %v479, %v1700
        %v1702 = vpop.f32.mrb[0].mxu0
        %v1703 = vadd.f32 %v483, %v1702
        %v1704 = vpop.f32.mrb[0].mxu0
        %v1705 = vadd.f32 %v479, %v1704
        %v1706 = vpop.f32.mrb[0].mxu0
        %v1707 = vadd.f32 %v483, %v1706
        %1708 = vmatprep.mubr.bf16.mxu0 %v963
        %1709 = vmatmul.mubr.bf16.gmra.mrb[0].mxu0 %v962
        %v1710 = vpop.f32.mrb[0].mxu0
        %v1711 = vadd.f32 %v479, %v1710
        %v1712 = vpop.f32.mrb[0].mxu0
        %v1713 = vadd.f32 %v483, %v1712
        %v1714 = vpop.f32.mrb[0].mxu0
        %v1715 = vadd.f32 %v479, %v1714
        %v1716 = vpop.f32.mrb[0].mxu0
        %v1717 = vadd.f32 %v483, %v1716
        %1718 = vmatprep.mubr.bf16.mxu0 %v967
        %1719 = vmatmul.mubr.bf16.gmra.mrb[0].mxu0 %v966
        %v1720 = vpop.f32.mrb[0].mxu0
        %v1721 = vadd.f32 %v479, %v1720
        %v1722 = vpop.f32.mrb[0].mxu0
        %v1723 = vadd.f32 %v483, %v1722
        %v1724 = vpop.f32.mrb[0].mxu0
        %v1725 = vadd.f32 %v479, %v1724
        %v1726 = vpop.f32.mrb[0].mxu0
        %v1727 = vadd.f32 %v483, %v1726
        %1728 = vmatprep.mubr.bf16.mxu0 %v971
        %1729 = vmatmul.mubr.bf16.gmra.mrb[0].mxu0 %v970
        %v1730 = vpop.f32.mrb[0].mxu0
        %v1731 = vadd.f32 %v479, %v1730
        %v1732 = vpop.f32.mrb[0].mxu0
        %v1733 = vadd.f32 %v483, %v1732
        %v1734 = vpop.f32.mrb[0].mxu0
        %v1735 = vadd.f32 %v479, %v1734
        %v1736 = vpop.f32.mrb[0].mxu0
        %v1737 = vadd.f32 %v483, %v1736
        %1738 = vmatprep.mubr.bf16.mxu0 %v975
        %1739 = vmatmul.mubr.bf16.gmra.mrb[0].mxu0 %v974
        %v1740 = vpop.f32.mrb[0].mxu0
        %v1741 = vadd.f32 %v479, %v1740
        %v1742 = vpop.f32.mrb[0].mxu0
        %v1743 = vadd.f32 %v483, %v1742
        %v1744 = vpop.f32.mrb[0].mxu0
        %v1745 = vadd.f32 %v479, %v1744
        %v1746 = vpop.f32.mrb[0].mxu0
        %v1747 = vadd.f32 %v483, %v1746
        %1748 = vmatprep.mubr.bf16.mxu0 %v979
        %1749 = vmatmul.mubr.bf16.gmra.mrb[0].mxu0 %v978
        %v1750 = vpop.f32.mrb[0].mxu0
        %v1751 = vadd.f32 %v479, %v1750
        %v1752 = vpop.f32.mrb[0].mxu0
        %v1753 = vadd.f32 %v483, %v1752
        %v1754 = vpop.f32.mrb[0].mxu0
        %v1755 = vadd.f32 %v479, %v1754
        %v1756 = vpop.f32.mrb[0].mxu0
        %v1757 = vadd.f32 %v483, %v1756
        %1758 = vmatprep.mubr.bf16.mxu0 %v983
        %1759 = vmatmul.mubr.bf16.gmra.mrb[0].mxu0 %v982
        %v1760 = vpop.f32.mrb[0].mxu0
        %v1761 = vadd.f32 %v479, %v1760
        %v1762 = vpop.f32.mrb[0].mxu0
        %v1763 = vadd.f32 %v483, %v1762
        %v1764 = vpop.f32.mrb[0].mxu0
        %v1765 = vadd.f32 %v479, %v1764
        %v1766 = vpop.f32.mrb[0].mxu0
        %v1767 = vadd.f32 %v483, %v1766
        %1768 = vmatprep.mubr.bf16.mxu0 %v987
        %1769 = vmatmul.mubr.bf16.gmra.mrb[0].mxu0 %v986
        %v1770 = vpop.f32.mrb[0].mxu0
        %v1771 = vadd.f32 %v479, %v1770
        %v1772 = vpop.f32.mrb[0].mxu0
        %v1773 = vadd.f32 %v483, %v1772
        %v1774 = vpop.f32.mrb[0].mxu0
        %v1775 = vadd.f32 %v479, %v1774
        %v1776 = vpop.f32.mrb[0].mxu0
        %v1777 = vadd.f32 %v483, %v1776
        %1778 = vmatprep.mubr.bf16.mxu0 %v991
        %1779 = vmatmul.mubr.bf16.gmra.mrb[0].mxu0 %v990
        %v1780 = vpop.f32.mrb[0].mxu0
        %v1781 = vadd.f32 %v479, %v1780
        %v1782 = vpop.f32.mrb[0].mxu0
        %v1783 = vadd.f32 %v483, %v1782
        %v1784 = vpop.f32.mrb[0].mxu0
        %v1785 = vadd.f32 %v479, %v1784
        %v1786 = vpop.f32.mrb[0].mxu0
        %v1787 = vadd.f32 %v483, %v1786
        %1788 = vmatprep.mubr.bf16.mxu0 %v995
        %1789 = vmatmul.mubr.bf16.gmra.mrb[0].mxu0 %v994
        %v1790 = vpop.f32.mrb[0].mxu0
        %v1791 = vadd.f32 %v479, %v1790
        %v1792 = vpop.f32.mrb[0].mxu0
        %v1793 = vadd.f32 %v483, %v1792
        %v1794 = vpop.f32.mrb[0].mxu0
        %v1795 = vadd.f32 %v479, %v1794
        %v1796 = vpop.f32.mrb[0].mxu0
        %v1797 = vadd.f32 %v483, %v1796
        %1798 = vdwg.mxu0
        %1799 = vmatprep.subr.bf16.mxu0 %v1351
        %1800 = vmatpush1.bf16.msra.mxu0 %v1350
        %1801 = vmatprep.subr.bf16.mxu0 %v1353
        %1802 = vmatpush1.bf16.msra.mxu0 %v1352
        %1803 = vmatprep.subr.bf16.mxu0 %v1355
        %1804 = vmatpush1.bf16.msra.mxu0 %v1354
        %1805 = vmatprep.subr.bf16.mxu0 %v1357
        %1806 = vmatpush1.bf16.msra.mxu0 %v1356
        %1807 = vmatprep.subr.bf16.mxu0 %v1359
        %1808 = vmatpush1.bf16.msra.mxu0 %v1358
        %1809 = vmatprep.subr.bf16.mxu0 %v1361
        %1810 = vmatpush1.bf16.msra.mxu0 %v1360
        %1811 = vmatprep.subr.bf16.mxu0 %v1363
        %1812 = vmatpush1.bf16.msra.mxu0 %v1362
        %1813 = vmatprep.subr.bf16.mxu0 %v1365
        %1814 = vmatpush1.bf16.msra.mxu0 %v1364
        %1815 = vmatprep.subr.bf16.mxu0 %v1367
        %1816 = vmatpush1.bf16.msra.mxu0 %v1366
        %1817 = vmatprep.subr.bf16.mxu0 %v1369
        %1818 = vmatpush1.bf16.msra.mxu0 %v1368
        %1819 = vmatprep.subr.bf16.mxu0 %v1371
        %1820 = vmatpush1.bf16.msra.mxu0 %v1370
        %1821 = vmatprep.subr.bf16.mxu0 %v1373
        %1822 = vmatpush1.bf16.msra.mxu0 %v1372
        %1823 = vmatprep.subr.bf16.mxu0 %v1375
        %1824 = vmatpush1.bf16.msra.mxu0 %v1374
        %1825 = vmatprep.subr.bf16.mxu0 %v1377
        %1826 = vmatpush1.bf16.msra.mxu0 %v1376
        %1827 = vmatprep.subr.bf16.mxu0 %v1379
        %1828 = vmatpush1.bf16.msra.mxu0 %v1378
        %1829 = vmatprep.subr.bf16.mxu0 %v1381
        %1830 = vmatpush1.bf16.msra.mxu0 %v1380
        %1831 = vmatprep.mubr.bf16.mxu0 %v873
        %1832 = vmatmul.mubr.bf16.gmra.mrb[0].mxu0 %v872
        %v1833 = vpop.f32.mrb[0].mxu0
        %v1834 = vadd.f32 %v1481, %v1833
        %v1835 = vpop.f32.mrb[0].mxu0
        %v1836 = vadd.f32 %v1483, %v1835
        %v1837 = vpop.f32.mrb[0].mxu0
        %v1838 = vadd.f32 %v1485, %v1837
        %v1839 = vpop.f32.mrb[0].mxu0
        %v1840 = vadd.f32 %v1487, %v1839
        %1841 = vmatprep.mubr.bf16.mxu0 %v877
        %1842 = vmatmul.mubr.bf16.gmra.mrb[0].mxu0 %v876
        %v1843 = vpop.f32.mrb[0].mxu0
        %v1844 = vadd.f32 %v1491, %v1843
        %v1845 = vpop.f32.mrb[0].mxu0
        %v1846 = vadd.f32 %v1493, %v1845
        %v1847 = vpop.f32.mrb[0].mxu0
        %v1848 = vadd.f32 %v1495, %v1847
        %v1849 = vpop.f32.mrb[0].mxu0
        %v1850 = vadd.f32 %v1497, %v1849
        %1851 = vmatprep.mubr.bf16.mxu0 %v881
        %1852 = vmatmul.mubr.bf16.gmra.mrb[0].mxu0 %v880
        %v1853 = vpop.f32.mrb[0].mxu0
        %v1854 = vadd.f32 %v1501, %v1853
        %v1855 = vpop.f32.mrb[0].mxu0
        %v1856 = vadd.f32 %v1503, %v1855
        %v1857 = vpop.f32.mrb[0].mxu0
        %v1858 = vadd.f32 %v1505, %v1857
        %v1859 = vpop.f32.mrb[0].mxu0
        %v1860 = vadd.f32 %v1507, %v1859
        %1861 = vmatprep.mubr.bf16.mxu0 %v885
        %1862 = vmatmul.mubr.bf16.gmra.mrb[0].mxu0 %v884
        %v1863 = vpop.f32.mrb[0].mxu0
        %v1864 = vadd.f32 %v1511, %v1863
        %v1865 = vpop.f32.mrb[0].mxu0
        %v1866 = vadd.f32 %v1513, %v1865
        %v1867 = vpop.f32.mrb[0].mxu0
        %v1868 = vadd.f32 %v1515, %v1867
        %v1869 = vpop.f32.mrb[0].mxu0
        %v1870 = vadd.f32 %v1517, %v1869
        %1871 = vmatprep.mubr.bf16.mxu0 %v889
        %1872 = vmatmul.mubr.bf16.gmra.mrb[0].mxu0 %v888
        %v1873 = vpop.f32.mrb[0].mxu0
        %v1874 = vadd.f32 %v1521, %v1873
        %v1875 = vpop.f32.mrb[0].mxu0
        %v1876 = vadd.f32 %v1523, %v1875
        %v1877 = vpop.f32.mrb[0].mxu0
        %v1878 = vadd.f32 %v1525, %v1877
        %v1879 = vpop.f32.mrb[0].mxu0
        %v1880 = vadd.f32 %v1527, %v1879
        %1881 = vmatprep.mubr.bf16.mxu0 %v893
        %1882 = vmatmul.mubr.bf16.gmra.mrb[0].mxu0 %v892
        %v1883 = vpop.f32.mrb[0].mxu0
        %v1884 = vadd.f32 %v1531, %v1883
        %v1885 = vpop.f32.mrb[0].mxu0
        %v1886 = vadd.f32 %v1533, %v1885
        %v1887 = vpop.f32.mrb[0].mxu0
        %v1888 = vadd.f32 %v1535, %v1887
        %v1889 = vpop.f32.mrb[0].mxu0
        %v1890 = vadd.f32 %v1537, %v1889
        %1891 = vmatprep.mubr.bf16.mxu0 %v897
        %1892 = vmatmul.mubr.bf16.gmra.mrb[0].mxu0 %v896
        %v1893 = vpop.f32.mrb[0].mxu0
        %v1894 = vadd.f32 %v1541, %v1893
        %v1895 = vpop.f32.mrb[0].mxu0
        %v1896 = vadd.f32 %v1543, %v1895
        %v1897 = vpop.f32.mrb[0].mxu0
        %v1898 = vadd.f32 %v1545, %v1897
        %v1899 = vpop.f32.mrb[0].mxu0
        %v1900 = vadd.f32 %v1547, %v1899
        %1901 = vmatprep.mubr.bf16.mxu0 %v901
        %1902 = vmatmul.mubr.bf16.gmra.mrb[0].mxu0 %v900
        %v1903 = vpop.f32.mrb[0].mxu0
        %v1904 = vadd.f32 %v1551, %v1903
        %v1905 = vpop.f32.mrb[0].mxu0
        %v1906 = vadd.f32 %v1553, %v1905
        %v1907 = vpop.f32.mrb[0].mxu0
        %v1908 = vadd.f32 %v1555, %v1907
        %v1909 = vpop.f32.mrb[0].mxu0
        %v1910 = vadd.f32 %v1557, %v1909
        %1911 = vmatprep.mubr.bf16.mxu0 %v905
        %1912 = vmatmul.mubr.bf16.gmra.mrb[0].mxu0 %v904
        %v1913 = vpop.f32.mrb[0].mxu0
        %v1914 = vadd.f32 %v1561, %v1913
        %v1915 = vpop.f32.mrb[0].mxu0
        %v1916 = vadd.f32 %v1563, %v1915
        %v1917 = vpop.f32.mrb[0].mxu0
        %v1918 = vadd.f32 %v1565, %v1917
        %v1919 = vpop.f32.mrb[0].mxu0
        %v1920 = vadd.f32 %v1567, %v1919
        %1921 = vmatprep.mubr.bf16.mxu0 %v909
        %1922 = vmatmul.mubr.bf16.gmra.mrb[0].mxu0 %v908
        %v1923 = vpop.f32.mrb[0].mxu0
        %v1924 = vadd.f32 %v1571, %v1923
        %v1925 = vpop.f32.mrb[0].mxu0
        %v1926 = vadd.f32 %v1573, %v1925
        %v1927 = vpop.f32.mrb[0].mxu0
        %v1928 = vadd.f32 %v1575, %v1927
        %v1929 = vpop.f32.mrb[0].mxu0
        %v1930 = vadd.f32 %v1577, %v1929
        %1931 = vmatprep.mubr.bf16.mxu0 %v913
        %1932 = vmatmul.mubr.bf16.gmra.mrb[0].mxu0 %v912
        %v1933 = vpop.f32.mrb[0].mxu0
        %v1934 = vadd.f32 %v1581, %v1933
        %v1935 = vpop.f32.mrb[0].mxu0
        %v1936 = vadd.f32 %v1583, %v1935
        %v1937 = vpop.f32.mrb[0].mxu0
        %v1938 = vadd.f32 %v1585, %v1937
        %v1939 = vpop.f32.mrb[0].mxu0
        %v1940 = vadd.f32 %v1587, %v1939
        %1941 = vmatprep.mubr.bf16.mxu0 %v917
        %1942 = vmatmul.mubr.bf16.gmra.mrb[0].mxu0 %v916
        %v1943 = vpop.f32.mrb[0].mxu0
        %v1944 = vadd.f32 %v1591, %v1943
        %v1945 = vpop.f32.mrb[0].mxu0
        %v1946 = vadd.f32 %v1593, %v1945
        %v1947 = vpop.f32.mrb[0].mxu0
        %v1948 = vadd.f32 %v1595, %v1947
        %v1949 = vpop.f32.mrb[0].mxu0
        %v1950 = vadd.f32 %v1597, %v1949
        %1951 = vmatprep.mubr.bf16.mxu0 %v921
        %1952 = vmatmul.mubr.bf16.gmra.mrb[0].mxu0 %v920
        %v1953 = vpop.f32.mrb[0].mxu0
        %v1954 = vadd.f32 %v1601, %v1953
        %v1955 = vpop.f32.mrb[0].mxu0
        %v1956 = vadd.f32 %v1603, %v1955
        %v1957 = vpop.f32.mrb[0].mxu0
        %v1958 = vadd.f32 %v1605, %v1957
        %v1959 = vpop.f32.mrb[0].mxu0
        %v1960 = vadd.f32 %v1607, %v1959
        %1961 = vmatprep.mubr.bf16.mxu0 %v925
        %1962 = vmatmul.mubr.bf16.gmra.mrb[0].mxu0 %v924
        %v1963 = vpop.f32.mrb[0].mxu0
        %v1964 = vadd.f32 %v1611, %v1963
        %v1965 = vpop.f32.mrb[0].mxu0
        %v1966 = vadd.f32 %v1613, %v1965
        %v1967 = vpop.f32.mrb[0].mxu0
        %v1968 = vadd.f32 %v1615, %v1967
        %v1969 = vpop.f32.mrb[0].mxu0
        %v1970 = vadd.f32 %v1617, %v1969
        %1971 = vmatprep.mubr.bf16.mxu0 %v929
        %1972 = vmatmul.mubr.bf16.gmra.mrb[0].mxu0 %v928
        %v1973 = vpop.f32.mrb[0].mxu0
        %v1974 = vadd.f32 %v1621, %v1973
        %v1975 = vpop.f32.mrb[0].mxu0
        %v1976 = vadd.f32 %v1623, %v1975
        %v1977 = vpop.f32.mrb[0].mxu0
        %v1978 = vadd.f32 %v1625, %v1977
        %v1979 = vpop.f32.mrb[0].mxu0
        %v1980 = vadd.f32 %v1627, %v1979
        %1981 = vmatprep.mubr.bf16.mxu0 %v933
        %1982 = vmatmul.mubr.bf16.gmra.mrb[0].mxu0 %v932
        %v1983 = vpop.f32.mrb[0].mxu0
        %v1984 = vadd.f32 %v1631, %v1983
        %v1985 = vpop.f32.mrb[0].mxu0
        %v1986 = vadd.f32 %v1633, %v1985
        %v1987 = vpop.f32.mrb[0].mxu0
        %v1988 = vadd.f32 %v1635, %v1987
        %v1989 = vpop.f32.mrb[0].mxu0
        %v1990 = vadd.f32 %v1637, %v1989
        %1991 = vmatprep.mubr.bf16.mxu0 %v937
        %1992 = vmatmul.mubr.bf16.gmra.mrb[0].mxu0 %v936
        %v1993 = vpop.f32.mrb[0].mxu0
        %v1994 = vadd.f32 %v1641, %v1993
        %v1995 = vpop.f32.mrb[0].mxu0
        %v1996 = vadd.f32 %v1643, %v1995
        %v1997 = vpop.f32.mrb[0].mxu0
        %v1998 = vadd.f32 %v1645, %v1997
        %v1999 = vpop.f32.mrb[0].mxu0
        %v2000 = vadd.f32 %v1647, %v1999
        %2001 = vmatprep.mubr.bf16.mxu0 %v941
        %2002 = vmatmul.mubr.bf16.gmra.mrb[0].mxu0 %v940
        %v2003 = vpop.f32.mrb[0].mxu0
        %v2004 = vadd.f32 %v1651, %v2003
        %v2005 = vpop.f32.mrb[0].mxu0
        %v2006 = vadd.f32 %v1653, %v2005
        %v2007 = vpop.f32.mrb[0].mxu0
        %v2008 = vadd.f32 %v1655, %v2007
        %v2009 = vpop.f32.mrb[0].mxu0
        %v2010 = vadd.f32 %v1657, %v2009
        %2011 = vmatprep.mubr.bf16.mxu0 %v945
        %2012 = vmatmul.mubr.bf16.gmra.mrb[0].mxu0 %v944
        %v2013 = vpop.f32.mrb[0].mxu0
        %v2014 = vadd.f32 %v1661, %v2013
        %v2015 = vpop.f32.mrb[0].mxu0
        %v2016 = vadd.f32 %v1663, %v2015
        %v2017 = vpop.f32.mrb[0].mxu0
        %v2018 = vadd.f32 %v1665, %v2017
        %v2019 = vpop.f32.mrb[0].mxu0
        %v2020 = vadd.f32 %v1667, %v2019
        %2021 = vmatprep.mubr.bf16.mxu0 %v949
        %2022 = vmatmul.mubr.bf16.gmra.mrb[0].mxu0 %v948
        %v2023 = vpop.f32.mrb[0].mxu0
        %v2024 = vadd.f32 %v1671, %v2023
        %v2025 = vpop.f32.mrb[0].mxu0
        %v2026 = vadd.f32 %v1673, %v2025
        %v2027 = vpop.f32.mrb[0].mxu0
        %v2028 = vadd.f32 %v1675, %v2027
        %v2029 = vpop.f32.mrb[0].mxu0
        %v2030 = vadd.f32 %v1677, %v2029
        %2031 = vmatprep.mubr.bf16.mxu0 %v953
        %2032 = vmatmul.mubr.bf16.gmra.mrb[0].mxu0 %v952
        %v2033 = vpop.f32.mrb[0].mxu0
        %v2034 = vadd.f32 %v1681, %v2033
        %v2035 = vpop.f32.mrb[0].mxu0
        %v2036 = vadd.f32 %v1683, %v2035
        %v2037 = vpop.f32.mrb[0].mxu0
        %v2038 = vadd.f32 %v1685, %v2037
        %v2039 = vpop.f32.mrb[0].mxu0
        %v2040 = vadd.f32 %v1687, %v2039
        %2041 = vmatprep.mubr.bf16.mxu0 %v957
        %2042 = vmatmul.mubr.bf16.gmra.mrb[0].mxu0 %v956
        %v2043 = vpop.f32.mrb[0].mxu0
        %v2044 = vadd.f32 %v1691, %v2043
        %v2045 = vpop.f32.mrb[0].mxu0
        %v2046 = vadd.f32 %v1693, %v2045
        %v2047 = vpop.f32.mrb[0].mxu0
        %v2048 = vadd.f32 %v1695, %v2047
        %v2049 = vpop.f32.mrb[0].mxu0
        %v2050 = vadd.f32 %v1697, %v2049
        %2051 = vmatprep.mubr.bf16.mxu0 %v961
        %2052 = vmatmul.mubr.bf16.gmra.mrb[0].mxu0 %v960
        %v2053 = vpop.f32.mrb[0].mxu0
        %v2054 = vadd.f32 %v1701, %v2053
        %v2055 = vpop.f32.mrb[0].mxu0
        %v2056 = vadd.f32 %v1703, %v2055
        %v2057 = vpop.f32.mrb[0].mxu0
        %v2058 = vadd.f32 %v1705, %v2057
        %v2059 = vpop.f32.mrb[0].mxu0
        %v2060 = vadd.f32 %v1707, %v2059
        %2061 = vmatprep.mubr.bf16.mxu0 %v965
        %2062 = vmatmul.mubr.bf16.gmra.mrb[0].mxu0 %v964
        %v2063 = vpop.f32.mrb[0].mxu0
        %v2064 = vadd.f32 %v1711, %v2063
        %v2065 = vpop.f32.mrb[0].mxu0
        %v2066 = vadd.f32 %v1713, %v2065
        %v2067 = vpop.f32.mrb[0].mxu0
        %v2068 = vadd.f32 %v1715, %v2067
        %v2069 = vpop.f32.mrb[0].mxu0
        %v2070 = vadd.f32 %v1717, %v2069
        %2071 = vmatprep.mubr.bf16.mxu0 %v969
        %2072 = vmatmul.mubr.bf16.gmra.mrb[0].mxu0 %v968
        %v2073 = vpop.f32.mrb[0].mxu0
        %v2074 = vadd.f32 %v1721, %v2073
        %v2075 = vpop.f32.mrb[0].mxu0
        %v2076 = vadd.f32 %v1723, %v2075
        %v2077 = vpop.f32.mrb[0].mxu0
        %v2078 = vadd.f32 %v1725, %v2077
        %v2079 = vpop.f32.mrb[0].mxu0
        %v2080 = vadd.f32 %v1727, %v2079
        %2081 = vmatprep.mubr.bf16.mxu0 %v973
        %2082 = vmatmul.mubr.bf16.gmra.mrb[0].mxu0 %v972
        %v2083 = vpop.f32.mrb[0].mxu0
        %v2084 = vadd.f32 %v1731, %v2083
        %v2085 = vpop.f32.mrb[0].mxu0
        %v2086 = vadd.f32 %v1733, %v2085
        %v2087 = vpop.f32.mrb[0].mxu0
        %v2088 = vadd.f32 %v1735, %v2087
        %v2089 = vpop.f32.mrb[0].mxu0
        %v2090 = vadd.f32 %v1737, %v2089
        %2091 = vmatprep.mubr.bf16.mxu0 %v977
        %2092 = vmatmul.mubr.bf16.gmra.mrb[0].mxu0 %v976
        %v2093 = vpop.f32.mrb[0].mxu0
        %v2094 = vadd.f32 %v1741, %v2093
        %v2095 = vpop.f32.mrb[0].mxu0
        %v2096 = vadd.f32 %v1743, %v2095
        %v2097 = vpop.f32.mrb[0].mxu0
        %v2098 = vadd.f32 %v1745, %v2097
        %v2099 = vpop.f32.mrb[0].mxu0
        %v2100 = vadd.f32 %v1747, %v2099
        %2101 = vmatprep.mubr.bf16.mxu0 %v981
        %2102 = vmatmul.mubr.bf16.gmra.mrb[0].mxu0 %v980
        %v2103 = vpop.f32.mrb[0].mxu0
        %v2104 = vadd.f32 %v1751, %v2103
        %v2105 = vpop.f32.mrb[0].mxu0
        %v2106 = vadd.f32 %v1753, %v2105
        %v2107 = vpop.f32.mrb[0].mxu0
        %v2108 = vadd.f32 %v1755, %v2107
        %v2109 = vpop.f32.mrb[0].mxu0
        %v2110 = vadd.f32 %v1757, %v2109
        %2111 = vmatprep.mubr.bf16.mxu0 %v985
        %2112 = vmatmul.mubr.bf16.gmra.mrb[0].mxu0 %v984
        %v2113 = vpop.f32.mrb[0].mxu0
        %v2114 = vadd.f32 %v1761, %v2113
        %v2115 = vpop.f32.mrb[0].mxu0
        %v2116 = vadd.f32 %v1763, %v2115
        %v2117 = vpop.f32.mrb[0].mxu0
        %v2118 = vadd.f32 %v1765, %v2117
        %v2119 = vpop.f32.mrb[0].mxu0
        %v2120 = vadd.f32 %v1767, %v2119
        %2121 = vmatprep.mubr.bf16.mxu0 %v989
        %2122 = vmatmul.mubr.bf16.gmra.mrb[0].mxu0 %v988
        %v2123 = vpop.f32.mrb[0].mxu0
        %v2124 = vadd.f32 %v1771, %v2123
        %v2125 = vpop.f32.mrb[0].mxu0
        %v2126 = vadd.f32 %v1773, %v2125
        %v2127 = vpop.f32.mrb[0].mxu0
        %v2128 = vadd.f32 %v1775, %v2127
        %v2129 = vpop.f32.mrb[0].mxu0
        %v2130 = vadd.f32 %v1777, %v2129
        %2131 = vmatprep.mubr.bf16.mxu0 %v993
        %2132 = vmatmul.mubr.bf16.gmra.mrb[0].mxu0 %v992
        %v2133 = vpop.f32.mrb[0].mxu0
        %v2134 = vadd.f32 %v1781, %v2133
        %v2135 = vpop.f32.mrb[0].mxu0
        %v2136 = vadd.f32 %v1783, %v2135
        %v2137 = vpop.f32.mrb[0].mxu0
        %v2138 = vadd.f32 %v1785, %v2137
        %v2139 = vpop.f32.mrb[0].mxu0
        %v2140 = vadd.f32 %v1787, %v2139
        %2141 = vmatprep.mubr.bf16.mxu0 %v997
        %2142 = vmatmul.mubr.bf16.gmra.mrb[0].mxu0 %v996
        %v2143 = vpop.f32.mrb[0].mxu0
        %v2144 = vadd.f32 %v1791, %v2143
        %v2145 = vpop.f32.mrb[0].mxu0
        %v2146 = vadd.f32 %v1793, %v2145
        %v2147 = vpop.f32.mrb[0].mxu0
        %v2148 = vadd.f32 %v1795, %v2147
        %v2149 = vpop.f32.mrb[0].mxu0
        %v2150 = vadd.f32 %v1797, %v2149
        %2151 = vdwg.mxu0
        %v2152 = vmax.f32 %v1834, 0.0
        %v2153 = vmax.f32 %v1836, 0.0
        %v2154 = vmax.f32 %v1838, 0.0
        %v2155 = vmax.f32 %v1840, 0.0
        %v2156 = vmax.f32 %v1844, 0.0
        %v2157 = vmax.f32 %v1846, 0.0
        %v2158 = vmax.f32 %v1848, 0.0
        %v2159 = vmax.f32 %v1850, 0.0
        %v2160 = vmax.f32 %v1854, 0.0
        %v2161 = vmax.f32 %v1856, 0.0
        %v2162 = vmax.f32 %v1858, 0.0
        %v2163 = vmax.f32 %v1860, 0.0
        %v2164 = vmax.f32 %v1864, 0.0
        %v2165 = vmax.f32 %v1866, 0.0
        %v2166 = vmax.f32 %v1868, 0.0
        %v2167 = vmax.f32 %v1870, 0.0
        %v2168 = vmax.f32 %v1874, 0.0
        %v2169 = vmax.f32 %v1876, 0.0
        %v2170 = vmax.f32 %v1878, 0.0
        %v2171 = vmax.f32 %v1880, 0.0
        %v2172 = vmax.f32 %v1884, 0.0
        %v2173 = vmax.f32 %v1886, 0.0
        %v2174 = vmax.f32 %v1888, 0.0
        %v2175 = vmax.f32 %v1890, 0.0
        %v2176 = vmax.f32 %v1894, 0.0
        %v2177 = vmax.f32 %v1896, 0.0
        %v2178 = vmax.f32 %v1898, 0.0
        %v2179 = vmax.f32 %v1900, 0.0
        %v2180 = vmax.f32 %v1904, 0.0
        %v2181 = vmax.f32 %v1906, 0.0
        %v2182 = vmax.f32 %v1908, 0.0
        %v2183 = vmax.f32 %v1910, 0.0
        %v2184 = vmax.f32 %v1914, 0.0
        %v2185 = vmax.f32 %v1916, 0.0
        %v2186 = vmax.f32 %v1918, 0.0
        %v2187 = vmax.f32 %v1920, 0.0
        %v2188 = vmax.f32 %v1924, 0.0
        %v2189 = vmax.f32 %v1926, 0.0
        %v2190 = vmax.f32 %v1928, 0.0
        %v2191 = vmax.f32 %v1930, 0.0
        %v2192 = vmax.f32 %v1934, 0.0
        %v2193 = vmax.f32 %v1936, 0.0
        %v2194 = vmax.f32 %v1938, 0.0
        %v2195 = vmax.f32 %v1940, 0.0
        %v2196 = vmax.f32 %v1944, 0.0
        %v2197 = vmax.f32 %v1946, 0.0
        %v2198 = vmax.f32 %v1948, 0.0
        %v2199 = vmax.f32 %v1950, 0.0
        %v2200 = vmax.f32 %v1954, 0.0
        %v2201 = vmax.f32 %v1956, 0.0
        %v2202 = vmax.f32 %v1958, 0.0
        %v2203 = vmax.f32 %v1960, 0.0
        %v2204 = vmax.f32 %v1964, 0.0
        %v2205 = vmax.f32 %v1966, 0.0
        %v2206 = vmax.f32 %v1968, 0.0
        %v2207 = vmax.f32 %v1970, 0.0
        %v2208 = vmax.f32 %v1974, 0.0
        %v2209 = vmax.f32 %v1976, 0.0
        %v2210 = vmax.f32 %v1978, 0.0
        %v2211 = vmax.f32 %v1980, 0.0
        %v2212 = vmax.f32 %v1984, 0.0
        %v2213 = vmax.f32 %v1986, 0.0
        %v2214 = vmax.f32 %v1988, 0.0
        %v2215 = vmax.f32 %v1990, 0.0
        %v2216 = vmax.f32 %v1994, 0.0
        %v2217 = vmax.f32 %v1996, 0.0
        %v2218 = vmax.f32 %v1998, 0.0
        %v2219 = vmax.f32 %v2000, 0.0
        %v2220 = vmax.f32 %v2004, 0.0
        %v2221 = vmax.f32 %v2006, 0.0
        %v2222 = vmax.f32 %v2008, 0.0
        %v2223 = vmax.f32 %v2010, 0.0
        %v2224 = vmax.f32 %v2014, 0.0
        %v2225 = vmax.f32 %v2016, 0.0
        %v2226 = vmax.f32 %v2018, 0.0
        %v2227 = vmax.f32 %v2020, 0.0
        %v2228 = vmax.f32 %v2024, 0.0
        %v2229 = vmax.f32 %v2026, 0.0
        %v2230 = vmax.f32 %v2028, 0.0
        %v2231 = vmax.f32 %v2030, 0.0
        %v2232 = vmax.f32 %v2034, 0.0
        %v2233 = vmax.f32 %v2036, 0.0
        %v2234 = vmax.f32 %v2038, 0.0
        %v2235 = vmax.f32 %v2040, 0.0
        %v2236 = vmax.f32 %v2044, 0.0
        %v2237 = vmax.f32 %v2046, 0.0
        %v2238 = vmax.f32 %v2048, 0.0
        %v2239 = vmax.f32 %v2050, 0.0
        %v2240 = vmax.f32 %v2054, 0.0
        %v2241 = vmax.f32 %v2056, 0.0
        %v2242 = vmax.f32 %v2058, 0.0
        %v2243 = vmax.f32 %v2060, 0.0
        %v2244 = vmax.f32 %v2064, 0.0
        %v2245 = vmax.f32 %v2066, 0.0
        %v2246 = vmax.f32 %v2068, 0.0
        %v2247 = vmax.f32 %v2070, 0.0
        %v2248 = vmax.f32 %v2074, 0.0
        %v2249 = vmax.f32 %v2076, 0.0
        %v2250 = vmax.f32 %v2078, 0.0
        %v2251 = vmax.f32 %v2080, 0.0
        %v2252 = vmax.f32 %v2084, 0.0
        %v2253 = vmax.f32 %v2086, 0.0
        %v2254 = vmax.f32 %v2088, 0.0
        %v2255 = vmax.f32 %v2090, 0.0
        %v2256 = vmax.f32 %v2094, 0.0
        %v2257 = vmax.f32 %v2096, 0.0
        %v2258 = vmax.f32 %v2098, 0.0
        %v2259 = vmax.f32 %v2100, 0.0
        %v2260 = vmax.f32 %v2104, 0.0
        %v2261 = vmax.f32 %v2106, 0.0
        %v2262 = vmax.f32 %v2108, 0.0
        %v2263 = vmax.f32 %v2110, 0.0
        %v2264 = vmax.f32 %v2114, 0.0
        %v2265 = vmax.f32 %v2116, 0.0
        %v2266 = vmax.f32 %v2118, 0.0
        %v2267 = vmax.f32 %v2120, 0.0
        %v2268 = vmax.f32 %v2124, 0.0
        %v2269 = vmax.f32 %v2126, 0.0
        %v2270 = vmax.f32 %v2128, 0.0
        %v2271 = vmax.f32 %v2130, 0.0
        %v2272 = vmax.f32 %v2134, 0.0
        %v2273 = vmax.f32 %v2136, 0.0
        %v2274 = vmax.f32 %v2138, 0.0
        %v2275 = vmax.f32 %v2140, 0.0
        %v2276 = vmax.f32 %v2144, 0.0
        %v2277 = vmax.f32 %v2146, 0.0
        %v2278 = vmax.f32 %v2148, 0.0
        %v2279 = vmax.f32 %v2150, 0.0
        %v2280 = vmax.f32 %v2152, %v2184
        %v2281 = vmax.f32 %v2153, %v2185
        %v2282 = vmax.f32 %v2154, %v2186
        %v2283 = vmax.f32 %v2155, %v2187
        %v2284 = vmax.f32 %v2156, %v2188
        %v2285 = vmax.f32 %v2157, %v2189
        %v2286 = vmax.f32 %v2158, %v2190
        %v2287 = vmax.f32 %v2159, %v2191
        %v2288 = vmax.f32 %v2160, %v2192
        %v2289 = vmax.f32 %v2161, %v2193
        %v2290 = vmax.f32 %v2162, %v2194
        %v2291 = vmax.f32 %v2163, %v2195
        %v2292 = vmax.f32 %v2164, %v2196
        %v2293 = vmax.f32 %v2165, %v2197
        %v2294 = vmax.f32 %v2166, %v2198
        %v2295 = vmax.f32 %v2167, %v2199
        %v2296 = vmax.f32 %v2168, %v2200
        %v2297 = vmax.f32 %v2169, %v2201
        %v2298 = vmax.f32 %v2170, %v2202
        %v2299 = vmax.f32 %v2171, %v2203
        %v2300 = vmax.f32 %v2172, %v2204
        %v2301 = vmax.f32 %v2173, %v2205
        %v2302 = vmax.f32 %v2174, %v2206
        %v2303 = vmax.f32 %v2175, %v2207
        %v2304 = vmax.f32 %v2176, %v2208
        %v2305 = vmax.f32 %v2177, %v2209
        %v2306 = vmax.f32 %v2178, %v2210
        %v2307 = vmax.f32 %v2179, %v2211
        %v2308 = vmax.f32 %v2180, %v2212
        %v2309 = vmax.f32 %v2181, %v2213
        %v2310 = vmax.f32 %v2182, %v2214
        %v2311 = vmax.f32 %v2183, %v2215
        %v2312 = vmax.f32 %v2216, %v2248
        %v2313 = vmax.f32 %v2217, %v2249
        %v2314 = vmax.f32 %v2218, %v2250
        %v2315 = vmax.f32 %v2219, %v2251
        %v2316 = vmax.f32 %v2220, %v2252
        %v2317 = vmax.f32 %v2221, %v2253
        %v2318 = vmax.f32 %v2222, %v2254
        %v2319 = vmax.f32 %v2223, %v2255
        %v2320 = vmax.f32 %v2224, %v2256
        %v2321 = vmax.f32 %v2225, %v2257
        %v2322 = vmax.f32 %v2226, %v2258
        %v2323 = vmax.f32 %v2227, %v2259
        %v2324 = vmax.f32 %v2228, %v2260
        %v2325 = vmax.f32 %v2229, %v2261
        %v2326 = vmax.f32 %v2230, %v2262
        %v2327 = vmax.f32 %v2231, %v2263
        %v2328 = vmax.f32 %v2232, %v2264
        %v2329 = vmax.f32 %v2233, %v2265
        %v2330 = vmax.f32 %v2234, %v2266
        %v2331 = vmax.f32 %v2235, %v2267
        %v2332 = vmax.f32 %v2236, %v2268
        %v2333 = vmax.f32 %v2237, %v2269
        %v2334 = vmax.f32 %v2238, %v2270
        %v2335 = vmax.f32 %v2239, %v2271
        %v2336 = vmax.f32 %v2240, %v2272
        %v2337 = vmax.f32 %v2241, %v2273
        %v2338 = vmax.f32 %v2242, %v2274
        %v2339 = vmax.f32 %v2243, %v2275
        %v2340 = vmax.f32 %v2244, %v2276
        %v2341 = vmax.f32 %v2245, %v2277
        %v2342 = vmax.f32 %v2246, %v2278
        %v2343 = vmax.f32 %v2247, %v2279
        %v2344 = vmax.f32 %v2280, %v2312
        %v2345 = vmax.f32 %v2281, %v2313
        %v2346 = vmax.f32 %v2282, %v2314
        %v2347 = vmax.f32 %v2283, %v2315
        %v2348 = vmax.f32 %v2284, %v2316
        %v2349 = vmax.f32 %v2285, %v2317
        %v2350 = vmax.f32 %v2286, %v2318
        %v2351 = vmax.f32 %v2287, %v2319
        %v2352 = vmax.f32 %v2288, %v2320
        %v2353 = vmax.f32 %v2289, %v2321
        %v2354 = vmax.f32 %v2290, %v2322
        %v2355 = vmax.f32 %v2291, %v2323
        %v2356 = vmax.f32 %v2292, %v2324
        %v2357 = vmax.f32 %v2293, %v2325
        %v2358 = vmax.f32 %v2294, %v2326
        %v2359 = vmax.f32 %v2295, %v2327
        %v2360 = vmax.f32 %v2296, %v2328
        %v2361 = vmax.f32 %v2297, %v2329
        %v2362 = vmax.f32 %v2298, %v2330
        %v2363 = vmax.f32 %v2299, %v2331
        %v2364 = vmax.f32 %v2300, %v2332
        %v2365 = vmax.f32 %v2301, %v2333
        %v2366 = vmax.f32 %v2302, %v2334
        %v2367 = vmax.f32 %v2303, %v2335
        %v2368 = vmax.f32 %v2304, %v2336
        %v2369 = vmax.f32 %v2305, %v2337
        %v2370 = vmax.f32 %v2306, %v2338
        %v2371 = vmax.f32 %v2307, %v2339
        %v2372 = vmax.f32 %v2308, %v2340
        %v2373 = vmax.f32 %v2309, %v2341
        %v2374 = vmax.f32 %v2310, %v2342
        %v2375 = vmax.f32 %v2311, %v2343
        %v2376 = vpack.c.bf16 %v2346, %v2344
        %v2377 = vpack.c.bf16 %v2347, %v2345
        %v2378 = vpack.c.bf16 %v2350, %v2348
        %v2379 = vpack.c.bf16 %v2351, %v2349
        %v2380 = vpack.c.bf16 %v2354, %v2352
        %v2381 = vpack.c.bf16 %v2355, %v2353
        %v2382 = vpack.c.bf16 %v2358, %v2356
        %v2383 = vpack.c.bf16 %v2359, %v2357
        %v2384 = vpack.c.bf16 %v2362, %v2360
        %v2385 = vpack.c.bf16 %v2363, %v2361
        %v2386 = vpack.c.bf16 %v2366, %v2364
        %v2387 = vpack.c.bf16 %v2367, %v2365
        %v2388 = vpack.c.bf16 %v2370, %v2368
        %v2389 = vpack.c.bf16 %v2371, %v2369
        %v2390 = vpack.c.bf16 %v2374, %v2372
        %v2391 = vpack.c.bf16 %v2375, %v2373
        %v2392 = vld [vmem:[%s3] sm:$0xf]
        %v2393 = vld [vmem:[%s3 + $0x4] sm:$0xf]
        %v2394 = vld [vmem:[%s3 + $0x8] sm:$0xf]
        %v2395 = vld [vmem:[%s3 + $0xc] sm:$0xf]
        %v2396 = vld [vmem:[%s3 + $0x10] sm:$0xf]
        %v2397 = vld [vmem:[%s3 + $0x14] sm:$0xf]
        %v2398 = vld [vmem:[%s3 + $0x18] sm:$0xf]
        %v2399 = vld [vmem:[%s3 + $0x1c] sm:$0xf]
        %v2400 = vld [vmem:[%s3 + $0x20] sm:$0xf]
        %v2401 = vld [vmem:[%s3 + $0x24] sm:$0xf]
        %v2402 = vld [vmem:[%s3 + $0x28] sm:$0xf]
        %v2403 = vld [vmem:[%s3 + $0x2c] sm:$0xf]
        %v2404 = vld [vmem:[%s3 + $0x30] sm:$0xf]
        %v2405 = vld [vmem:[%s3 + $0x34] sm:$0xf]
        %v2406 = vld [vmem:[%s3 + $0x38] sm:$0xf]
        %v2407 = vld [vmem:[%s3 + $0x3c] sm:$0xf]
        %v2408 = vld [vmem:[%s3 + $0x40] sm:$0xf]
        %v2409 = vld [vmem:[%s3 + $0x44] sm:$0xf]
        %v2410 = vld [vmem:[%s3 + $0x48] sm:$0xf]
        %v2411 = vld [vmem:[%s3 + $0x4c] sm:$0xf]
        %v2412 = vld [vmem:[%s3 + $0x50] sm:$0xf]
        %v2413 = vld [vmem:[%s3 + $0x54] sm:$0xf]
        %v2414 = vld [vmem:[%s3 + $0x58] sm:$0xf]
        %v2415 = vld [vmem:[%s3 + $0x5c] sm:$0xf]
        %v2416 = vld [vmem:[%s3 + $0x60] sm:$0xf]
        %v2417 = vld [vmem:[%s3 + $0x64] sm:$0xf]
        %v2418 = vld [vmem:[%s3 + $0x68] sm:$0xf]
        %v2419 = vld [vmem:[%s3 + $0x6c] sm:$0xf]
        %v2420 = vld [vmem:[%s3 + $0x70] sm:$0xf]
        %v2421 = vld [vmem:[%s3 + $0x74] sm:$0xf]
        %v2422 = vld [vmem:[%s3 + $0x78] sm:$0xf]
        %v2423 = vld [vmem:[%s3 + $0x7c] sm:$0xf]
        %v2424 = vld [vmem:[%s4] sm:$0x1]
        %v2426 = vlaneseq
        %v2427 = vshrl.u32 %v2426, 7
        %v2428 = vsub.s32 0, %v2427
        %v2429 = vrot.slane %v2424, %v2428
        %v2463 = vunpack.c.l.b16 %v2392
        %v2464 = vunpack.c.l.b16 %v2393
        %v2465 = vunpack.c.l.b16 %v2394
        %v2466 = vunpack.c.l.b16 %v2395
        %v2467 = vunpack.c.l.b16 %v2396
        %v2468 = vunpack.c.l.b16 %v2397
        %v2469 = vunpack.c.l.b16 %v2398
        %v2470 = vunpack.c.l.b16 %v2399
        %v2471 = vunpack.c.l.b16 %v2400
        %v2472 = vunpack.c.l.b16 %v2401
        %v2473 = vunpack.c.l.b16 %v2402
        %v2474 = vunpack.c.l.b16 %v2403
        %v2475 = vunpack.c.l.b16 %v2404
        %v2476 = vunpack.c.l.b16 %v2405
        %v2477 = vunpack.c.l.b16 %v2406
        %v2478 = vunpack.c.l.b16 %v2407
        %v2479 = vunpack.c.l.b16 %v2408
        %v2480 = vunpack.c.l.b16 %v2409
        %v2481 = vunpack.c.l.b16 %v2410
        %v2482 = vunpack.c.l.b16 %v2411
        %v2483 = vunpack.c.l.b16 %v2412
        %v2484 = vunpack.c.l.b16 %v2413
        %v2485 = vunpack.c.l.b16 %v2414
        %v2486 = vunpack.c.l.b16 %v2415
        %v2487 = vunpack.c.l.b16 %v2416
        %v2488 = vunpack.c.l.b16 %v2417
        %v2489 = vunpack.c.l.b16 %v2418
        %v2490 = vunpack.c.l.b16 %v2419
        %v2491 = vunpack.c.l.b16 %v2420
        %v2492 = vunpack.c.l.b16 %v2421
        %v2493 = vunpack.c.l.b16 %v2422
        %v2494 = vunpack.c.l.b16 %v2423
        %v2495 = vpack.c.b16 %v2464, %v2463
        %v2496 = vpack.c.b16 %v2466, %v2465
        %v2497 = vpack.c.b16 %v2468, %v2467
        %v2498 = vpack.c.b16 %v2470, %v2469
        %v2499 = vpack.c.b16 %v2472, %v2471
        %v2500 = vpack.c.b16 %v2474, %v2473
        %v2501 = vpack.c.b16 %v2476, %v2475
        %v2502 = vpack.c.b16 %v2478, %v2477
        %v2503 = vpack.c.b16 %v2480, %v2479
        %v2504 = vpack.c.b16 %v2482, %v2481
        %v2505 = vpack.c.b16 %v2484, %v2483
        %v2506 = vpack.c.b16 %v2486, %v2485
        %v2507 = vpack.c.b16 %v2488, %v2487
        %v2508 = vpack.c.b16 %v2490, %v2489
        %v2509 = vpack.c.b16 %v2492, %v2491
        %v2510 = vpack.c.b16 %v2494, %v2493
        %2527 = vmatprep.subr.bf16.mxu0 0
        %2528 = vmatpush1.bf16.msra.mxu0 %v2495
        %2529 = vmatprep.subr.bf16.mxu0 0
        %2530 = vmatpush1.bf16.msra.mxu0 %v2496
        %2531 = vmatprep.subr.bf16.mxu0 0
        %2532 = vmatpush1.bf16.msra.mxu0 %v2497
        %2533 = vmatprep.subr.bf16.mxu0 0
        %2534 = vmatpush1.bf16.msra.mxu0 %v2498
        %2535 = vmatprep.subr.bf16.mxu0 0
        %2536 = vmatpush1.bf16.msra.mxu0 %v2499
        %2537 = vmatprep.subr.bf16.mxu0 0
        %2538 = vmatpush1.bf16.msra.mxu0 %v2500
        %2539 = vmatprep.subr.bf16.mxu0 0
        %2540 = vmatpush1.bf16.msra.mxu0 %v2501
        %2541 = vmatprep.subr.bf16.mxu0 0
        %2542 = vmatpush1.bf16.msra.mxu0 %v2502
        %2543 = vmatprep.subr.bf16.mxu0 0
        %2544 = vmatpush1.bf16.msra.mxu0 %v2503
        %2545 = vmatprep.subr.bf16.mxu0 0
        %2546 = vmatpush1.bf16.msra.mxu0 %v2504
        %2547 = vmatprep.subr.bf16.mxu0 0
        %2548 = vmatpush1.bf16.msra.mxu0 %v2505
        %2549 = vmatprep.subr.bf16.mxu0 0
        %2550 = vmatpush1.bf16.msra.mxu0 %v2506
        %2551 = vmatprep.subr.bf16.mxu0 0
        %2552 = vmatpush1.bf16.msra.mxu0 %v2507
        %2553 = vmatprep.subr.bf16.mxu0 0
        %2554 = vmatpush1.bf16.msra.mxu0 %v2508
        %2555 = vmatprep.subr.bf16.mxu0 0
        %2556 = vmatpush1.bf16.msra.mxu0 %v2509
        %2557 = vmatprep.subr.bf16.mxu0 0
        %2558 = vmatpush1.bf16.msra.mxu0 %v2510
        %2559 = vmatprep.mubr.bf16.mxu0 %v2377
        %2560 = vmatmul.mubr.bf16.gmra.mrb[0].mxu0 %v2376
        %v2561 = vpop.f32.mrb[0].mxu0
        %v2562 = vadd.f32 %v2429, %v2561
        %v2563 = vpop.f32.mrb[0].mxu0
        %v2564 = vpop.f32.mrb[0].mxu0
        %v2565 = vadd.f32 %v2429, %v2564
        %v2566 = vpop.f32.mrb[0].mxu0
        %2567 = vmatprep.mubr.bf16.mxu0 %v2379
        %2568 = vmatmul.mubr.bf16.gmra.mrb[0].mxu0 %v2378
        %v2569 = vpop.f32.mrb[0].mxu0
        %v2570 = vadd.f32 %v2429, %v2569
        %v2571 = vpop.f32.mrb[0].mxu0
        %v2572 = vpop.f32.mrb[0].mxu0
        %v2573 = vadd.f32 %v2429, %v2572
        %v2574 = vpop.f32.mrb[0].mxu0
        %2575 = vmatprep.mubr.bf16.mxu0 %v2381
        %2576 = vmatmul.mubr.bf16.gmra.mrb[0].mxu0 %v2380
        %v2577 = vpop.f32.mrb[0].mxu0
        %v2578 = vadd.f32 %v2429, %v2577
        %v2579 = vpop.f32.mrb[0].mxu0
        %v2580 = vpop.f32.mrb[0].mxu0
        %v2581 = vadd.f32 %v2429, %v2580
        %v2582 = vpop.f32.mrb[0].mxu0
        %2583 = vmatprep.mubr.bf16.mxu0 %v2383
        %2584 = vmatmul.mubr.bf16.gmra.mrb[0].mxu0 %v2382
        %v2585 = vpop.f32.mrb[0].mxu0
        %v2586 = vadd.f32 %v2429, %v2585
        %v2587 = vpop.f32.mrb[0].mxu0
        %v2588 = vpop.f32.mrb[0].mxu0
        %v2589 = vadd.f32 %v2429, %v2588
        %v2590 = vpop.f32.mrb[0].mxu0
        %2591 = vmatprep.mubr.bf16.mxu0 %v2385
        %2592 = vmatmul.mubr.bf16.gmra.mrb[0].mxu0 %v2384
        %v2593 = vpop.f32.mrb[0].mxu0
        %v2594 = vadd.f32 %v2429, %v2593
        %v2595 = vpop.f32.mrb[0].mxu0
        %v2596 = vpop.f32.mrb[0].mxu0
        %v2597 = vadd.f32 %v2429, %v2596
        %v2598 = vpop.f32.mrb[0].mxu0
        %2599 = vmatprep.mubr.bf16.mxu0 %v2387
        %2600 = vmatmul.mubr.bf16.gmra.mrb[0].mxu0 %v2386
        %v2601 = vpop.f32.mrb[0].mxu0
        %v2602 = vadd.f32 %v2429, %v2601
        %v2603 = vpop.f32.mrb[0].mxu0
        %v2604 = vpop.f32.mrb[0].mxu0
        %v2605 = vadd.f32 %v2429, %v2604
        %v2606 = vpop.f32.mrb[0].mxu0
        %2607 = vmatprep.mubr.bf16.mxu0 %v2389
        %2608 = vmatmul.mubr.bf16.gmra.mrb[0].mxu0 %v2388
        %v2609 = vpop.f32.mrb[0].mxu0
        %v2610 = vadd.f32 %v2429, %v2609
        %v2611 = vpop.f32.mrb[0].mxu0
        %v2612 = vpop.f32.mrb[0].mxu0
        %v2613 = vadd.f32 %v2429, %v2612
        %v2614 = vpop.f32.mrb[0].mxu0
        %2615 = vmatprep.mubr.bf16.mxu0 %v2391
        %2616 = vmatmul.mubr.bf16.gmra.mrb[0].mxu0 %v2390
        %v2617 = vpop.f32.mrb[0].mxu0
        %v2618 = vadd.f32 %v2429, %v2617
        %v2619 = vpop.f32.mrb[0].mxu0
        %v2620 = vpop.f32.mrb[0].mxu0
        %v2621 = vadd.f32 %v2429, %v2620
        %v2622 = vpop.f32.mrb[0].mxu0
        %2623 = vdwg.mxu0
        %v2624 = vmax.f32 %v2562, 0.0
        %v2625 = vmax.f32 %v2565, 0.0
        %v2626 = vmax.f32 %v2570, 0.0
        %v2627 = vmax.f32 %v2573, 0.0
        %v2628 = vmax.f32 %v2578, 0.0
        %v2629 = vmax.f32 %v2581, 0.0
        %v2630 = vmax.f32 %v2586, 0.0
        %v2631 = vmax.f32 %v2589, 0.0
        %v2632 = vmax.f32 %v2594, 0.0
        %v2633 = vmax.f32 %v2597, 0.0
        %v2634 = vmax.f32 %v2602, 0.0
        %v2635 = vmax.f32 %v2605, 0.0
        %v2636 = vmax.f32 %v2610, 0.0
        %v2637 = vmax.f32 %v2613, 0.0
        %v2638 = vmax.f32 %v2618, 0.0
        %v2639 = vmax.f32 %v2621, 0.0
        %v2640 = vmax.f32 %v2624, %v2628
        %v2641 = vmax.f32 %v2625, %v2629
        %v2642 = vmax.f32 %v2626, %v2630
        %v2643 = vmax.f32 %v2627, %v2631
        %v2644 = vmax.f32 %v2632, %v2636
        %v2645 = vmax.f32 %v2633, %v2637
        %v2646 = vmax.f32 %v2634, %v2638
        %v2647 = vmax.f32 %v2635, %v2639
        %v2648 = vmax.f32 %v2640, %v2644
        %v2649 = vmax.f32 %v2641, %v2645
        %v2650 = vmax.f32 %v2642, %v2646
        %v2651 = vmax.f32 %v2643, %v2647
        %v2652 = vld [vmem:[%s5] sm:$0xff]
        %v2653 = vld [vmem:[%s5 + $0x8] sm:$0xff]
        %v2654 = vld [vmem:[%s5 + $0x10] sm:$0xff]
        %v2655 = vld [vmem:[%s5 + $0x18] sm:$0xff]
        %v2656 = vld [vmem:[%s5 + $0x20] sm:$0xff]
        %v2657 = vld [vmem:[%s5 + $0x28] sm:$0xff]
        %v2658 = vld [vmem:[%s5 + $0x30] sm:$0xff]
        %v2659 = vld [vmem:[%s5 + $0x38] sm:$0xff]
        %v2660 = vld [vmem:[%s5 + $0x40] sm:$0xff]
        %v2661 = vld [vmem:[%s5 + $0x48] sm:$0xff]
        %v2662 = vld [vmem:[%s5 + $0x50] sm:$0xff]
        %v2663 = vld [vmem:[%s5 + $0x58] sm:$0xff]
        %v2664 = vld [vmem:[%s5 + $0x60] sm:$0xff]
        %v2665 = vld [vmem:[%s5 + $0x68] sm:$0xff]
        %v2666 = vld [vmem:[%s5 + $0x70] sm:$0xff]
        %v2667 = vld [vmem:[%s5 + $0x78] sm:$0xff]
        %v2668 = vld [vmem:[%s5 + $0x80] sm:$0xff]
        %v2669 = vld [vmem:[%s5 + $0x88] sm:$0xff]
        %v2670 = vld [vmem:[%s5 + $0x90] sm:$0xff]
        %v2671 = vld [vmem:[%s5 + $0x98] sm:$0xff]
        %v2672 = vld [vmem:[%s5 + $0xa0] sm:$0xff]
        %v2673 = vld [vmem:[%s5 + $0xa8] sm:$0xff]
        %v2674 = vld [vmem:[%s5 + $0xb0] sm:$0xff]
        %v2675 = vld [vmem:[%s5 + $0xb8] sm:$0xff]
        %v2676 = vld [vmem:[%s5 + $0xc0] sm:$0xff]
        %v2677 = vld [vmem:[%s5 + $0xc8] sm:$0xff]
        %v2678 = vld [vmem:[%s5 + $0xd0] sm:$0xff]
        %v2679 = vld [vmem:[%s5 + $0xd8] sm:$0xff]
        %v2680 = vld [vmem:[%s5 + $0xe0] sm:$0xff]
        %v2681 = vld [vmem:[%s5 + $0xe8] sm:$0xff]
        %v2682 = vld [vmem:[%s5 + $0xf0] sm:$0xff]
        %v2683 = vld [vmem:[%s5 + $0xf8] sm:$0xff]
        %v2684 = vld [vmem:[%s5 + $0x100] sm:$0xff]
        %v2685 = vld [vmem:[%s5 + $0x108] sm:$0xff]
        %v2686 = vld [vmem:[%s5 + $0x110] sm:$0xff]
        %v2687 = vld [vmem:[%s5 + $0x118] sm:$0xff]
        %v2688 = vld [vmem:[%s5 + $0x120] sm:$0xff]
        %v2689 = vld [vmem:[%s5 + $0x128] sm:$0xff]
        %v2690 = vld [vmem:[%s5 + $0x130] sm:$0xff]
        %v2691 = vld [vmem:[%s5 + $0x138] sm:$0xff]
        %v2692 = vld [vmem:[%s5 + $0x140] sm:$0xff]
        %v2693 = vld [vmem:[%s5 + $0x148] sm:$0xff]
        %v2694 = vld [vmem:[%s5 + $0x150] sm:$0xff]
        %v2695 = vld [vmem:[%s5 + $0x158] sm:$0xff]
        %v2696 = vld [vmem:[%s5 + $0x160] sm:$0xff]
        %v2697 = vld [vmem:[%s5 + $0x168] sm:$0xff]
        %v2698 = vld [vmem:[%s5 + $0x170] sm:$0xff]
        %v2699 = vld [vmem:[%s5 + $0x178] sm:$0xff]
        %v2700 = vld [vmem:[%s5 + $0x180] sm:$0xff]
        %v2701 = vld [vmem:[%s5 + $0x188] sm:$0xff]
        %v2702 = vld [vmem:[%s5 + $0x190] sm:$0xff]
        %v2703 = vld [vmem:[%s5 + $0x198] sm:$0xff]
        %v2704 = vld [vmem:[%s5 + $0x1a0] sm:$0xff]
        %v2705 = vld [vmem:[%s5 + $0x1a8] sm:$0xff]
        %v2706 = vld [vmem:[%s5 + $0x1b0] sm:$0xff]
        %v2707 = vld [vmem:[%s5 + $0x1b8] sm:$0xff]
        %v2708 = vld [vmem:[%s5 + $0x1c0] sm:$0xff]
        %v2709 = vld [vmem:[%s5 + $0x1c8] sm:$0xff]
        %v2710 = vld [vmem:[%s5 + $0x1d0] sm:$0xff]
        %v2711 = vld [vmem:[%s5 + $0x1d8] sm:$0xff]
        %v2712 = vld [vmem:[%s5 + $0x1e0] sm:$0xff]
        %v2713 = vld [vmem:[%s5 + $0x1e8] sm:$0xff]
        %v2714 = vld [vmem:[%s5 + $0x1f0] sm:$0xff]
        %v2715 = vld [vmem:[%s5 + $0x1f8] sm:$0xff]
        %v2716 = vmul.f32 %v2648, %v2652
        %v2717 = vmul.f32 %v2649, %v2653
        %v2718 = vmul.f32 %v2650, %v2654
        %v2719 = vmul.f32 %v2651, %v2655
        %v2720 = vmul.f32 %v2648, %v2656
        %v2721 = vmul.f32 %v2649, %v2657
        %v2722 = vmul.f32 %v2650, %v2658
        %v2723 = vmul.f32 %v2651, %v2659
        %v2724 = vmul.f32 %v2648, %v2660
        %v2725 = vmul.f32 %v2649, %v2661
        %v2726 = vmul.f32 %v2650, %v2662
        %v2727 = vmul.f32 %v2651, %v2663
        %v2728 = vmul.f32 %v2648, %v2664
        %v2729 = vmul.f32 %v2649, %v2665
        %v2730 = vmul.f32 %v2650, %v2666
        %v2731 = vmul.f32 %v2651, %v2667
        %v2732 = vmul.f32 %v2648, %v2668
        %v2733 = vmul.f32 %v2649, %v2669
        %v2734 = vmul.f32 %v2650, %v2670
        %v2735 = vmul.f32 %v2651, %v2671
        %v2736 = vmul.f32 %v2648, %v2672
        %v2737 = vmul.f32 %v2649, %v2673
        %v2738 = vmul.f32 %v2650, %v2674
        %v2739 = vmul.f32 %v2651, %v2675
        %v2740 = vmul.f32 %v2648, %v2676
        %v2741 = vmul.f32 %v2649, %v2677
        %v2742 = vmul.f32 %v2650, %v2678
        %v2743 = vmul.f32 %v2651, %v2679
        %v2744 = vmul.f32 %v2648, %v2680
        %v2745 = vmul.f32 %v2649, %v2681
        %v2746 = vmul.f32 %v2650, %v2682
        %v2747 = vmul.f32 %v2651, %v2683
        %v2748 = vmul.f32 %v2648, %v2684
        %v2749 = vmul.f32 %v2649, %v2685
        %v2750 = vmul.f32 %v2650, %v2686
        %v2751 = vmul.f32 %v2651, %v2687
        %v2752 = vmul.f32 %v2648, %v2688
        %v2753 = vmul.f32 %v2649, %v2689
        %v2754 = vmul.f32 %v2650, %v2690
        %v2755 = vmul.f32 %v2651, %v2691
        %v2756 = vmul.f32 %v2648, %v2692
        %v2757 = vmul.f32 %v2649, %v2693
        %v2758 = vmul.f32 %v2650, %v2694
        %v2759 = vmul.f32 %v2651, %v2695
        %v2760 = vmul.f32 %v2648, %v2696
        %v2761 = vmul.f32 %v2649, %v2697
        %v2762 = vmul.f32 %v2650, %v2698
        %v2763 = vmul.f32 %v2651, %v2699
        %v2764 = vmul.f32 %v2648, %v2700
        %v2765 = vmul.f32 %v2649, %v2701
        %v2766 = vmul.f32 %v2650, %v2702
        %v2767 = vmul.f32 %v2651, %v2703
        %v2768 = vmul.f32 %v2648, %v2704
        %v2769 = vmul.f32 %v2649, %v2705
        %v2770 = vmul.f32 %v2650, %v2706
        %v2771 = vmul.f32 %v2651, %v2707
        %v2772 = vmul.f32 %v2648, %v2708
        %v2773 = vmul.f32 %v2649, %v2709
        %v2774 = vmul.f32 %v2650, %v2710
        %v2775 = vmul.f32 %v2651, %v2711
        %v2776 = vmul.f32 %v2648, %v2712
        %v2777 = vmul.f32 %v2649, %v2713
        %v2778 = vmul.f32 %v2650, %v2714
        %v2779 = vmul.f32 %v2651, %v2715
        %2780 = vadd.xlane.f32.xlu0 %v2716
        %v2781 = vpop.xlane.xlu0 %2780
        %2782 = vadd.xlane.f32.xlu0 %v2717
        %v2783 = vpop.xlane.xlu0 %2782
        %2784 = vadd.xlane.f32.xlu0 %v2718
        %v2785 = vpop.xlane.xlu0 %2784
        %2786 = vadd.xlane.f32.xlu0 %v2719
        %v2787 = vpop.xlane.xlu0 %2786
        %2788 = vadd.xlane.f32.xlu0 %v2720
        %v2789 = vpop.xlane.xlu0 %2788
        %2790 = vadd.xlane.f32.xlu0 %v2721
        %v2791 = vpop.xlane.xlu0 %2790
        %2792 = vadd.xlane.f32.xlu0 %v2722
        %v2793 = vpop.xlane.xlu0 %2792
        %2794 = vadd.xlane.f32.xlu0 %v2723
        %v2795 = vpop.xlane.xlu0 %2794
        %2796 = vadd.xlane.f32.xlu0 %v2724
        %v2797 = vpop.xlane.xlu0 %2796
        %2798 = vadd.xlane.f32.xlu0 %v2725
        %v2799 = vpop.xlane.xlu0 %2798
        %2800 = vadd.xlane.f32.xlu0 %v2726
        %v2801 = vpop.xlane.xlu0 %2800
        %2802 = vadd.xlane.f32.xlu0 %v2727
        %v2803 = vpop.xlane.xlu0 %2802
        %2804 = vadd.xlane.f32.xlu0 %v2728
        %v2805 = vpop.xlane.xlu0 %2804
        %2806 = vadd.xlane.f32.xlu0 %v2729
        %v2807 = vpop.xlane.xlu0 %2806
        %2808 = vadd.xlane.f32.xlu0 %v2730
        %v2809 = vpop.xlane.xlu0 %2808
        %2810 = vadd.xlane.f32.xlu0 %v2731
        %v2811 = vpop.xlane.xlu0 %2810
        %2812 = vadd.xlane.f32.xlu0 %v2732
        %v2813 = vpop.xlane.xlu0 %2812
        %2814 = vadd.xlane.f32.xlu0 %v2733
        %v2815 = vpop.xlane.xlu0 %2814
        %2816 = vadd.xlane.f32.xlu0 %v2734
        %v2817 = vpop.xlane.xlu0 %2816
        %2818 = vadd.xlane.f32.xlu0 %v2735
        %v2819 = vpop.xlane.xlu0 %2818
        %2820 = vadd.xlane.f32.xlu0 %v2736
        %v2821 = vpop.xlane.xlu0 %2820
        %2822 = vadd.xlane.f32.xlu0 %v2737
        %v2823 = vpop.xlane.xlu0 %2822
        %2824 = vadd.xlane.f32.xlu0 %v2738
        %v2825 = vpop.xlane.xlu0 %2824
        %2826 = vadd.xlane.f32.xlu0 %v2739
        %v2827 = vpop.xlane.xlu0 %2826
        %2828 = vadd.xlane.f32.xlu0 %v2740
        %v2829 = vpop.xlane.xlu0 %2828
        %2830 = vadd.xlane.f32.xlu0 %v2741
        %v2831 = vpop.xlane.xlu0 %2830
        %2832 = vadd.xlane.f32.xlu0 %v2742
        %v2833 = vpop.xlane.xlu0 %2832
        %2834 = vadd.xlane.f32.xlu0 %v2743
        %v2835 = vpop.xlane.xlu0 %2834
        %2836 = vadd.xlane.f32.xlu0 %v2744
        %v2837 = vpop.xlane.xlu0 %2836
        %2838 = vadd.xlane.f32.xlu0 %v2745
        %v2839 = vpop.xlane.xlu0 %2838
        %2840 = vadd.xlane.f32.xlu0 %v2746
        %v2841 = vpop.xlane.xlu0 %2840
        %2842 = vadd.xlane.f32.xlu0 %v2747
        %v2843 = vpop.xlane.xlu0 %2842
        %2844 = vadd.xlane.f32.xlu0 %v2748
        %v2845 = vpop.xlane.xlu0 %2844
        %2846 = vadd.xlane.f32.xlu0 %v2749
        %v2847 = vpop.xlane.xlu0 %2846
        %2848 = vadd.xlane.f32.xlu0 %v2750
        %v2849 = vpop.xlane.xlu0 %2848
        %2850 = vadd.xlane.f32.xlu0 %v2751
        %v2851 = vpop.xlane.xlu0 %2850
        %2852 = vadd.xlane.f32.xlu0 %v2752
        %v2853 = vpop.xlane.xlu0 %2852
        %2854 = vadd.xlane.f32.xlu0 %v2753
        %v2855 = vpop.xlane.xlu0 %2854
        %2856 = vadd.xlane.f32.xlu0 %v2754
        %v2857 = vpop.xlane.xlu0 %2856
        %2858 = vadd.xlane.f32.xlu0 %v2755
        %v2859 = vpop.xlane.xlu0 %2858
        %2860 = vadd.xlane.f32.xlu0 %v2756
        %v2861 = vpop.xlane.xlu0 %2860
        %2862 = vadd.xlane.f32.xlu0 %v2757
        %v2863 = vpop.xlane.xlu0 %2862
        %2864 = vadd.xlane.f32.xlu0 %v2758
        %v2865 = vpop.xlane.xlu0 %2864
        %2866 = vadd.xlane.f32.xlu0 %v2759
        %v2867 = vpop.xlane.xlu0 %2866
        %2868 = vadd.xlane.f32.xlu0 %v2760
        %v2869 = vpop.xlane.xlu0 %2868
        %2870 = vadd.xlane.f32.xlu0 %v2761
        %v2871 = vpop.xlane.xlu0 %2870
        %2872 = vadd.xlane.f32.xlu0 %v2762
        %v2873 = vpop.xlane.xlu0 %2872
        %2874 = vadd.xlane.f32.xlu0 %v2763
        %v2875 = vpop.xlane.xlu0 %2874
        %2876 = vadd.xlane.f32.xlu0 %v2764
        %v2877 = vpop.xlane.xlu0 %2876
        %2878 = vadd.xlane.f32.xlu0 %v2765
        %v2879 = vpop.xlane.xlu0 %2878
        %2880 = vadd.xlane.f32.xlu0 %v2766
        %v2881 = vpop.xlane.xlu0 %2880
        %2882 = vadd.xlane.f32.xlu0 %v2767
        %v2883 = vpop.xlane.xlu0 %2882
        %2884 = vadd.xlane.f32.xlu0 %v2768
        %v2885 = vpop.xlane.xlu0 %2884
        %2886 = vadd.xlane.f32.xlu0 %v2769
        %v2887 = vpop.xlane.xlu0 %2886
        %2888 = vadd.xlane.f32.xlu0 %v2770
        %v2889 = vpop.xlane.xlu0 %2888
        %2890 = vadd.xlane.f32.xlu0 %v2771
        %v2891 = vpop.xlane.xlu0 %2890
        %2892 = vadd.xlane.f32.xlu0 %v2772
        %v2893 = vpop.xlane.xlu0 %2892
        %2894 = vadd.xlane.f32.xlu0 %v2773
        %v2895 = vpop.xlane.xlu0 %2894
        %2896 = vadd.xlane.f32.xlu0 %v2774
        %v2897 = vpop.xlane.xlu0 %2896
        %2898 = vadd.xlane.f32.xlu0 %v2775
        %v2899 = vpop.xlane.xlu0 %2898
        %2900 = vadd.xlane.f32.xlu0 %v2776
        %v2901 = vpop.xlane.xlu0 %2900
        %2902 = vadd.xlane.f32.xlu0 %v2777
        %v2903 = vpop.xlane.xlu0 %2902
        %2904 = vadd.xlane.f32.xlu0 %v2778
        %v2905 = vpop.xlane.xlu0 %2904
        %2906 = vadd.xlane.f32.xlu0 %v2779
        %v2907 = vpop.xlane.xlu0 %2906
        %v2972 = vlaneseq
        %v2973 = vand.u32 %v2972, 127
        %v2974 = vlaneseq
        %v2975 = vshrl.u32 %v2974, 7
        %v2976 = vsub.s32 %v2973, %v2975
        %v2977 = vrot.slane %v2781, %v2976
        %v2978 = vadd.s32 %v2973, 4294967288
        %v2979 = vlaneseq
        %v2980 = vshrl.u32 %v2979, 7
        %v2981 = vsub.s32 %v2978, %v2980
        %v2982 = vrot.slane %v2783, %v2981
        %vm2983 = vcmask 130112
        %v2984 = vsel %vm2983, %v2982, %v2977
        %v2985 = vadd.s32 %v2973, 4294967280
        %v2986 = vlaneseq
        %v2987 = vshrl.u32 %v2986, 7
        %v2988 = vsub.s32 %v2985, %v2987
        %v2989 = vrot.slane %v2785, %v2988
        %vm2990 = vcmask 195712
        %v2991 = vsel %vm2990, %v2989, %v2984
        %v2992 = vadd.s32 %v2973, 4294967272
        %v2993 = vlaneseq
        %v2994 = vshrl.u32 %v2993, 7
        %v2995 = vsub.s32 %v2992, %v2994
        %v2996 = vrot.slane %v2787, %v2995
        %vm2997 = vcmask 261312
        %v2998 = vsel %vm2997, %v2996, %v2991
        %v2999 = vlaneseq
        %v3000 = vshrl.u32 %v2999, 7
        %v3001 = vsub.s32 %v2973, %v3000
        %v3002 = vrot.slane %v2789, %v3001
        %v3003 = vlaneseq
        %v3004 = vshrl.u32 %v3003, 7
        %v3005 = vsub.s32 %v2978, %v3004
        %v3006 = vrot.slane %v2791, %v3005
        %v3007 = vsel %vm2983, %v3006, %v3002
        %v3008 = vlaneseq
        %v3009 = vshrl.u32 %v3008, 7
        %v3010 = vsub.s32 %v2985, %v3009
        %v3011 = vrot.slane %v2793, %v3010
        %v3012 = vsel %vm2990, %v3011, %v3007
        %v3013 = vlaneseq
        %v3014 = vshrl.u32 %v3013, 7
        %v3015 = vsub.s32 %v2992, %v3014
        %v3016 = vrot.slane %v2795, %v3015
        %v3017 = vsel %vm2997, %v3016, %v3012
        %v3018 = vlaneseq
        %v3019 = vshrl.u32 %v3018, 7
        %v3020 = vsub.s32 %v2973, %v3019
        %v3021 = vrot.slane %v2797, %v3020
        %v3022 = vlaneseq
        %v3023 = vshrl.u32 %v3022, 7
        %v3024 = vsub.s32 %v2978, %v3023
        %v3025 = vrot.slane %v2799, %v3024
        %v3026 = vsel %vm2983, %v3025, %v3021
        %v3027 = vlaneseq
        %v3028 = vshrl.u32 %v3027, 7
        %v3029 = vsub.s32 %v2985, %v3028
        %v3030 = vrot.slane %v2801, %v3029
        %v3031 = vsel %vm2990, %v3030, %v3026
        %v3032 = vlaneseq
        %v3033 = vshrl.u32 %v3032, 7
        %v3034 = vsub.s32 %v2992, %v3033
        %v3035 = vrot.slane %v2803, %v3034
        %v3036 = vsel %vm2997, %v3035, %v3031
        %v3037 = vlaneseq
        %v3038 = vshrl.u32 %v3037, 7
        %v3039 = vsub.s32 %v2973, %v3038
        %v3040 = vrot.slane %v2805, %v3039
        %v3041 = vlaneseq
        %v3042 = vshrl.u32 %v3041, 7
        %v3043 = vsub.s32 %v2978, %v3042
        %v3044 = vrot.slane %v2807, %v3043
        %v3045 = vsel %vm2983, %v3044, %v3040
        %v3046 = vlaneseq
        %v3047 = vshrl.u32 %v3046, 7
        %v3048 = vsub.s32 %v2985, %v3047
        %v3049 = vrot.slane %v2809, %v3048
        %v3050 = vsel %vm2990, %v3049, %v3045
        %v3051 = vlaneseq
        %v3052 = vshrl.u32 %v3051, 7
        %v3053 = vsub.s32 %v2992, %v3052
        %v3054 = vrot.slane %v2811, %v3053
        %v3055 = vsel %vm2997, %v3054, %v3050
        %v3056 = vlaneseq
        %v3057 = vshrl.u32 %v3056, 7
        %v3058 = vsub.s32 %v2973, %v3057
        %v3059 = vrot.slane %v2813, %v3058
        %v3060 = vlaneseq
        %v3061 = vshrl.u32 %v3060, 7
        %v3062 = vsub.s32 %v2978, %v3061
        %v3063 = vrot.slane %v2815, %v3062
        %v3064 = vsel %vm2983, %v3063, %v3059
        %v3065 = vlaneseq
        %v3066 = vshrl.u32 %v3065, 7
        %v3067 = vsub.s32 %v2985, %v3066
        %v3068 = vrot.slane %v2817, %v3067
        %v3069 = vsel %vm2990, %v3068, %v3064
        %v3070 = vlaneseq
        %v3071 = vshrl.u32 %v3070, 7
        %v3072 = vsub.s32 %v2992, %v3071
        %v3073 = vrot.slane %v2819, %v3072
        %v3074 = vsel %vm2997, %v3073, %v3069
        %v3075 = vlaneseq
        %v3076 = vshrl.u32 %v3075, 7
        %v3077 = vsub.s32 %v2973, %v3076
        %v3078 = vrot.slane %v2821, %v3077
        %v3079 = vlaneseq
        %v3080 = vshrl.u32 %v3079, 7
        %v3081 = vsub.s32 %v2978, %v3080
        %v3082 = vrot.slane %v2823, %v3081
        %v3083 = vsel %vm2983, %v3082, %v3078
        %v3084 = vlaneseq
        %v3085 = vshrl.u32 %v3084, 7
        %v3086 = vsub.s32 %v2985, %v3085
        %v3087 = vrot.slane %v2825, %v3086
        %v3088 = vsel %vm2990, %v3087, %v3083
        %v3089 = vlaneseq
        %v3090 = vshrl.u32 %v3089, 7
        %v3091 = vsub.s32 %v2992, %v3090
        %v3092 = vrot.slane %v2827, %v3091
        %v3093 = vsel %vm2997, %v3092, %v3088
        %v3094 = vlaneseq
        %v3095 = vshrl.u32 %v3094, 7
        %v3096 = vsub.s32 %v2973, %v3095
        %v3097 = vrot.slane %v2829, %v3096
        %v3098 = vlaneseq
        %v3099 = vshrl.u32 %v3098, 7
        %v3100 = vsub.s32 %v2978, %v3099
        %v3101 = vrot.slane %v2831, %v3100
        %v3102 = vsel %vm2983, %v3101, %v3097
        %v3103 = vlaneseq
        %v3104 = vshrl.u32 %v3103, 7
        %v3105 = vsub.s32 %v2985, %v3104
        %v3106 = vrot.slane %v2833, %v3105
        %v3107 = vsel %vm2990, %v3106, %v3102
        %v3108 = vlaneseq
        %v3109 = vshrl.u32 %v3108, 7
        %v3110 = vsub.s32 %v2992, %v3109
        %v3111 = vrot.slane %v2835, %v3110
        %v3112 = vsel %vm2997, %v3111, %v3107
        %v3113 = vlaneseq
        %v3114 = vshrl.u32 %v3113, 7
        %v3115 = vsub.s32 %v2973, %v3114
        %v3116 = vrot.slane %v2837, %v3115
        %v3117 = vlaneseq
        %v3118 = vshrl.u32 %v3117, 7
        %v3119 = vsub.s32 %v2978, %v3118
        %v3120 = vrot.slane %v2839, %v3119
        %v3121 = vsel %vm2983, %v3120, %v3116
        %v3122 = vlaneseq
        %v3123 = vshrl.u32 %v3122, 7
        %v3124 = vsub.s32 %v2985, %v3123
        %v3125 = vrot.slane %v2841, %v3124
        %v3126 = vsel %vm2990, %v3125, %v3121
        %v3127 = vlaneseq
        %v3128 = vshrl.u32 %v3127, 7
        %v3129 = vsub.s32 %v2992, %v3128
        %v3130 = vrot.slane %v2843, %v3129
        %v3131 = vsel %vm2997, %v3130, %v3126
        %v3132 = vlaneseq
        %v3133 = vshrl.u32 %v3132, 7
        %v3134 = vsub.s32 %v2973, %v3133
        %v3135 = vrot.slane %v2845, %v3134
        %v3136 = vlaneseq
        %v3137 = vshrl.u32 %v3136, 7
        %v3138 = vsub.s32 %v2978, %v3137
        %v3139 = vrot.slane %v2847, %v3138
        %v3140 = vsel %vm2983, %v3139, %v3135
        %v3141 = vlaneseq
        %v3142 = vshrl.u32 %v3141, 7
        %v3143 = vsub.s32 %v2985, %v3142
        %v3144 = vrot.slane %v2849, %v3143
        %v3145 = vsel %vm2990, %v3144, %v3140
        %v3146 = vlaneseq
        %v3147 = vshrl.u32 %v3146, 7
        %v3148 = vsub.s32 %v2992, %v3147
        %v3149 = vrot.slane %v2851, %v3148
        %v3150 = vsel %vm2997, %v3149, %v3145
        %v3151 = vlaneseq
        %v3152 = vshrl.u32 %v3151, 7
        %v3153 = vsub.s32 %v2973, %v3152
        %v3154 = vrot.slane %v2853, %v3153
        %v3155 = vlaneseq
        %v3156 = vshrl.u32 %v3155, 7
        %v3157 = vsub.s32 %v2978, %v3156
        %v3158 = vrot.slane %v2855, %v3157
        %v3159 = vsel %vm2983, %v3158, %v3154
        %v3160 = vlaneseq
        %v3161 = vshrl.u32 %v3160, 7
        %v3162 = vsub.s32 %v2985, %v3161
        %v3163 = vrot.slane %v2857, %v3162
        %v3164 = vsel %vm2990, %v3163, %v3159
        %v3165 = vlaneseq
        %v3166 = vshrl.u32 %v3165, 7
        %v3167 = vsub.s32 %v2992, %v3166
        %v3168 = vrot.slane %v2859, %v3167
        %v3169 = vsel %vm2997, %v3168, %v3164
        %v3170 = vlaneseq
        %v3171 = vshrl.u32 %v3170, 7
        %v3172 = vsub.s32 %v2973, %v3171
        %v3173 = vrot.slane %v2861, %v3172
        %v3174 = vlaneseq
        %v3175 = vshrl.u32 %v3174, 7
        %v3176 = vsub.s32 %v2978, %v3175
        %v3177 = vrot.slane %v2863, %v3176
        %v3178 = vsel %vm2983, %v3177, %v3173
        %v3179 = vlaneseq
        %v3180 = vshrl.u32 %v3179, 7
        %v3181 = vsub.s32 %v2985, %v3180
        %v3182 = vrot.slane %v2865, %v3181
        %v3183 = vsel %vm2990, %v3182, %v3178
        %v3184 = vlaneseq
        %v3185 = vshrl.u32 %v3184, 7
        %v3186 = vsub.s32 %v2992, %v3185
        %v3187 = vrot.slane %v2867, %v3186
        %v3188 = vsel %vm2997, %v3187, %v3183
        %v3189 = vlaneseq
        %v3190 = vshrl.u32 %v3189, 7
        %v3191 = vsub.s32 %v2973, %v3190
        %v3192 = vrot.slane %v2869, %v3191
        %v3193 = vlaneseq
        %v3194 = vshrl.u32 %v3193, 7
        %v3195 = vsub.s32 %v2978, %v3194
        %v3196 = vrot.slane %v2871, %v3195
        %v3197 = vsel %vm2983, %v3196, %v3192
        %v3198 = vlaneseq
        %v3199 = vshrl.u32 %v3198, 7
        %v3200 = vsub.s32 %v2985, %v3199
        %v3201 = vrot.slane %v2873, %v3200
        %v3202 = vsel %vm2990, %v3201, %v3197
        %v3203 = vlaneseq
        %v3204 = vshrl.u32 %v3203, 7
        %v3205 = vsub.s32 %v2992, %v3204
        %v3206 = vrot.slane %v2875, %v3205
        %v3207 = vsel %vm2997, %v3206, %v3202
        %v3208 = vlaneseq
        %v3209 = vshrl.u32 %v3208, 7
        %v3210 = vsub.s32 %v2973, %v3209
        %v3211 = vrot.slane %v2877, %v3210
        %v3212 = vlaneseq
        %v3213 = vshrl.u32 %v3212, 7
        %v3214 = vsub.s32 %v2978, %v3213
        %v3215 = vrot.slane %v2879, %v3214
        %v3216 = vsel %vm2983, %v3215, %v3211
        %v3217 = vlaneseq
        %v3218 = vshrl.u32 %v3217, 7
        %v3219 = vsub.s32 %v2985, %v3218
        %v3220 = vrot.slane %v2881, %v3219
        %v3221 = vsel %vm2990, %v3220, %v3216
        %v3222 = vlaneseq
        %v3223 = vshrl.u32 %v3222, 7
        %v3224 = vsub.s32 %v2992, %v3223
        %v3225 = vrot.slane %v2883, %v3224
        %v3226 = vsel %vm2997, %v3225, %v3221
        %v3227 = vlaneseq
        %v3228 = vshrl.u32 %v3227, 7
        %v3229 = vsub.s32 %v2973, %v3228
        %v3230 = vrot.slane %v2885, %v3229
        %v3231 = vlaneseq
        %v3232 = vshrl.u32 %v3231, 7
        %v3233 = vsub.s32 %v2978, %v3232
        %v3234 = vrot.slane %v2887, %v3233
        %v3235 = vsel %vm2983, %v3234, %v3230
        %v3236 = vlaneseq
        %v3237 = vshrl.u32 %v3236, 7
        %v3238 = vsub.s32 %v2985, %v3237
        %v3239 = vrot.slane %v2889, %v3238
        %v3240 = vsel %vm2990, %v3239, %v3235
        %v3241 = vlaneseq
        %v3242 = vshrl.u32 %v3241, 7
        %v3243 = vsub.s32 %v2992, %v3242
        %v3244 = vrot.slane %v2891, %v3243
        %v3245 = vsel %vm2997, %v3244, %v3240
        %v3246 = vlaneseq
        %v3247 = vshrl.u32 %v3246, 7
        %v3248 = vsub.s32 %v2973, %v3247
        %v3249 = vrot.slane %v2893, %v3248
        %v3250 = vlaneseq
        %v3251 = vshrl.u32 %v3250, 7
        %v3252 = vsub.s32 %v2978, %v3251
        %v3253 = vrot.slane %v2895, %v3252
        %v3254 = vsel %vm2983, %v3253, %v3249
        %v3255 = vlaneseq
        %v3256 = vshrl.u32 %v3255, 7
        %v3257 = vsub.s32 %v2985, %v3256
        %v3258 = vrot.slane %v2897, %v3257
        %v3259 = vsel %vm2990, %v3258, %v3254
        %v3260 = vlaneseq
        %v3261 = vshrl.u32 %v3260, 7
        %v3262 = vsub.s32 %v2992, %v3261
        %v3263 = vrot.slane %v2899, %v3262
        %v3264 = vsel %vm2997, %v3263, %v3259
        %v3265 = vlaneseq
        %v3266 = vshrl.u32 %v3265, 7
        %v3267 = vsub.s32 %v2973, %v3266
        %v3268 = vrot.slane %v2901, %v3267
        %v3269 = vlaneseq
        %v3270 = vshrl.u32 %v3269, 7
        %v3271 = vsub.s32 %v2978, %v3270
        %v3272 = vrot.slane %v2903, %v3271
        %v3273 = vsel %vm2983, %v3272, %v3268
        %v3274 = vlaneseq
        %v3275 = vshrl.u32 %v3274, 7
        %v3276 = vsub.s32 %v2985, %v3275
        %v3277 = vrot.slane %v2905, %v3276
        %v3278 = vsel %vm2990, %v3277, %v3273
        %v3279 = vlaneseq
        %v3280 = vshrl.u32 %v3279, 7
        %v3281 = vsub.s32 %v2992, %v3280
        %v3282 = vrot.slane %v2907, %v3281
        %v3283 = vsel %vm2997, %v3282, %v3278
        %vm3284 = vcmask 1041409
        %v3285 = vsel %vm3284, %v3017, %v2998
        %vm3286 = vcmask 1042434
        %v3287 = vsel %vm3286, %v3036, %v3285
        %vm3288 = vcmask 1043459
        %v3289 = vsel %vm3288, %v3055, %v3287
        %vm3290 = vcmask 1044484
        %v3291 = vsel %vm3290, %v3074, %v3289
        %vm3292 = vcmask 1045509
        %v3293 = vsel %vm3292, %v3093, %v3291
        %vm3294 = vcmask 1046534
        %v3295 = vsel %vm3294, %v3112, %v3293
        %vm3296 = vcmask 1047559
        %v3297 = vsel %vm3296, %v3131, %v3295
        %v3298 = vsel %vm3284, %v3169, %v3150
        %v3299 = vsel %vm3286, %v3188, %v3298
        %v3300 = vsel %vm3288, %v3207, %v3299
        %v3301 = vsel %vm3290, %v3226, %v3300
        %v3302 = vsel %vm3292, %v3245, %v3301
        %v3303 = vsel %vm3294, %v3264, %v3302
        %v3304 = vsel %vm3296, %v3283, %v3303
        %vm3307 = vcmask 261120
        %v3308 = vsel %vm3307, %v3297, 0.0
        %3309 = vadd.xlane.f32.xlu0 %v3308
        %v3310 = vpop.xlane.xlu0 %3309
        %v3311 = vsel %vm3307, %v3304, 0.0
        %3312 = vadd.xlane.f32.xlu0 %v3311
        %v3313 = vpop.xlane.xlu0 %3312
        %v3314 = vld [vmem:[%s6] sm:$0x1]
        %v3316 = vlaneseq
        %v3317 = vshrl.u32 %v3316, 7
        %v3318 = vsub.s32 0, %v3317
        %v3319 = vrot.slane %v3314, %v3318
        %3321 = vbcast.lane.b32.xlu0 %v3319, 256
        %v3322 = vpop.permute.xlu0 %3321
        %s3324 = sor.u32 256, 8
        %3325 = vbcast.lane.b32.xlu0 %v3319, %s3324
        %v3326 = vpop.permute.xlu0 %3325
        %v3329 = vadd.f32 %v3310, %v3322
        %v3330 = vadd.f32 %v3313, %v3326
        %3333 = vset.pattern.permute.xlu0 0
        %3334 = vperm.xlu0 %3333, %v3329
        %v3335 = vpop.permute.xlu0 %3334
        %3336 = vset.pattern.permute.xlu0 0
        %3337 = vperm.xlu0 %3336, %v3330
        %v3338 = vpop.permute.xlu0 %3337
        %v3339 = vlaneseq
        %v3340 = vshrl.u32 %v3339, 7
        %v3341 = vsub.s32 %v2973, %v3340
        %v3342 = vrot.slane %v3335, %v3341
        %v3343 = vlaneseq
        %v3344 = vshrl.u32 %v3343, 7
        %v3345 = vsub.s32 %v2978, %v3344
        %v3346 = vrot.slane %v3338, %v3345
        %v3347 = vsel %vm2983, %v3346, %v3342
        %vm3349 = vcmask 122880
        %3350 = vst.msk [vmem:[%s273] sm:$0x1] %vm3349, %v3347
        %s3351 = sand.u32 %s181, 1
        %s3352 = scalar_lea.sflag [#allocation3], %s3351
        %s3353 = sand.u32 %s181, 1
        %s3354 = scalar_lea.vmem [#allocation2], %s3353
        // Predicated region
        $region49: #{mynet3_forward.1} parent=47 // pred_check
          %p3355 = pneg %p191
        $region50: #{mynet3_forward.1} parent=47 // pred_check_branch
          %3357 = sbr.rel (%p3355) target = $region52
        $region51: #{mynet3_forward.1} parent=47 // pred_region
          %s3359 = ssub.s32 16, 16
          %3360 = vsyncadd %s3352, %s3359
          %s3361 = smul.addr %s21, 16
          %s3362 = scalar_lea.hbm %s7, %s3361
          %s3364 = sshll.u32 %s3354, 4
          %s3365 = int_to_ptr.vmem [resolvable:$true] %s3364
          %3367 = dma.vmem_to_hbm [thread:$0]  %s3365, 16, %s3362, %s3352
        $region52: #{mynet3_forward.1} parent=47 // pred_fallthru
          _
      $region48: #{mynet3_forward.1} parent=5 // pred_fallthru
        _
      %p3368 = scmp.le.s32.totalorder 2, %s16
      // Predicated region
      $region53: #{mynet3_forward.1} parent=5 // pred_check
        %p3369 = pneg %p3368
      $region54: #{mynet3_forward.1} parent=5 // pred_check_branch
        %3371 = sbr.rel (%p3369) target = $region56
      $region55: #{mynet3_forward.1} parent=5 // pred_region
        %s3372 = ssub.s32 %s16, 2
        // Predicated region
        $region57: #{mynet3_forward.1} parent=55 // pred_check
          %p3373 = pneg %p197
        $region58: #{mynet3_forward.1} parent=55 // pred_check_branch
          %3375 = sbr.rel (%p3373) target = $region60
        $region59: #{mynet3_forward.1} parent=55 // pred_region
          %s3376 = sand.u32 %s182, 1
          %s3377 = scalar_lea.sflag [#allocation3], %s3376
          %s3378 = sand.u32 %s182, 1
          %s3379 = scalar_lea.vmem [#allocation2], %s3378
          %3380 = dma.done %s3377, 16
        $region60: #{mynet3_forward.1} parent=55 // pred_fallthru
          _
      $region56: #{mynet3_forward.1} parent=5 // pred_fallthru
        _
    $region6: #{mynet3_forward.1} parent=1 // loop_footer
      %s20 = sadd.s32 1, %s16
    $region7: #{mynet3_forward.1} parent=1 // loop_footer_branch
      %15 = sbr.rel target = $region3
    $region8: #{mynet3_forward.1} parent=1 // loop_exit
      _
    %3381 = vsyncpa [#allocation3], 1
    %s3382 = scalar_lea.sflag [#allocation3], 1
    %3383 = vsyncpa %s3382, 1

</llo_original>
